<compile_context>
chip_gen: v7x
topology: tpu7x:2x2x1
jax: 0.10.0
libtpu: 0.0.40
codegen_flags: <defaults>
</compile_context>

<pallas_src>
import math

import jax
import jax.numpy as jnp
import numpy as np
from jax.experimental import pallas as pl
from jax.experimental.pallas import tpu as pltpu

# ----------------------------- config ---------------------------------------
B, T, S = 2, 8, 8            # batch, target seq len, source seq len
H, NH, FF = 32, 4, 64        # hidden_size, num_heads, ff_dim
HD = H // NH                 # attention_head_size
G = NH * B                   # number of (head, batch) attention problems
LN_EPS = 1e-5                # config.LN_eps
LN_POS = False               # config.ln_pos (False -> pre-LayerNorm)
INIT_STD = 0.02              # config.initializer_range
# config.act_fn == 'gelu'
# TODO(synk): dropout omitted (eval-mode identity); training would need
# pltpu.prng_seed / prng_random_bits masking.


# --------------------------- in-kernel helpers -------------------------------
def _gelu(x):
    # exact semantics of the reference: x * 0.5 * (1 + erf(x / 1.41421))
    return x * 0.5 * (1.0 + jax.scipy.special.erf(x / 1.41421))


def _layernorm(x, gamma, beta):
    mu = jnp.mean(x, axis=-1, keepdims=True)
    var = jnp.mean((x - mu) ** 2, axis=-1, keepdims=True)
    return (x - mu) * jax.lax.rsqrt(var + LN_EPS) * gamma + beta


def _to_heads_packed(x2d, n_pack, rows):
    """[B*rows, n_pack*H] -> [n_pack, NH*B, rows, HD] (head-major batch idx h*B+b).

    Only uses a 2-D transpose, reshapes with unchanged minor dim, and a
    last-two-dims swap -- all cheap / reliably lowered Mosaic relayouts.
    """
    xt = x2d.T                                     # [n_pack*H, B*rows]
    xt = xt.reshape(n_pack, NH, HD, B * rows)      # (c, h, d, b*rows+r)
    xt = jnp.swapaxes(xt, 2, 3)                    # (c, h, b*rows+r, d)
    return xt.reshape(n_pack, NH * B, rows, HD)    # (c, h*B+b, r, d)


def _to_heads(x2d, rows):
    return _to_heads_packed(x2d, 1, rows)[0]


def _from_heads(ctx):
    """[NH*B, T, HD] -> [B*T, H] (heads merged back onto the feature axis)."""
    c = ctx.reshape(NH, B * T, HD)                 # (h, b*T+t, d)
    c = jnp.swapaxes(c, 1, 2)                      # (h, d, b*T+t)
    return c.reshape(H, B * T).T                   # [B*T, H]


def _bhead_mask(mask, rows):
    """[B, T, rows] additive mask -> [NH*B, T, rows] (broadcast over heads)."""
    return jnp.broadcast_to(mask[None], (NH, B, T, rows)).reshape(NH * B, T, rows)


def _attn_core(qh, kh, vh, mask_h):
    """Batched multi-head attention core.

    qh: [G, T, HD], kh/vh: [G, rows, HD], mask_h: [G, T, rows] -> [B*T, H]
    """
    s = jnp.einsum('gqd,gkd->gqk', qh, kh,
                   preferred_element_type=jnp.float32) * (1.0 / math.sqrt(HD))
    s = s + mask_h
    s = s - jnp.max(s, axis=-1, keepdims=True)
    p = jnp.exp(s)
    p = p * pl.reciprocal(jnp.sum(p, axis=-1, keepdims=True), approx=True)
    ctx = jnp.einsum('gqk,gkd->gqd', p, vh, preferred_element_type=jnp.float32)
    return _from_heads(ctx)


# ------------------------------ the kernel -----------------------------------
def decoder_layer_kernel(trg_ref, src_ref, tmask_ref, smask_ref,
                         m_wqkv_ref, m_bqkv_ref, m_wfc_ref, m_bfc_ref,
                         s_wq_ref, s_bq_ref, s_wkv_ref, s_bkv_ref,
                         s_wfc_ref, s_bfc_ref,
                         w1_ref, b1_ref, w2_ref, b2_ref,
                         lng_ref, lnb_ref,
                         out_ref):
    trg = trg_ref[...].reshape(B * T, H)           # whole batch, flattened rows
    src = src_ref[...].reshape(B * S, H)
    tmask_h = _bhead_mask(tmask_ref[...], T)       # [G, T, T]
    smask_h = _bhead_mask(smask_ref[...], S)       # [G, T, S]

    # ---- masked self-attention block ----
    h = trg
    x = trg if LN_POS else _layernorm(trg, lng_ref[0:1], lnb_ref[0:1])
    qkv = jnp.dot(x, m_wqkv_ref[...],
                  preferred_element_type=jnp.float32) + m_bqkv_ref[...]   # [B*T, 3H]
    qkv_h = _to_heads_packed(qkv, 3, T)            # [3, G, T, HD]
    ctx = _attn_core(qkv_h[0], qkv_h[1], qkv_h[2], tmask_h)
    x = jnp.dot(ctx, m_wfc_ref[...],
                preferred_element_type=jnp.float32) + m_bfc_ref[...]
    trg = h + x
    if LN_POS:
        trg = _layernorm(trg, lng_ref[0:1], lnb_ref[0:1])

    # ---- cross-attention block (q from trg, k/v from raw src) ----
    h = trg
    x = trg if LN_POS else _layernorm(trg, lng_ref[1:2], lnb_ref[1:2])
    q = jnp.dot(x, s_wq_ref[...],
                preferred_element_type=jnp.float32) + s_bq_ref[...]       # [B*T, H]
    kv = jnp.dot(src, s_wkv_ref[...],
                 preferred_element_type=jnp.float32) + s_bkv_ref[...]     # [B*S, 2H]
    kv_h = _to_heads_packed(kv, 2, S)              # [2, G, S, HD]
    ctx = _attn_core(_to_heads(q, T), kv_h[0], kv_h[1], smask_h)
    x = jnp.dot(ctx, s_wfc_ref[...],
                preferred_element_type=jnp.float32) + s_bfc_ref[...]
    trg = h + x
    if LN_POS:
        trg = _layernorm(trg, lng_ref[1:2], lnb_ref[1:2])

    # ---- position-wise feed-forward block ----
    h = trg
    x = trg if LN_POS else _layernorm(trg, lng_ref[2:3], lnb_ref[2:3])
    x = _gelu(jnp.dot(x, w1_ref[...],
                      preferred_element_type=jnp.float32) + b1_ref[...])
    x = jnp.dot(x, w2_ref[...],
                preferred_element_type=jnp.float32) + b2_ref[...]
    trg = h + x
    if LN_POS:
        trg = _layernorm(trg, lng_ref[2:3], lnb_ref[2:3])

    out_ref[...] = trg.reshape(B, T, H).astype(out_ref.dtype)


# ------------------------------ wrapper --------------------------------------
def _full_spec(shape):
    n = len(shape)
    return pl.BlockSpec(shape, lambda i: (0,) * n)


@jax.jit
def decoder_layer(trg, src, trg_mask, src_mask, params):
    mw, mb, sw, sb, w1, b1, w2, b2, lng, lnb = params

    # Wrapper-side weight repacking (pure layout plumbing, no compute hoisted):
    m_wqkv = jnp.concatenate([mw[0], mw[1], mw[2]], axis=1)         # [H, 3H]
    m_bqkv = jnp.concatenate([mb[0], mb[1], mb[2]], axis=0)[None]   # [1, 3H]
    m_wfc, m_bfc = mw[3], mb[3][None]                               # [H,H], [1,H]
    s_wq, s_bq = sw[0], sb[0][None]                                 # [H,H], [1,H]
    s_wkv = jnp.concatenate([sw[1], sw[2]], axis=1)                 # [H, 2H]
    s_bkv = jnp.concatenate([sb[1], sb[2]], axis=0)[None]           # [1, 2H]
    s_wfc, s_bfc = sw[3], sb[3][None]                               # [H,H], [1,H]

    inputs = (trg, src, trg_mask, src_mask,
              m_wqkv, m_bqkv, m_wfc, m_bfc,
              s_wq, s_bq, s_wkv, s_bkv, s_wfc, s_bfc,
              w1, b1, w2, b2, lng, lnb)

    # Single grid step: the whole problem (<100 KiB) lives in VMEM at once.
    return pl.pallas_call(
        decoder_layer_kernel,
        out_shape=jax.ShapeDtypeStruct((B, T, H), jnp.float32),
        grid=(1,),
        in_specs=[_full_spec(x.shape) for x in inputs],
        out_specs=_full_spec((B, T, H)),
        compiler_params=pltpu.CompilerParams(dimension_semantics=("arbitrary",)),
    )(*inputs)


# --------------------------- pure-JAX reference -------------------------------
def _ref_attention(xq, xkv, mask, W, bv):
    q = xq @ W[0] + bv[0]
    k = xkv @ W[1] + bv[1]
    v = xkv @ W[2] + bv[2]

    def split(x):
        bb, ll, _ = x.shape
        return x.reshape(bb, ll, NH, HD).transpose(0, 2, 1, 3)

    qh, kh, vh = split(q), split(k), split(v)
    scores = jnp.einsum('bhqd,bhkd->bhqk', qh, kh) / math.sqrt(HD)
    scores = scores + mask[:, None]
    p = jax.nn.softmax(scores, axis=-1)
    ctx = jnp.einsum('bhqk,bhkd->bhqd', p, vh)
    ctx = ctx.transpose(0, 2, 1, 3).reshape(xq.shape[0], xq.shape[1], H)
    return ctx @ W[3] + bv[3]


def _ref_ln(x, g, b):
    mu = jnp.mean(x, axis=-1, keepdims=True)
    var = jnp.mean((x - mu) ** 2, axis=-1, keepdims=True)
    return (x - mu) / jnp.sqrt(var + LN_EPS) * g + b


def reference_decoder_layer(trg, src, tmask, smask, params):
    mw, mb, sw, sb, w1, b1, w2, b2, lng, lnb = params

    h = trg
    x = trg if LN_POS else _ref_ln(trg, lng[0], lnb[0])
    x = _ref_attention(x, x, tmask, mw, mb)
    trg = h + x
    if LN_POS:
        trg = _ref_ln(trg, lng[0], lnb[0])

    h = trg
    x = trg if LN_POS else _ref_ln(trg, lng[1], lnb[1])
    x = _ref_attention(x, src, smask, sw, sb)
    trg = h + x
    if LN_POS:
        trg = _ref_ln(trg, lng[1], lnb[1])

    h = trg
    x = trg if LN_POS else _ref_ln(trg, lng[2], lnb[2])
    x = x @ w1 + b1[0]
    x = x * 0.5 * (1.0 + jax.scipy.special.erf(x / 1.41421))
    x = x @ w2 + b2[0]
    trg = h + x
    if LN_POS:
        trg = _ref_ln(trg, lng[2], lnb[2])
    return trg


# ------------------------------- main ----------------------------------------
if __name__ == "__main__":
    key = jax.random.PRNGKey(0)
    keys = jax.random.split(key, 8)

    # Parameters (Linear: normal(std=0.02), bias=0; LayerNorm: gamma=1, beta=0).
    mw = jax.random.normal(keys[0], (4, H, H), jnp.float32) * INIT_STD
    mb = jnp.zeros((4, H), jnp.float32)
    sw = jax.random.normal(keys[1], (4, H, H), jnp.float32) * INIT_STD
    sb = jnp.zeros((4, H), jnp.float32)
    w1 = jax.random.normal(keys[2], (H, FF), jnp.float32) * INIT_STD
    b1 = jnp.zeros((1, FF), jnp.float32)
    w2 = jax.random.normal(keys[3], (FF, H), jnp.float32) * INIT_STD
    b2 = jnp.zeros((1, H), jnp.float32)
    lng = jnp.ones((3, H), jnp.float32)
    lnb = jnp.zeros((3, H), jnp.float32)
    params = (mw, mb, sw, sb, w1, b1, w2, b2, lng, lnb)

    # Inputs.
    trg = jax.random.normal(keys[4], (B, T, H), jnp.float32)
    src = jax.random.normal(keys[5], (B, S, H), jnp.float32)

    # Causal additive mask for masked self-attention.
    causal = jnp.where(jnp.tril(jnp.ones((T, T), jnp.bool_)), 0.0, -1e9)
    trg_mask = jnp.broadcast_to(causal, (B, T, T)).astype(jnp.float32)
    # Source (padding-style) mask: mask out the last source position of batch 1.
    src_mask = np.zeros((B, T, S), np.float32)
    src_mask[1, :, -1] = -1e9
    src_mask = jnp.asarray(src_mask)

    out = decoder_layer(trg, src, trg_mask, src_mask, params)
    out = jax.block_until_ready(out)

    ref = reference_decoder_layer(trg, src, trg_mask, src_mask, params)
    # Tolerance relaxed (2e-3) because the kernel normalizes softmax with the
    # EUP approximate reciprocal (pl.reciprocal(approx=True)).
    np.testing.assert_allclose(np.asarray(out), np.asarray(ref),
                               rtol=2e-3, atol=2e-3)

    print("KERNEL_OK")
</pallas_src>

<mosaic_0001>
module attributes {stable_mosaic.version = 11 : i64} {
  func.func @decoder_layer_kernel(%arg0: i32, %arg1: memref<2x8x32xf32, #tpu.memory_space<vmem>>, %arg2: memref<2x8x32xf32, #tpu.memory_space<vmem>>, %arg3: memref<2x8x8xf32, #tpu.memory_space<vmem>>, %arg4: memref<2x8x8xf32, #tpu.memory_space<vmem>>, %arg5: memref<32x96xf32, #tpu.memory_space<vmem>>, %arg6: memref<1x96xf32, #tpu.memory_space<vmem>>, %arg7: memref<32x32xf32, #tpu.memory_space<vmem>>, %arg8: memref<1x32xf32, #tpu.memory_space<vmem>>, %arg9: memref<32x32xf32, #tpu.memory_space<vmem>>, %arg10: memref<1x32xf32, #tpu.memory_space<vmem>>, %arg11: memref<32x64xf32, #tpu.memory_space<vmem>>, %arg12: memref<1x64xf32, #tpu.memory_space<vmem>>, %arg13: memref<32x32xf32, #tpu.memory_space<vmem>>, %arg14: memref<1x32xf32, #tpu.memory_space<vmem>>, %arg15: memref<32x64xf32, #tpu.memory_space<vmem>>, %arg16: memref<1x64xf32, #tpu.memory_space<vmem>>, %arg17: memref<64x32xf32, #tpu.memory_space<vmem>>, %arg18: memref<1x32xf32, #tpu.memory_space<vmem>>, %arg19: memref<3x32xf32, #tpu.memory_space<vmem>>, %arg20: memref<3x32xf32, #tpu.memory_space<vmem>>, %arg21: memref<2x8x32xf32, #tpu.memory_space<vmem>>) attributes {dimension_semantics = [#tpu.dimension_semantics<arbitrary>], iteration_bounds = array<i64: 1>, scalar_prefetch = 0 : i64, scratch_operands = 0 : i64, tpu.core_type = #tpu.core_type<tc>, window_params = [{pipeline_mode = #tpu.pipeline_mode<synchronous>, transform_indices = @transform_0, window_bounds = array<i64: 2, 8, 32>}, {pipeline_mode = #tpu.pipeline_mode<synchronous>, transform_indices = @transform_1, window_bounds = array<i64: 2, 8, 32>}, {pipeline_mode = #tpu.pipeline_mode<synchronous>, transform_indices = @transform_2, window_bounds = array<i64: 2, 8, 8>}, {pipeline_mode = #tpu.pipeline_mode<synchronous>, transform_indices = @transform_3, window_bounds = array<i64: 2, 8, 8>}, {pipeline_mode = #tpu.pipeline_mode<synchronous>, transform_indices = @transform_4, window_bounds = array<i64: 32, 96>}, {pipeline_mode = #tpu.pipeline_mode<synchronous>, transform_indices = @transform_5, window_bounds = array<i64: 1, 96>}, {pipeline_mode = #tpu.pipeline_mode<synchronous>, transform_indices = @transform_6, window_bounds = array<i64: 32, 32>}, {pipeline_mode = #tpu.pipeline_mode<synchronous>, transform_indices = @transform_7, window_bounds = array<i64: 1, 32>}, {pipeline_mode = #tpu.pipeline_mode<synchronous>, transform_indices = @transform_8, window_bounds = array<i64: 32, 32>}, {pipeline_mode = #tpu.pipeline_mode<synchronous>, transform_indices = @transform_9, window_bounds = array<i64: 1, 32>}, {pipeline_mode = #tpu.pipeline_mode<synchronous>, transform_indices = @transform_10, window_bounds = array<i64: 32, 64>}, {pipeline_mode = #tpu.pipeline_mode<synchronous>, transform_indices = @transform_11, window_bounds = array<i64: 1, 64>}, {pipeline_mode = #tpu.pipeline_mode<synchronous>, transform_indices = @transform_12, window_bounds = array<i64: 32, 32>}, {pipeline_mode = #tpu.pipeline_mode<synchronous>, transform_indices = @transform_13, window_bounds = array<i64: 1, 32>}, {pipeline_mode = #tpu.pipeline_mode<synchronous>, transform_indices = @transform_14, window_bounds = array<i64: 32, 64>}, {pipeline_mode = #tpu.pipeline_mode<synchronous>, transform_indices = @transform_15, window_bounds = array<i64: 1, 64>}, {pipeline_mode = #tpu.pipeline_mode<synchronous>, transform_indices = @transform_16, window_bounds = array<i64: 64, 32>}, {pipeline_mode = #tpu.pipeline_mode<synchronous>, transform_indices = @transform_17, window_bounds = array<i64: 1, 32>}, {pipeline_mode = #tpu.pipeline_mode<synchronous>, transform_indices = @transform_18, window_bounds = array<i64: 3, 32>}, {pipeline_mode = #tpu.pipeline_mode<synchronous>, transform_indices = @transform_19, window_bounds = array<i64: 3, 32>}, {pipeline_mode = #tpu.pipeline_mode<synchronous>, transform_indices = @transform_20, window_bounds = array<i64: 2, 8, 32>}]} {
    %c0 = arith.constant 0 : index
    %c0_0 = arith.constant 0 : index
    %c0_1 = arith.constant 0 : index
    %0 = vector.load %arg1[%c0, %c0_0, %c0_1] : memref<2x8x32xf32, #tpu.memory_space<vmem>>, vector<2x8x32xf32>
    %1 = vector.shape_cast %0 : vector<2x8x32xf32> to vector<16x32xf32>
    %c0_2 = arith.constant 0 : index
    %c0_3 = arith.constant 0 : index
    %c0_4 = arith.constant 0 : index
    %2 = vector.load %arg2[%c0_2, %c0_3, %c0_4] : memref<2x8x32xf32, #tpu.memory_space<vmem>>, vector<2x8x32xf32>
    %3 = vector.shape_cast %2 : vector<2x8x32xf32> to vector<16x32xf32>
    %c0_5 = arith.constant 0 : index
    %c0_6 = arith.constant 0 : index
    %c0_7 = arith.constant 0 : index
    %4 = vector.load %arg3[%c0_5, %c0_6, %c0_7] : memref<2x8x8xf32, #tpu.memory_space<vmem>>, vector<2x8x8xf32>
    %5 = vector.shape_cast %4 : vector<2x8x8xf32> to vector<1x2x8x8xf32>
    %6 = vector.shape_cast %5 : vector<1x2x8x8xf32> to vector<1x2x8x8xf32>
    %7 = vector.broadcast %6 : vector<1x2x8x8xf32> to vector<4x2x8x8xf32>
    %8 = vector.shape_cast %7 : vector<4x2x8x8xf32> to vector<8x8x8xf32>
    %c0_8 = arith.constant 0 : index
    %c0_9 = arith.constant 0 : index
    %c0_10 = arith.constant 0 : index
    %9 = vector.load %arg4[%c0_8, %c0_9, %c0_10] : memref<2x8x8xf32, #tpu.memory_space<vmem>>, vector<2x8x8xf32>
    %10 = vector.shape_cast %9 : vector<2x8x8xf32> to vector<1x2x8x8xf32>
    %11 = vector.shape_cast %10 : vector<1x2x8x8xf32> to vector<1x2x8x8xf32>
    %12 = vector.broadcast %11 : vector<1x2x8x8xf32> to vector<4x2x8x8xf32>
    %13 = vector.shape_cast %12 : vector<4x2x8x8xf32> to vector<8x8x8xf32>
    %c0_11 = arith.constant 0 : index
    %c0_12 = arith.constant 0 : index
    %14 = vector.load %arg19[%c0_11, %c0_12] : memref<3x32xf32, #tpu.memory_space<vmem>>, vector<1x32xf32>
    %c0_13 = arith.constant 0 : index
    %c0_14 = arith.constant 0 : index
    %15 = vector.load %arg20[%c0_13, %c0_14] : memref<3x32xf32, #tpu.memory_space<vmem>>, vector<1x32xf32>
    %cst = arith.constant dense<0.000000e+00> : vector<16xf32>
    %16 = vector.multi_reduction <add>, %1, %cst [1] : vector<16x32xf32> to vector<16xf32>
    %17 = vector.shape_cast %16 : vector<16xf32> to vector<16x1xf32>
    %cst_15 = arith.constant 3.200000e+01 : f32
    %18 = vector.broadcast %cst_15 : f32 to vector<16x1xf32>
    %19 = arith.divf %17, %18 : vector<16x1xf32>
    %20 = vector.broadcast %19 : vector<16x1xf32> to vector<16x32xf32>
    %21 = arith.subf %1, %20 : vector<16x32xf32>
    %22 = arith.mulf %21, %21 : vector<16x32xf32>
    %cst_16 = arith.constant dense<0.000000e+00> : vector<16xf32>
    %23 = vector.multi_reduction <add>, %22, %cst_16 [1] : vector<16x32xf32> to vector<16xf32>
    %24 = vector.shape_cast %23 : vector<16xf32> to vector<16x1xf32>
    %cst_17 = arith.constant 3.200000e+01 : f32
    %25 = vector.broadcast %cst_17 : f32 to vector<16x1xf32>
    %26 = arith.divf %24, %25 : vector<16x1xf32>
    %27 = vector.broadcast %19 : vector<16x1xf32> to vector<16x32xf32>
    %28 = arith.subf %1, %27 : vector<16x32xf32>
    %cst_18 = arith.constant 9.99999974E-6 : f32
    %29 = vector.broadcast %cst_18 : f32 to vector<16x1xf32>
    %30 = arith.addf %26, %29 : vector<16x1xf32>
    %31 = math.rsqrt %30 : vector<16x1xf32>
    %32 = vector.broadcast %31 : vector<16x1xf32> to vector<16x32xf32>
    %33 = arith.mulf %28, %32 : vector<16x32xf32>
    %34 = vector.broadcast %14 : vector<1x32xf32> to vector<16x32xf32>
    %35 = arith.mulf %33, %34 : vector<16x32xf32>
    %36 = vector.broadcast %15 : vector<1x32xf32> to vector<16x32xf32>
    %37 = arith.addf %35, %36 : vector<16x32xf32>
    %c0_19 = arith.constant 0 : index
    %c0_20 = arith.constant 0 : index
    %38 = vector.load %arg5[%c0_19, %c0_20] : memref<32x96xf32, #tpu.memory_space<vmem>>, vector<32x96xf32>
    %cst_21 = arith.constant dense<0.000000e+00> : vector<16x96xf32>
    %39 = tpu.matmul %37, %38, %cst_21 {dimension_numbers = #tpu.dot_dimension_numbers<[1], [0], [0], [1], [0, 0, 1, 1], [], []>} : vector<16x32xf32>, vector<32x96xf32>, vector<16x96xf32> -> vector<16x96xf32>
    %c0_22 = arith.constant 0 : index
    %c0_23 = arith.constant 0 : index
    %40 = vector.load %arg6[%c0_22, %c0_23] : memref<1x96xf32, #tpu.memory_space<vmem>>, vector<1x96xf32>
    %41 = vector.broadcast %40 : vector<1x96xf32> to vector<16x96xf32>
    %42 = arith.addf %39, %41 : vector<16x96xf32>
    %43 = tpu.transpose %42, [1, 0] : vector<16x96xf32> -> vector<96x16xf32>
    %44 = vector.shape_cast %43 : vector<96x16xf32> to vector<3x4x8x16xf32>
    %45 = tpu.transpose %44, [0, 1, 3, 2] : vector<3x4x8x16xf32> -> vector<3x4x16x8xf32>
    %46 = vector.shape_cast %45 : vector<3x4x16x8xf32> to vector<3x8x8x8xf32>
    %47 = vector.extract_strided_slice %46 {offsets = [0, 0, 0, 0], sizes = [1, 8, 8, 8], strides = [1, 1, 1, 1]} : vector<3x8x8x8xf32> to vector<1x8x8x8xf32>
    %48 = vector.shape_cast %47 : vector<1x8x8x8xf32> to vector<8x8x8xf32>
    %49 = vector.extract_strided_slice %46 {offsets = [1, 0, 0, 0], sizes = [1, 8, 8, 8], strides = [1, 1, 1, 1]} : vector<3x8x8x8xf32> to vector<1x8x8x8xf32>
    %50 = vector.shape_cast %49 : vector<1x8x8x8xf32> to vector<8x8x8xf32>
    %51 = vector.extract_strided_slice %46 {offsets = [2, 0, 0, 0], sizes = [1, 8, 8, 8], strides = [1, 1, 1, 1]} : vector<3x8x8x8xf32> to vector<1x8x8x8xf32>
    %52 = vector.shape_cast %51 : vector<1x8x8x8xf32> to vector<8x8x8xf32>
    "tpu.trace_start"() <{level = 10 : i32, message = "gqd,gkd->gqk"}> : () -> ()
    %cst_24 = arith.constant dense<0.000000e+00> : vector<8x8x8xf32>
    %53 = tpu.matmul %48, %50, %cst_24 {dimension_numbers = #tpu.dot_dimension_numbers<[2], [2], [1], [1], [0, 0, 0, 1, 1, 1], [0], [0]>} : vector<8x8x8xf32>, vector<8x8x8xf32>, vector<8x8x8xf32> -> vector<8x8x8xf32>
    "tpu.trace_stop"() : () -> ()
    %cst_25 = arith.constant 0.353553385 : f32
    %54 = vector.broadcast %cst_25 : f32 to vector<8x8x8xf32>
    %55 = arith.mulf %53, %54 : vector<8x8x8xf32>
    %56 = arith.addf %55, %8 : vector<8x8x8xf32>
    %cst_26 = arith.constant dense<0xFF800000> : vector<8x8xf32>
    %57 = vector.multi_reduction <maximumf>, %56, %cst_26 [2] : vector<8x8x8xf32> to vector<8x8xf32>
    %58 = vector.shape_cast %57 : vector<8x8xf32> to vector<8x8x1xf32>
    %59 = vector.broadcast %58 : vector<8x8x1xf32> to vector<8x8x8xf32>
    %60 = arith.subf %56, %59 : vector<8x8x8xf32>
    %61 = math.exp %60 : vector<8x8x8xf32>
    %cst_27 = arith.constant dense<0.000000e+00> : vector<8x8xf32>
    %62 = vector.multi_reduction <add>, %61, %cst_27 [2] : vector<8x8x8xf32> to vector<8x8xf32>
    %63 = vector.shape_cast %62 : vector<8x8xf32> to vector<8x8x1xf32>
    %64 = tpu.reciprocal %63 {approx = true} : vector<8x8x1xf32> -> vector<8x8x1xf32>
    %65 = vector.broadcast %64 : vector<8x8x1xf32> to vector<8x8x8xf32>
    %66 = arith.mulf %61, %65 : vector<8x8x8xf32>
    "tpu.trace_start"() <{level = 10 : i32, message = "gqk,gkd->gqd"}> : () -> ()
    %cst_28 = arith.constant dense<0.000000e+00> : vector<8x8x8xf32>
    %67 = tpu.matmul %66, %52, %cst_28 {dimension_numbers = #tpu.dot_dimension_numbers<[2], [1], [1], [2], [0, 0, 0, 1, 1, 2], [0], [0]>} : vector<8x8x8xf32>, vector<8x8x8xf32>, vector<8x8x8xf32> -> vector<8x8x8xf32>
    "tpu.trace_stop"() : () -> ()
    %68 = vector.shape_cast %67 : vector<8x8x8xf32> to vector<4x16x8xf32>
    %69 = tpu.transpose %68, [0, 2, 1] : vector<4x16x8xf32> -> vector<4x8x16xf32>
    %70 = vector.shape_cast %69 : vector<4x8x16xf32> to vector<32x16xf32>
    %71 = tpu.transpose %70, [1, 0] : vector<32x16xf32> -> vector<16x32xf32>
    %c0_29 = arith.constant 0 : index
    %c0_30 = arith.constant 0 : index
    %72 = vector.load %arg7[%c0_29, %c0_30] : memref<32x32xf32, #tpu.memory_space<vmem>>, vector<32x32xf32>
    %cst_31 = arith.constant dense<0.000000e+00> : vector<16x32xf32>
    %73 = tpu.matmul %71, %72, %cst_31 {dimension_numbers = #tpu.dot_dimension_numbers<[1], [0], [0], [1], [0, 0, 1, 1], [], []>} : vector<16x32xf32>, vector<32x32xf32>, vector<16x32xf32> -> vector<16x32xf32>
    %c0_32 = arith.constant 0 : index
    %c0_33 = arith.constant 0 : index
    %74 = vector.load %arg8[%c0_32, %c0_33] : memref<1x32xf32, #tpu.memory_space<vmem>>, vector<1x32xf32>
    %75 = vector.broadcast %74 : vector<1x32xf32> to vector<16x32xf32>
    %76 = arith.addf %73, %75 : vector<16x32xf32>
    %77 = arith.addf %1, %76 : vector<16x32xf32>
    %c1 = arith.constant 1 : index
    %c0_34 = arith.constant 0 : index
    %78 = vector.load %arg19[%c1, %c0_34] : memref<3x32xf32, #tpu.memory_space<vmem>>, vector<1x32xf32>
    %c1_35 = arith.constant 1 : index
    %c0_36 = arith.constant 0 : index
    %79 = vector.load %arg20[%c1_35, %c0_36] : memref<3x32xf32, #tpu.memory_space<vmem>>, vector<1x32xf32>
    %cst_37 = arith.constant dense<0.000000e+00> : vector<16xf32>
    %80 = vector.multi_reduction <add>, %77, %cst_37 [1] : vector<16x32xf32> to vector<16xf32>
    %81 = vector.shape_cast %80 : vector<16xf32> to vector<16x1xf32>
    %cst_38 = arith.constant 3.200000e+01 : f32
    %82 = vector.broadcast %cst_38 : f32 to vector<16x1xf32>
    %83 = arith.divf %81, %82 : vector<16x1xf32>
    %84 = vector.broadcast %83 : vector<16x1xf32> to vector<16x32xf32>
    %85 = arith.subf %77, %84 : vector<16x32xf32>
    %86 = arith.mulf %85, %85 : vector<16x32xf32>
    %cst_39 = arith.constant dense<0.000000e+00> : vector<16xf32>
    %87 = vector.multi_reduction <add>, %86, %cst_39 [1] : vector<16x32xf32> to vector<16xf32>
    %88 = vector.shape_cast %87 : vector<16xf32> to vector<16x1xf32>
    %cst_40 = arith.constant 3.200000e+01 : f32
    %89 = vector.broadcast %cst_40 : f32 to vector<16x1xf32>
    %90 = arith.divf %88, %89 : vector<16x1xf32>
    %91 = vector.broadcast %83 : vector<16x1xf32> to vector<16x32xf32>
    %92 = arith.subf %77, %91 : vector<16x32xf32>
    %cst_41 = arith.constant 9.99999974E-6 : f32
    %93 = vector.broadcast %cst_41 : f32 to vector<16x1xf32>
    %94 = arith.addf %90, %93 : vector<16x1xf32>
    %95 = math.rsqrt %94 : vector<16x1xf32>
    %96 = vector.broadcast %95 : vector<16x1xf32> to vector<16x32xf32>
    %97 = arith.mulf %92, %96 : vector<16x32xf32>
    %98 = vector.broadcast %78 : vector<1x32xf32> to vector<16x32xf32>
    %99 = arith.mulf %97, %98 : vector<16x32xf32>
    %100 = vector.broadcast %79 : vector<1x32xf32> to vector<16x32xf32>
    %101 = arith.addf %99, %100 : vector<16x32xf32>
    %c0_42 = arith.constant 0 : index
    %c0_43 = arith.constant 0 : index
    %102 = vector.load %arg9[%c0_42, %c0_43] : memref<32x32xf32, #tpu.memory_space<vmem>>, vector<32x32xf32>
    %cst_44 = arith.constant dense<0.000000e+00> : vector<16x32xf32>
    %103 = tpu.matmul %101, %102, %cst_44 {dimension_numbers = #tpu.dot_dimension_numbers<[1], [0], [0], [1], [0, 0, 1, 1], [], []>} : vector<16x32xf32>, vector<32x32xf32>, vector<16x32xf32> -> vector<16x32xf32>
    %c0_45 = arith.constant 0 : index
    %c0_46 = arith.constant 0 : index
    %104 = vector.load %arg10[%c0_45, %c0_46] : memref<1x32xf32, #tpu.memory_space<vmem>>, vector<1x32xf32>
    %105 = vector.broadcast %104 : vector<1x32xf32> to vector<16x32xf32>
    %106 = arith.addf %103, %105 : vector<16x32xf32>
    %c0_47 = arith.constant 0 : index
    %c0_48 = arith.constant 0 : index
    %107 = vector.load %arg11[%c0_47, %c0_48] : memref<32x64xf32, #tpu.memory_space<vmem>>, vector<32x64xf32>
    %cst_49 = arith.constant dense<0.000000e+00> : vector<16x64xf32>
    %108 = tpu.matmul %3, %107, %cst_49 {dimension_numbers = #tpu.dot_dimension_numbers<[1], [0], [0], [1], [0, 0, 1, 1], [], []>} : vector<16x32xf32>, vector<32x64xf32>, vector<16x64xf32> -> vector<16x64xf32>
    %c0_50 = arith.constant 0 : index
    %c0_51 = arith.constant 0 : index
    %109 = vector.load %arg12[%c0_50, %c0_51] : memref<1x64xf32, #tpu.memory_space<vmem>>, vector<1x64xf32>
    %110 = vector.broadcast %109 : vector<1x64xf32> to vector<16x64xf32>
    %111 = arith.addf %108, %110 : vector<16x64xf32>
    %112 = tpu.transpose %111, [1, 0] : vector<16x64xf32> -> vector<64x16xf32>
    %113 = vector.shape_cast %112 : vector<64x16xf32> to vector<2x4x8x16xf32>
    %114 = tpu.transpose %113, [0, 1, 3, 2] : vector<2x4x8x16xf32> -> vector<2x4x16x8xf32>
    %115 = vector.shape_cast %114 : vector<2x4x16x8xf32> to vector<2x8x8x8xf32>
    %116 = tpu.transpose %106, [1, 0] : vector<16x32xf32> -> vector<32x16xf32>
    %117 = vector.shape_cast %116 : vector<32x16xf32> to vector<1x4x8x16xf32>
    %118 = tpu.transpose %117, [0, 1, 3, 2] : vector<1x4x8x16xf32> -> vector<1x4x16x8xf32>
    %119 = vector.shape_cast %118 : vector<1x4x16x8xf32> to vector<1x8x8x8xf32>
    %120 = vector.shape_cast %119 : vector<1x8x8x8xf32> to vector<8x8x8xf32>
    %121 = vector.extract_strided_slice %115 {offsets = [0, 0, 0, 0], sizes = [1, 8, 8, 8], strides = [1, 1, 1, 1]} : vector<2x8x8x8xf32> to vector<1x8x8x8xf32>
    %122 = vector.shape_cast %121 : vector<1x8x8x8xf32> to vector<8x8x8xf32>
    %123 = vector.extract_strided_slice %115 {offsets = [1, 0, 0, 0], sizes = [1, 8, 8, 8], strides = [1, 1, 1, 1]} : vector<2x8x8x8xf32> to vector<1x8x8x8xf32>
    %124 = vector.shape_cast %123 : vector<1x8x8x8xf32> to vector<8x8x8xf32>
    "tpu.trace_start"() <{level = 10 : i32, message = "gqd,gkd->gqk"}> : () -> ()
    %cst_52 = arith.constant dense<0.000000e+00> : vector<8x8x8xf32>
    %125 = tpu.matmul %120, %122, %cst_52 {dimension_numbers = #tpu.dot_dimension_numbers<[2], [2], [1], [1], [0, 0, 0, 1, 1, 1], [0], [0]>} : vector<8x8x8xf32>, vector<8x8x8xf32>, vector<8x8x8xf32> -> vector<8x8x8xf32>
    "tpu.trace_stop"() : () -> ()
    %cst_53 = arith.constant 0.353553385 : f32
    %126 = vector.broadcast %cst_53 : f32 to vector<8x8x8xf32>
    %127 = arith.mulf %125, %126 : vector<8x8x8xf32>
    %128 = arith.addf %127, %13 : vector<8x8x8xf32>
    %cst_54 = arith.constant dense<0xFF800000> : vector<8x8xf32>
    %129 = vector.multi_reduction <maximumf>, %128, %cst_54 [2] : vector<8x8x8xf32> to vector<8x8xf32>
    %130 = vector.shape_cast %129 : vector<8x8xf32> to vector<8x8x1xf32>
    %131 = vector.broadcast %130 : vector<8x8x1xf32> to vector<8x8x8xf32>
    %132 = arith.subf %128, %131 : vector<8x8x8xf32>
    %133 = math.exp %132 : vector<8x8x8xf32>
    %cst_55 = arith.constant dense<0.000000e+00> : vector<8x8xf32>
    %134 = vector.multi_reduction <add>, %133, %cst_55 [2] : vector<8x8x8xf32> to vector<8x8xf32>
    %135 = vector.shape_cast %134 : vector<8x8xf32> to vector<8x8x1xf32>
    %136 = tpu.reciprocal %135 {approx = true} : vector<8x8x1xf32> -> vector<8x8x1xf32>
    %137 = vector.broadcast %136 : vector<8x8x1xf32> to vector<8x8x8xf32>
    %138 = arith.mulf %133, %137 : vector<8x8x8xf32>
    "tpu.trace_start"() <{level = 10 : i32, message = "gqk,gkd->gqd"}> : () -> ()
    %cst_56 = arith.constant dense<0.000000e+00> : vector<8x8x8xf32>
    %139 = tpu.matmul %138, %124, %cst_56 {dimension_numbers = #tpu.dot_dimension_numbers<[2], [1], [1], [2], [0, 0, 0, 1, 1, 2], [0], [0]>} : vector<8x8x8xf32>, vector<8x8x8xf32>, vector<8x8x8xf32> -> vector<8x8x8xf32>
    "tpu.trace_stop"() : () -> ()
    %140 = vector.shape_cast %139 : vector<8x8x8xf32> to vector<4x16x8xf32>
    %141 = tpu.transpose %140, [0, 2, 1] : vector<4x16x8xf32> -> vector<4x8x16xf32>
    %142 = vector.shape_cast %141 : vector<4x8x16xf32> to vector<32x16xf32>
    %143 = tpu.transpose %142, [1, 0] : vector<32x16xf32> -> vector<16x32xf32>
    %c0_57 = arith.constant 0 : index
    %c0_58 = arith.constant 0 : index
    %144 = vector.load %arg13[%c0_57, %c0_58] : memref<32x32xf32, #tpu.memory_space<vmem>>, vector<32x32xf32>
    %cst_59 = arith.constant dense<0.000000e+00> : vector<16x32xf32>
    %145 = tpu.matmul %143, %144, %cst_59 {dimension_numbers = #tpu.dot_dimension_numbers<[1], [0], [0], [1], [0, 0, 1, 1], [], []>} : vector<16x32xf32>, vector<32x32xf32>, vector<16x32xf32> -> vector<16x32xf32>
    %c0_60 = arith.constant 0 : index
    %c0_61 = arith.constant 0 : index
    %146 = vector.load %arg14[%c0_60, %c0_61] : memref<1x32xf32, #tpu.memory_space<vmem>>, vector<1x32xf32>
    %147 = vector.broadcast %146 : vector<1x32xf32> to vector<16x32xf32>
    %148 = arith.addf %145, %147 : vector<16x32xf32>
    %149 = arith.addf %77, %148 : vector<16x32xf32>
    %c2 = arith.constant 2 : index
    %c0_62 = arith.constant 0 : index
    %150 = vector.load %arg19[%c2, %c0_62] : memref<3x32xf32, #tpu.memory_space<vmem>>, vector<1x32xf32>
    %c2_63 = arith.constant 2 : index
    %c0_64 = arith.constant 0 : index
    %151 = vector.load %arg20[%c2_63, %c0_64] : memref<3x32xf32, #tpu.memory_space<vmem>>, vector<1x32xf32>
    %cst_65 = arith.constant dense<0.000000e+00> : vector<16xf32>
    %152 = vector.multi_reduction <add>, %149, %cst_65 [1] : vector<16x32xf32> to vector<16xf32>
    %153 = vector.shape_cast %152 : vector<16xf32> to vector<16x1xf32>
    %cst_66 = arith.constant 3.200000e+01 : f32
    %154 = vector.broadcast %cst_66 : f32 to vector<16x1xf32>
    %155 = arith.divf %153, %154 : vector<16x1xf32>
    %156 = vector.broadcast %155 : vector<16x1xf32> to vector<16x32xf32>
    %157 = arith.subf %149, %156 : vector<16x32xf32>
    %158 = arith.mulf %157, %157 : vector<16x32xf32>
    %cst_67 = arith.constant dense<0.000000e+00> : vector<16xf32>
    %159 = vector.multi_reduction <add>, %158, %cst_67 [1] : vector<16x32xf32> to vector<16xf32>
    %160 = vector.shape_cast %159 : vector<16xf32> to vector<16x1xf32>
    %cst_68 = arith.constant 3.200000e+01 : f32
    %161 = vector.broadcast %cst_68 : f32 to vector<16x1xf32>
    %162 = arith.divf %160, %161 : vector<16x1xf32>
    %163 = vector.broadcast %155 : vector<16x1xf32> to vector<16x32xf32>
    %164 = arith.subf %149, %163 : vector<16x32xf32>
    %cst_69 = arith.constant 9.99999974E-6 : f32
    %165 = vector.broadcast %cst_69 : f32 to vector<16x1xf32>
    %166 = arith.addf %162, %165 : vector<16x1xf32>
    %167 = math.rsqrt %166 : vector<16x1xf32>
    %168 = vector.broadcast %167 : vector<16x1xf32> to vector<16x32xf32>
    %169 = arith.mulf %164, %168 : vector<16x32xf32>
    %170 = vector.broadcast %150 : vector<1x32xf32> to vector<16x32xf32>
    %171 = arith.mulf %169, %170 : vector<16x32xf32>
    %172 = vector.broadcast %151 : vector<1x32xf32> to vector<16x32xf32>
    %173 = arith.addf %171, %172 : vector<16x32xf32>
    %c0_70 = arith.constant 0 : index
    %c0_71 = arith.constant 0 : index
    %174 = vector.load %arg15[%c0_70, %c0_71] : memref<32x64xf32, #tpu.memory_space<vmem>>, vector<32x64xf32>
    %cst_72 = arith.constant dense<0.000000e+00> : vector<16x64xf32>
    %175 = tpu.matmul %173, %174, %cst_72 {dimension_numbers = #tpu.dot_dimension_numbers<[1], [0], [0], [1], [0, 0, 1, 1], [], []>} : vector<16x32xf32>, vector<32x64xf32>, vector<16x64xf32> -> vector<16x64xf32>
    %c0_73 = arith.constant 0 : index
    %c0_74 = arith.constant 0 : index
    %176 = vector.load %arg16[%c0_73, %c0_74] : memref<1x64xf32, #tpu.memory_space<vmem>>, vector<1x64xf32>
    %177 = vector.broadcast %176 : vector<1x64xf32> to vector<16x64xf32>
    %178 = arith.addf %175, %177 : vector<16x64xf32>
    %cst_75 = arith.constant 5.000000e-01 : f32
    %179 = vector.broadcast %cst_75 : f32 to vector<16x64xf32>
    %180 = arith.mulf %178, %179 : vector<16x64xf32>
    %cst_76 = arith.constant 1.414210e+00 : f32
    %181 = vector.broadcast %cst_76 : f32 to vector<16x64xf32>
    %182 = arith.divf %178, %181 : vector<16x64xf32>
    %183 = math.erf %182 : vector<16x64xf32>
    %cst_77 = arith.constant 1.000000e+00 : f32
    %184 = vector.broadcast %cst_77 : f32 to vector<16x64xf32>
    %185 = arith.addf %184, %183 : vector<16x64xf32>
    %186 = arith.mulf %180, %185 : vector<16x64xf32>
    %c0_78 = arith.constant 0 : index
    %c0_79 = arith.constant 0 : index
    %187 = vector.load %arg17[%c0_78, %c0_79] : memref<64x32xf32, #tpu.memory_space<vmem>>, vector<64x32xf32>
    %cst_80 = arith.constant dense<0.000000e+00> : vector<16x32xf32>
    %188 = tpu.matmul %186, %187, %cst_80 {dimension_numbers = #tpu.dot_dimension_numbers<[1], [0], [0], [1], [0, 0, 1, 1], [], []>} : vector<16x64xf32>, vector<64x32xf32>, vector<16x32xf32> -> vector<16x32xf32>
    %c0_81 = arith.constant 0 : index
    %c0_82 = arith.constant 0 : index
    %189 = vector.load %arg18[%c0_81, %c0_82] : memref<1x32xf32, #tpu.memory_space<vmem>>, vector<1x32xf32>
    %190 = vector.broadcast %189 : vector<1x32xf32> to vector<16x32xf32>
    %191 = arith.addf %188, %190 : vector<16x32xf32>
    %192 = arith.addf %149, %191 : vector<16x32xf32>
    %193 = vector.shape_cast %192 : vector<16x32xf32> to vector<2x8x32xf32>
    %c0_83 = arith.constant 0 : index
    %c0_84 = arith.constant 0 : index
    %c0_85 = arith.constant 0 : index
    %194 = vector.load %arg21[%c0_83, %c0_84, %c0_85] : memref<2x8x32xf32, #tpu.memory_space<vmem>>, vector<2x8x32xf32>
    tpu.vector_store %arg21[%c0_83, %c0_84, %c0_85], %193 {strides = array<i32>} : memref<2x8x32xf32, #tpu.memory_space<vmem>>, vector<2x8x32xf32>,
    return
  }
  func.func @transform_0(%arg0: i32) -> (i32, i32, i32) {
    %c0_i32 = arith.constant 0 : i32
    %c0_i32_0 = arith.constant 0 : i32
    %c0_i32_1 = arith.constant 0 : i32
    %c0_i32_2 = arith.constant 0 : i32
    return %c0_i32, %c0_i32_0, %c0_i32_1 : i32, i32, i32
  }
  func.func @transform_1(%arg0: i32) -> (i32, i32, i32) {
    %c0_i32 = arith.constant 0 : i32
    %c0_i32_0 = arith.constant 0 : i32
    %c0_i32_1 = arith.constant 0 : i32
    %c0_i32_2 = arith.constant 0 : i32
    return %c0_i32, %c0_i32_0, %c0_i32_1 : i32, i32, i32
  }
  func.func @transform_2(%arg0: i32) -> (i32, i32, i32) {
    %c0_i32 = arith.constant 0 : i32
    %c0_i32_0 = arith.constant 0 : i32
    %c0_i32_1 = arith.constant 0 : i32
    %c0_i32_2 = arith.constant 0 : i32
    return %c0_i32, %c0_i32_0, %c0_i32_1 : i32, i32, i32
  }
  func.func @transform_3(%arg0: i32) -> (i32, i32, i32) {
    %c0_i32 = arith.constant 0 : i32
    %c0_i32_0 = arith.constant 0 : i32
    %c0_i32_1 = arith.constant 0 : i32
    %c0_i32_2 = arith.constant 0 : i32
    return %c0_i32, %c0_i32_0, %c0_i32_1 : i32, i32, i32
  }
  func.func @transform_4(%arg0: i32) -> (i32, i32) {
    %c0_i32 = arith.constant 0 : i32
    %c0_i32_0 = arith.constant 0 : i32
    %c0_i32_1 = arith.constant 0 : i32
    return %c0_i32, %c0_i32_0 : i32, i32
  }
  func.func @transform_5(%arg0: i32) -> (i32, i32) {
    %c0_i32 = arith.constant 0 : i32
    %c0_i32_0 = arith.constant 0 : i32
    %c0_i32_1 = arith.constant 0 : i32
    return %c0_i32, %c0_i32_0 : i32, i32
  }
  func.func @transform_6(%arg0: i32) -> (i32, i32) {
    %c0_i32 = arith.constant 0 : i32
    %c0_i32_0 = arith.constant 0 : i32
    %c0_i32_1 = arith.constant 0 : i32
    return %c0_i32, %c0_i32_0 : i32, i32
  }
  func.func @transform_7(%arg0: i32) -> (i32, i32) {
    %c0_i32 = arith.constant 0 : i32
    %c0_i32_0 = arith.constant 0 : i32
    %c0_i32_1 = arith.constant 0 : i32
    return %c0_i32, %c0_i32_0 : i32, i32
  }
  func.func @transform_8(%arg0: i32) -> (i32, i32) {
    %c0_i32 = arith.constant 0 : i32
    %c0_i32_0 = arith.constant 0 : i32
    %c0_i32_1 = arith.constant 0 : i32
    return %c0_i32, %c0_i32_0 : i32, i32
  }
  func.func @transform_9(%arg0: i32) -> (i32, i32) {
    %c0_i32 = arith.constant 0 : i32
    %c0_i32_0 = arith.constant 0 : i32
    %c0_i32_1 = arith.constant 0 : i32
    return %c0_i32, %c0_i32_0 : i32, i32
  }
  func.func @transform_10(%arg0: i32) -> (i32, i32) {
    %c0_i32 = arith.constant 0 : i32
    %c0_i32_0 = arith.constant 0 : i32
    %c0_i32_1 = arith.constant 0 : i32
    return %c0_i32, %c0_i32_0 : i32, i32
  }
  func.func @transform_11(%arg0: i32) -> (i32, i32) {
    %c0_i32 = arith.constant 0 : i32
    %c0_i32_0 = arith.constant 0 : i32
    %c0_i32_1 = arith.constant 0 : i32
    return %c0_i32, %c0_i32_0 : i32, i32
  }
  func.func @transform_12(%arg0: i32) -> (i32, i32) {
    %c0_i32 = arith.constant 0 : i32
    %c0_i32_0 = arith.constant 0 : i32
    %c0_i32_1 = arith.constant 0 : i32
    return %c0_i32, %c0_i32_0 : i32, i32
  }
  func.func @transform_13(%arg0: i32) -> (i32, i32) {
    %c0_i32 = arith.constant 0 : i32
    %c0_i32_0 = arith.constant 0 : i32
    %c0_i32_1 = arith.constant 0 : i32
    return %c0_i32, %c0_i32_0 : i32, i32
  }
  func.func @transform_14(%arg0: i32) -> (i32, i32) {
    %c0_i32 = arith.constant 0 : i32
    %c0_i32_0 = arith.constant 0 : i32
    %c0_i32_1 = arith.constant 0 : i32
    return %c0_i32, %c0_i32_0 : i32, i32
  }
  func.func @transform_15(%arg0: i32) -> (i32, i32) {
    %c0_i32 = arith.constant 0 : i32
    %c0_i32_0 = arith.constant 0 : i32
    %c0_i32_1 = arith.constant 0 : i32
    return %c0_i32, %c0_i32_0 : i32, i32
  }
  func.func @transform_16(%arg0: i32) -> (i32, i32) {
    %c0_i32 = arith.constant 0 : i32
    %c0_i32_0 = arith.constant 0 : i32
    %c0_i32_1 = arith.constant 0 : i32
    return %c0_i32, %c0_i32_0 : i32, i32
  }
  func.func @transform_17(%arg0: i32) -> (i32, i32) {
    %c0_i32 = arith.constant 0 : i32
    %c0_i32_0 = arith.constant 0 : i32
    %c0_i32_1 = arith.constant 0 : i32
    return %c0_i32, %c0_i32_0 : i32, i32
  }
  func.func @transform_18(%arg0: i32) -> (i32, i32) {
    %c0_i32 = arith.constant 0 : i32
    %c0_i32_0 = arith.constant 0 : i32
    %c0_i32_1 = arith.constant 0 : i32
    return %c0_i32, %c0_i32_0 : i32, i32
  }
  func.func @transform_19(%arg0: i32) -> (i32, i32) {
    %c0_i32 = arith.constant 0 : i32
    %c0_i32_0 = arith.constant 0 : i32
    %c0_i32_1 = arith.constant 0 : i32
    return %c0_i32, %c0_i32_0 : i32, i32
  }
  func.func @transform_20(%arg0: i32) -> (i32, i32, i32) {
    %c0_i32 = arith.constant 0 : i32
    %c0_i32_0 = arith.constant 0 : i32
    %c0_i32_1 = arith.constant 0 : i32
    %c0_i32_2 = arith.constant 0 : i32
    return %c0_i32, %c0_i32_0, %c0_i32_1 : i32, i32, i32
  }
}

</mosaic_0001>

<llo_original>
// kernel: decoder_layer.1
$region0: #{decoder_layer.1}
  #allocation0 [shape = 'u32[]', space=smem, size = 0x4, offset = 0x4, fixed_abs, tag = 'smem constant byte address 0x4 - core index']
  #allocation1 [shape = 'u32[144,128]{1,0:T(1,128)}', space=vmem, size = 0x12000, scoped, tag = 'internal scratch']
  %s0 = inlined_call_operand.vmem [shape: f32[2,8,32], index: 0, kind: input, shape index: {}]
  %s1 = inlined_call_operand.vmem [shape: f32[2,8,32], index: 1, kind: input, shape index: {}]
  %s2 = inlined_call_operand.vmem [shape: f32[2,8,8], index: 2, kind: input, shape index: {}]
  %s3 = inlined_call_operand.vmem [shape: f32[2,8,8], index: 3, kind: input, shape index: {}]
  %s4 = inlined_call_operand.vmem [shape: f32[32,96], index: 4, kind: input, shape index: {}]
  %s5 = inlined_call_operand.vmem [shape: f32[1,96], index: 5, kind: input, shape index: {}]
  %s6 = inlined_call_operand.vmem [shape: f32[32,32], index: 6, kind: input, shape index: {}]
  %s7 = inlined_call_operand.vmem [shape: f32[1,32], index: 7, kind: input, shape index: {}]
  %s8 = inlined_call_operand.vmem [shape: f32[32,32], index: 8, kind: input, shape index: {}]
  %s9 = inlined_call_operand.vmem [shape: f32[1,32], index: 9, kind: input, shape index: {}]
  %s10 = inlined_call_operand.vmem [shape: f32[32,64], index: 10, kind: input, shape index: {}]
  %s11 = inlined_call_operand.vmem [shape: f32[1,64], index: 11, kind: input, shape index: {}]
  %s12 = inlined_call_operand.vmem [shape: f32[32,32], index: 12, kind: input, shape index: {}]
  %s13 = inlined_call_operand.vmem [shape: f32[1,32], index: 13, kind: input, shape index: {}]
  %s14 = inlined_call_operand.vmem [shape: f32[32,64], index: 14, kind: input, shape index: {}]
  %s15 = inlined_call_operand.vmem [shape: f32[1,64], index: 15, kind: input, shape index: {}]
  %s16 = inlined_call_operand.vmem [shape: f32[64,32], index: 16, kind: input, shape index: {}]
  %s17 = inlined_call_operand.vmem [shape: f32[1,32], index: 17, kind: input, shape index: {}]
  %s18 = inlined_call_operand.vmem [shape: f32[3,32], index: 18, kind: input, shape index: {}]
  %s19 = inlined_call_operand.vmem [shape: f32[3,32], index: 19, kind: input, shape index: {}]
  %s20 = inlined_call_operand.hbm [shape: f32[2,8,32], index: 20, kind: output, shape index: {}]
  %s21 = sld [smem:[#allocation0]]
  $region90: #{decoder_layer.1} parent=0
    _
  %s23 = ssub.s32 1, %s21
  %s24 = scalar_select 0, %s23, %s21
  $region1: #{decoder_layer.1} parent=0
    #allocation2 [shape = 'u8[8192]{0}', space=vmem, size = 0x2000, scoped, tag = 'output window, operand 0, single buffered']
    #allocation3 [shape = 's32[1]{0}', space=sflag, size = 0x4, scoped, tag = 'scoped memory for decoder_layer.1']
    %25 = vsyncpa [#allocation3], 0
    // Predicated region
    $region2: #{decoder_layer.1} parent=1 // pred_check
      _
    $region3: #{decoder_layer.1} parent=1 // pred_check_branch
      %27 = sbr.rel (0) target = $region5
    $region4: #{decoder_layer.1} parent=1 // pred_region
      _
    $region5: #{decoder_layer.1} parent=1 // pred_fallthru
      _
    // Predicated region
    $region6: #{decoder_layer.1} parent=1 // pred_check
      _
    $region7: #{decoder_layer.1} parent=1 // pred_check_branch
      %29 = sbr.rel (0) target = $region9
    $region8: #{decoder_layer.1} parent=1 // pred_region
      _
    $region9: #{decoder_layer.1} parent=1 // pred_fallthru
      _
    // Predicated region
    $region10: #{decoder_layer.1} parent=1 // pred_check
      _
    $region11: #{decoder_layer.1} parent=1 // pred_check_branch
      %31 = sbr.rel (0) target = $region13
    $region12: #{decoder_layer.1} parent=1 // pred_region
      _
    $region13: #{decoder_layer.1} parent=1 // pred_fallthru
      _
    // Predicated region
    $region14: #{decoder_layer.1} parent=1 // pred_check
      _
    $region15: #{decoder_layer.1} parent=1 // pred_check_branch
      %33 = sbr.rel (0) target = $region17
    $region16: #{decoder_layer.1} parent=1 // pred_region
      _
    $region17: #{decoder_layer.1} parent=1 // pred_fallthru
      _
    // Predicated region
    $region18: #{decoder_layer.1} parent=1 // pred_check
      _
    $region19: #{decoder_layer.1} parent=1 // pred_check_branch
      %35 = sbr.rel (0) target = $region21
    $region20: #{decoder_layer.1} parent=1 // pred_region
      _
    $region21: #{decoder_layer.1} parent=1 // pred_fallthru
      _
    // Predicated region
    $region22: #{decoder_layer.1} parent=1 // pred_check
      _
    $region23: #{decoder_layer.1} parent=1 // pred_check_branch
      %37 = sbr.rel (0) target = $region25
    $region24: #{decoder_layer.1} parent=1 // pred_region
      _
    $region25: #{decoder_layer.1} parent=1 // pred_fallthru
      _
    // Predicated region
    $region26: #{decoder_layer.1} parent=1 // pred_check
      _
    $region27: #{decoder_layer.1} parent=1 // pred_check_branch
      %39 = sbr.rel (0) target = $region29
    $region28: #{decoder_layer.1} parent=1 // pred_region
      _
    $region29: #{decoder_layer.1} parent=1 // pred_fallthru
      _
    // Predicated region
    $region30: #{decoder_layer.1} parent=1 // pred_check
      _
    $region31: #{decoder_layer.1} parent=1 // pred_check_branch
      %41 = sbr.rel (0) target = $region33
    $region32: #{decoder_layer.1} parent=1 // pred_region
      _
    $region33: #{decoder_layer.1} parent=1 // pred_fallthru
      _
    // Predicated region
    $region34: #{decoder_layer.1} parent=1 // pred_check
      _
    $region35: #{decoder_layer.1} parent=1 // pred_check_branch
      %43 = sbr.rel (0) target = $region37
    $region36: #{decoder_layer.1} parent=1 // pred_region
      _
    $region37: #{decoder_layer.1} parent=1 // pred_fallthru
      _
    // Predicated region
    $region38: #{decoder_layer.1} parent=1 // pred_check
      _
    $region39: #{decoder_layer.1} parent=1 // pred_check_branch
      %45 = sbr.rel (0) target = $region41
    $region40: #{decoder_layer.1} parent=1 // pred_region
      _
    $region41: #{decoder_layer.1} parent=1 // pred_fallthru
      _
    // Predicated region
    $region42: #{decoder_layer.1} parent=1 // pred_check
      _
    $region43: #{decoder_layer.1} parent=1 // pred_check_branch
      %47 = sbr.rel (0) target = $region45
    $region44: #{decoder_layer.1} parent=1 // pred_region
      _
    $region45: #{decoder_layer.1} parent=1 // pred_fallthru
      _
    // Predicated region
    $region46: #{decoder_layer.1} parent=1 // pred_check
      _
    $region47: #{decoder_layer.1} parent=1 // pred_check_branch
      %49 = sbr.rel (0) target = $region49
    $region48: #{decoder_layer.1} parent=1 // pred_region
      _
    $region49: #{decoder_layer.1} parent=1 // pred_fallthru
      _
    // Predicated region
    $region50: #{decoder_layer.1} parent=1 // pred_check
      _
    $region51: #{decoder_layer.1} parent=1 // pred_check_branch
      %51 = sbr.rel (0) target = $region53
    $region52: #{decoder_layer.1} parent=1 // pred_region
      _
    $region53: #{decoder_layer.1} parent=1 // pred_fallthru
      _
    // Predicated region
    $region54: #{decoder_layer.1} parent=1 // pred_check
      _
    $region55: #{decoder_layer.1} parent=1 // pred_check_branch
      %53 = sbr.rel (0) target = $region57
    $region56: #{decoder_layer.1} parent=1 // pred_region
      _
    $region57: #{decoder_layer.1} parent=1 // pred_fallthru
      _
    // Predicated region
    $region58: #{decoder_layer.1} parent=1 // pred_check
      _
    $region59: #{decoder_layer.1} parent=1 // pred_check_branch
      %55 = sbr.rel (0) target = $region61
    $region60: #{decoder_layer.1} parent=1 // pred_region
      _
    $region61: #{decoder_layer.1} parent=1 // pred_fallthru
      _
    // Predicated region
    $region62: #{decoder_layer.1} parent=1 // pred_check
      _
    $region63: #{decoder_layer.1} parent=1 // pred_check_branch
      %57 = sbr.rel (0) target = $region65
    $region64: #{decoder_layer.1} parent=1 // pred_region
      _
    $region65: #{decoder_layer.1} parent=1 // pred_fallthru
      _
    // Predicated region
    $region66: #{decoder_layer.1} parent=1 // pred_check
      _
    $region67: #{decoder_layer.1} parent=1 // pred_check_branch
      %59 = sbr.rel (0) target = $region69
    $region68: #{decoder_layer.1} parent=1 // pred_region
      _
    $region69: #{decoder_layer.1} parent=1 // pred_fallthru
      _
    // Predicated region
    $region70: #{decoder_layer.1} parent=1 // pred_check
      _
    $region71: #{decoder_layer.1} parent=1 // pred_check_branch
      %61 = sbr.rel (0) target = $region73
    $region72: #{decoder_layer.1} parent=1 // pred_region
      _
    $region73: #{decoder_layer.1} parent=1 // pred_fallthru
      _
    // Predicated region
    $region74: #{decoder_layer.1} parent=1 // pred_check
      _
    $region75: #{decoder_layer.1} parent=1 // pred_check_branch
      %63 = sbr.rel (0) target = $region77
    $region76: #{decoder_layer.1} parent=1 // pred_region
      _
    $region77: #{decoder_layer.1} parent=1 // pred_fallthru
      _
    // Predicated region
    $region78: #{decoder_layer.1} parent=1 // pred_check
      _
    $region79: #{decoder_layer.1} parent=1 // pred_check_branch
      %65 = sbr.rel (0) target = $region81
    $region80: #{decoder_layer.1} parent=1 // pred_region
      _
    $region81: #{decoder_layer.1} parent=1 // pred_fallthru
      _
    %v66 = vld [vmem:[%s0] sm:$0xff]
    %v67 = vld [vmem:[%s0 + $0x8] sm:$0xff]
    %v68 = vld [vmem:[%s1] sm:$0xff]
    %v69 = vld [vmem:[%s1 + $0x8] sm:$0xff]
    %v70 = vld [vmem:[%s2] sm:$0xff]
    %v71 = vld [vmem:[%s2 + $0x8] sm:$0xff]
    %v72 = vld [vmem:[%s3] sm:$0xff]
    %v73 = vld [vmem:[%s3 + $0x8] sm:$0xff]
    %v74 = vld [vmem:[%s18] sm:$0x1]
    %v75 = vld [vmem:[%s19] sm:$0x1]
    %vm76 = vcmask 261120
    %v77 = vsel %vm76, %v66, 0.0
    %78 = vadd.xlane.f32.xlu0 %v77
    %v79 = vpop.xlane.xlu0 %78
    %v80 = vsel %vm76, %v67, 0.0
    %81 = vadd.xlane.f32.xlu0 %v80
    %v82 = vpop.xlane.xlu0 %81
    %v83 = vrcp.pop 32.0
    %v84 = vmul.f32 %v79, %v83
    %v85 = vmul.f32 %v82, %v83
    %v86 = vsub.f32 %v66, %v84
    %v87 = vsub.f32 %v67, %v85
    %v88 = vmul.f32 %v86, %v86
    %v89 = vmul.f32 %v87, %v87
    %v90 = vsel %vm76, %v88, 0.0
    %91 = vadd.xlane.f32.xlu0 %v90
    %v92 = vpop.xlane.xlu0 %91
    %v93 = vsel %vm76, %v89, 0.0
    %94 = vadd.xlane.f32.xlu0 %v93
    %v95 = vpop.xlane.xlu0 %94
    %v96 = vmul.f32 %v92, %v83
    %v97 = vmul.f32 %v95, %v83
    %v98 = vadd.f32 %v96, 1e-05
    %v99 = vadd.f32 %v97, 1e-05
    %v100 = vrsqrt.pop %v98
    %v101 = vrsqrt.pop %v99
    %v102 = vmul.f32 %v86, %v100
    %v103 = vmul.f32 %v87, %v101
    %v104 = vlaneseq
    %v105 = vshrl.u32 %v104, 7
    %v106 = vsub.s32 0, %v105
    %v107 = vrot.slane %v74, %v106
    %v108 = vmul.f32 %v102, %v107
    %v109 = vmul.f32 %v103, %v107
    %v110 = vlaneseq
    %v111 = vshrl.u32 %v110, 7
    %v112 = vsub.s32 0, %v111
    %v113 = vrot.slane %v75, %v112
    %v114 = vadd.f32 %v108, %v113
    %v115 = vadd.f32 %v109, %v113
    %v116 = vld [vmem:[%s4] sm:$0xff]
    %v117 = vld [vmem:[%s4 + $0x8] sm:$0xff]
    %v118 = vld [vmem:[%s4 + $0x10] sm:$0xff]
    %v119 = vld [vmem:[%s4 + $0x18] sm:$0xff]
    %v120 = vld [vmem:[%s5] sm:$0x1]
    %v122 = vlaneseq
    %v123 = vshrl.u32 %v122, 7
    %v124 = vsub.s32 0, %v123
    %v125 = vrot.slane %v120, %v124
    %v128 = vsel %vm76, %v114, 0
    %v131 = vsel %vm76, %v115, 0
    %133 = vmatprep.subr.mxu0 0.0
    %134 = vmatpush1.msra.mxu0 %v116
    %135 = vmatprep.subr.mxu0 0.0
    %136 = vmatpush1.msra.mxu0 %v117
    %137 = vmatprep.subr.mxu0 0.0
    %138 = vmatpush1.msra.mxu0 %v118
    %139 = vmatprep.subr.mxu0 0.0
    %140 = vmatpush1.msra.mxu0 %v119
    %141 = vmatprep.subr.mxu0 0.0
    %142 = vmatpush1.msra.mxu0 0.0
    %143 = vmatprep.subr.mxu0 0.0
    %144 = vmatpush1.msra.mxu0 0.0
    %145 = vmatprep.subr.mxu0 0.0
    %146 = vmatpush1.msra.mxu0 0.0
    %147 = vmatprep.subr.mxu0 0.0
    %148 = vmatpush1.msra.mxu0 0.0
    %149 = vmatprep.subr.mxu0 0.0
    %150 = vmatpush1.msra.mxu0 0.0
    %151 = vmatprep.subr.mxu0 0.0
    %152 = vmatpush1.msra.mxu0 0.0
    %153 = vmatprep.subr.mxu0 0.0
    %154 = vmatpush1.msra.mxu0 0.0
    %155 = vmatprep.subr.mxu0 0.0
    %156 = vmatpush1.msra.mxu0 0.0
    %157 = vmatprep.subr.mxu0 0.0
    %158 = vmatpush1.msra.mxu0 0.0
    %159 = vmatprep.subr.mxu0 0.0
    %160 = vmatpush1.msra.mxu0 0.0
    %161 = vmatprep.subr.mxu0 0.0
    %162 = vmatpush1.msra.mxu0 0.0
    %163 = vmatprep.subr.mxu0 0.0
    %164 = vmatpush1.msra.mxu0 0.0
    %165 = vmatprep.subr.mxu0 0.0
    %166 = vmatpush1.msra.mxu0 0.0
    %167 = vmatprep.subr.mxu0 0.0
    %168 = vmatpush1.msra.mxu0 0.0
    %169 = vmatprep.subr.mxu0 0.0
    %170 = vmatpush1.msra.mxu0 0.0
    %171 = vmatprep.subr.mxu0 0.0
    %172 = vmatpush1.msra.mxu0 0.0
    %173 = vmatprep.subr.mxu0 0.0
    %174 = vmatpush1.msra.mxu0 0.0
    %175 = vmatprep.subr.mxu0 0.0
    %176 = vmatpush1.msra.mxu0 0.0
    %177 = vmatprep.subr.mxu0 0.0
    %178 = vmatpush1.msra.mxu0 0.0
    %179 = vmatprep.subr.mxu0 0.0
    %180 = vmatpush1.msra.mxu0 0.0
    %181 = vmatprep.subr.mxu0 0.0
    %182 = vmatpush1.msra.mxu0 0.0
    %183 = vmatprep.subr.mxu0 0.0
    %184 = vmatpush1.msra.mxu0 0.0
    %185 = vmatprep.subr.mxu0 0.0
    %186 = vmatpush1.msra.mxu0 0.0
    %187 = vmatprep.subr.mxu0 0.0
    %188 = vmatpush1.msra.mxu0 0.0
    %189 = vmatprep.subr.mxu0 0.0
    %190 = vmatpush1.msra.mxu0 0.0
    %191 = vmatprep.subr.mxu0 0.0
    %192 = vmatpush1.msra.mxu0 0.0
    %193 = vmatprep.subr.mxu0 0.0
    %194 = vmatpush1.msra.mxu0 0.0
    %195 = vmatprep.subr.mxu0 0.0
    %196 = vmatpush1.msra.mxu0 0.0
    %197 = vmatprep.mubr.f32.mxu0 0.0
    %198 = vmatmul.mubr.f32.gmra.mrb[0].mxu0 %v128
    %v199 = vpop.f32.mrb[0].mxu0
    %v200 = vadd.f32 %v125, %v199
    %v201 = vpop.f32.mrb[0].mxu0
    %202 = vmatprep.mubr.f32.mxu0 0.0
    %203 = vmatmul.mubr.f32.gmra.mrb[0].mxu0 %v131
    %v204 = vpop.f32.mrb[0].mxu0
    %v205 = vadd.f32 %v125, %v204
    %v206 = vpop.f32.mrb[0].mxu0
    %207 = vdwg.mxu0
    %208 = vxpose.xlu0.b32.start [1/16] %v200, 128
    %209 = vxpose.xlu0.b32.cont [2/16] %v205, 128
    %210 = vxpose.xlu0.b32.cont [3/16] 0.0, 128
    %211 = vxpose.xlu0.b32.cont [4/16] 0.0, 128
    %212 = vxpose.xlu0.b32.cont [5/16] 0.0, 128
    %213 = vxpose.xlu0.b32.cont [6/16] 0.0, 128
    %214 = vxpose.xlu0.b32.cont [7/16] 0.0, 128
    %215 = vxpose.xlu0.b32.cont [8/16] 0.0, 128
    %216 = vxpose.xlu0.b32.cont [9/16] 0.0, 128
    %217 = vxpose.xlu0.b32.cont [10/16] 0.0, 128
    %218 = vxpose.xlu0.b32.cont [11/16] 0.0, 128
    %219 = vxpose.xlu0.b32.cont [12/16] 0.0, 128
    %220 = vxpose.xlu0.b32.cont [13/16] 0.0, 128
    %221 = vxpose.xlu0.b32.cont [14/16] 0.0, 128
    %222 = vxpose.xlu0.b32.cont [15/16] 0.0, 128
    %223 = vxpose.xlu0.b32.end [16/16] 0.0, 128
    %v224 = vpop.trf.xlu0
    %v225 = vpop.trf.xlu0
    %v226 = vpop.trf.xlu0
    %v227 = vpop.trf.xlu0
    %v228 = vpop.trf.xlu0
    %v229 = vpop.trf.xlu0
    %v230 = vpop.trf.xlu0
    %v231 = vpop.trf.xlu0
    %v232 = vpop.trf.xlu0
    %v233 = vpop.trf.xlu0
    %v234 = vpop.trf.xlu0
    %v235 = vpop.trf.xlu0
    %v236 = vpop.trf.xlu0
    %v237 = vpop.trf.xlu0
    %v238 = vpop.trf.xlu0
    %v239 = vpop.trf.xlu0
    %240 = vxpose.xlu0.b32.start [1/16] %v224, 128
    %241 = vxpose.xlu0.b32.cont [2/16] 0.0, 128
    %242 = vxpose.xlu0.b32.cont [3/16] 0.0, 128
    %243 = vxpose.xlu0.b32.cont [4/16] 0.0, 128
    %244 = vxpose.xlu0.b32.cont [5/16] 0.0, 128
    %245 = vxpose.xlu0.b32.cont [6/16] 0.0, 128
    %246 = vxpose.xlu0.b32.cont [7/16] 0.0, 128
    %247 = vxpose.xlu0.b32.cont [8/16] 0.0, 128
    %248 = vxpose.xlu0.b32.cont [9/16] 0.0, 128
    %249 = vxpose.xlu0.b32.cont [10/16] 0.0, 128
    %250 = vxpose.xlu0.b32.cont [11/16] 0.0, 128
    %251 = vxpose.xlu0.b32.cont [12/16] 0.0, 128
    %252 = vxpose.xlu0.b32.cont [13/16] 0.0, 128
    %253 = vxpose.xlu0.b32.cont [14/16] 0.0, 128
    %254 = vxpose.xlu0.b32.cont [15/16] 0.0, 128
    %255 = vxpose.xlu0.b32.end [16/16] 0.0, 128
    %v256 = vpop.trf.xlu0
    %v257 = vpop.trf.xlu0
    %v258 = vpop.trf.xlu0
    %v259 = vpop.trf.xlu0
    %v260 = vpop.trf.xlu0
    %v261 = vpop.trf.xlu0
    %v262 = vpop.trf.xlu0
    %v263 = vpop.trf.xlu0
    %v264 = vpop.trf.xlu0
    %v265 = vpop.trf.xlu0
    %v266 = vpop.trf.xlu0
    %v267 = vpop.trf.xlu0
    %v268 = vpop.trf.xlu0
    %v269 = vpop.trf.xlu0
    %v270 = vpop.trf.xlu0
    %v271 = vpop.trf.xlu0
    %272 = vxpose.xlu0.b32.start [1/16] %v225, 128
    %273 = vxpose.xlu0.b32.cont [2/16] 0.0, 128
    %274 = vxpose.xlu0.b32.cont [3/16] 0.0, 128
    %275 = vxpose.xlu0.b32.cont [4/16] 0.0, 128
    %276 = vxpose.xlu0.b32.cont [5/16] 0.0, 128
    %277 = vxpose.xlu0.b32.cont [6/16] 0.0, 128
    %278 = vxpose.xlu0.b32.cont [7/16] 0.0, 128
    %279 = vxpose.xlu0.b32.cont [8/16] 0.0, 128
    %280 = vxpose.xlu0.b32.cont [9/16] 0.0, 128
    %281 = vxpose.xlu0.b32.cont [10/16] 0.0, 128
    %282 = vxpose.xlu0.b32.cont [11/16] 0.0, 128
    %283 = vxpose.xlu0.b32.cont [12/16] 0.0, 128
    %284 = vxpose.xlu0.b32.cont [13/16] 0.0, 128
    %285 = vxpose.xlu0.b32.cont [14/16] 0.0, 128
    %286 = vxpose.xlu0.b32.cont [15/16] 0.0, 128
    %287 = vxpose.xlu0.b32.end [16/16] 0.0, 128
    %v288 = vpop.trf.xlu0
    %v289 = vpop.trf.xlu0
    %v290 = vpop.trf.xlu0
    %v291 = vpop.trf.xlu0
    %v292 = vpop.trf.xlu0
    %v293 = vpop.trf.xlu0
    %v294 = vpop.trf.xlu0
    %v295 = vpop.trf.xlu0
    %v296 = vpop.trf.xlu0
    %v297 = vpop.trf.xlu0
    %v298 = vpop.trf.xlu0
    %v299 = vpop.trf.xlu0
    %v300 = vpop.trf.xlu0
    %v301 = vpop.trf.xlu0
    %v302 = vpop.trf.xlu0
    %v303 = vpop.trf.xlu0
    %304 = vxpose.xlu0.b32.start [1/16] %v226, 128
    %305 = vxpose.xlu0.b32.cont [2/16] 0.0, 128
    %306 = vxpose.xlu0.b32.cont [3/16] 0.0, 128
    %307 = vxpose.xlu0.b32.cont [4/16] 0.0, 128
    %308 = vxpose.xlu0.b32.cont [5/16] 0.0, 128
    %309 = vxpose.xlu0.b32.cont [6/16] 0.0, 128
    %310 = vxpose.xlu0.b32.cont [7/16] 0.0, 128
    %311 = vxpose.xlu0.b32.cont [8/16] 0.0, 128
    %312 = vxpose.xlu0.b32.cont [9/16] 0.0, 128
    %313 = vxpose.xlu0.b32.cont [10/16] 0.0, 128
    %314 = vxpose.xlu0.b32.cont [11/16] 0.0, 128
    %315 = vxpose.xlu0.b32.cont [12/16] 0.0, 128
    %316 = vxpose.xlu0.b32.cont [13/16] 0.0, 128
    %317 = vxpose.xlu0.b32.cont [14/16] 0.0, 128
    %318 = vxpose.xlu0.b32.cont [15/16] 0.0, 128
    %319 = vxpose.xlu0.b32.end [16/16] 0.0, 128
    %v320 = vpop.trf.xlu0
    %v321 = vpop.trf.xlu0
    %v322 = vpop.trf.xlu0
    %v323 = vpop.trf.xlu0
    %v324 = vpop.trf.xlu0
    %v325 = vpop.trf.xlu0
    %v326 = vpop.trf.xlu0
    %v327 = vpop.trf.xlu0
    %v328 = vpop.trf.xlu0
    %v329 = vpop.trf.xlu0
    %v330 = vpop.trf.xlu0
    %v331 = vpop.trf.xlu0
    %v332 = vpop.trf.xlu0
    %v333 = vpop.trf.xlu0
    %v334 = vpop.trf.xlu0
    %v335 = vpop.trf.xlu0
    %336 = vxpose.xlu0.b32.start [1/16] %v227, 128
    %337 = vxpose.xlu0.b32.cont [2/16] 0.0, 128
    %338 = vxpose.xlu0.b32.cont [3/16] 0.0, 128
    %339 = vxpose.xlu0.b32.cont [4/16] 0.0, 128
    %340 = vxpose.xlu0.b32.cont [5/16] 0.0, 128
    %341 = vxpose.xlu0.b32.cont [6/16] 0.0, 128
    %342 = vxpose.xlu0.b32.cont [7/16] 0.0, 128
    %343 = vxpose.xlu0.b32.cont [8/16] 0.0, 128
    %344 = vxpose.xlu0.b32.cont [9/16] 0.0, 128
    %345 = vxpose.xlu0.b32.cont [10/16] 0.0, 128
    %346 = vxpose.xlu0.b32.cont [11/16] 0.0, 128
    %347 = vxpose.xlu0.b32.cont [12/16] 0.0, 128
    %348 = vxpose.xlu0.b32.cont [13/16] 0.0, 128
    %349 = vxpose.xlu0.b32.cont [14/16] 0.0, 128
    %350 = vxpose.xlu0.b32.cont [15/16] 0.0, 128
    %351 = vxpose.xlu0.b32.end [16/16] 0.0, 128
    %v352 = vpop.trf.xlu0
    %v353 = vpop.trf.xlu0
    %v354 = vpop.trf.xlu0
    %v355 = vpop.trf.xlu0
    %v356 = vpop.trf.xlu0
    %v357 = vpop.trf.xlu0
    %v358 = vpop.trf.xlu0
    %v359 = vpop.trf.xlu0
    %v360 = vpop.trf.xlu0
    %v361 = vpop.trf.xlu0
    %v362 = vpop.trf.xlu0
    %v363 = vpop.trf.xlu0
    %v364 = vpop.trf.xlu0
    %v365 = vpop.trf.xlu0
    %v366 = vpop.trf.xlu0
    %v367 = vpop.trf.xlu0
    %368 = vxpose.xlu0.b32.start [1/16] %v228, 128
    %369 = vxpose.xlu0.b32.cont [2/16] 0.0, 128
    %370 = vxpose.xlu0.b32.cont [3/16] 0.0, 128
    %371 = vxpose.xlu0.b32.cont [4/16] 0.0, 128
    %372 = vxpose.xlu0.b32.cont [5/16] 0.0, 128
    %373 = vxpose.xlu0.b32.cont [6/16] 0.0, 128
    %374 = vxpose.xlu0.b32.cont [7/16] 0.0, 128
    %375 = vxpose.xlu0.b32.cont [8/16] 0.0, 128
    %376 = vxpose.xlu0.b32.cont [9/16] 0.0, 128
    %377 = vxpose.xlu0.b32.cont [10/16] 0.0, 128
    %378 = vxpose.xlu0.b32.cont [11/16] 0.0, 128
    %379 = vxpose.xlu0.b32.cont [12/16] 0.0, 128
    %380 = vxpose.xlu0.b32.cont [13/16] 0.0, 128
    %381 = vxpose.xlu0.b32.cont [14/16] 0.0, 128
    %382 = vxpose.xlu0.b32.cont [15/16] 0.0, 128
    %383 = vxpose.xlu0.b32.end [16/16] 0.0, 128
    %v384 = vpop.trf.xlu0
    %v385 = vpop.trf.xlu0
    %v386 = vpop.trf.xlu0
    %v387 = vpop.trf.xlu0
    %v388 = vpop.trf.xlu0
    %v389 = vpop.trf.xlu0
    %v390 = vpop.trf.xlu0
    %v391 = vpop.trf.xlu0
    %v392 = vpop.trf.xlu0
    %v393 = vpop.trf.xlu0
    %v394 = vpop.trf.xlu0
    %v395 = vpop.trf.xlu0
    %v396 = vpop.trf.xlu0
    %v397 = vpop.trf.xlu0
    %v398 = vpop.trf.xlu0
    %v399 = vpop.trf.xlu0
    %400 = vxpose.xlu0.b32.start [1/16] %v229, 128
    %401 = vxpose.xlu0.b32.cont [2/16] 0.0, 128
    %402 = vxpose.xlu0.b32.cont [3/16] 0.0, 128
    %403 = vxpose.xlu0.b32.cont [4/16] 0.0, 128
    %404 = vxpose.xlu0.b32.cont [5/16] 0.0, 128
    %405 = vxpose.xlu0.b32.cont [6/16] 0.0, 128
    %406 = vxpose.xlu0.b32.cont [7/16] 0.0, 128
    %407 = vxpose.xlu0.b32.cont [8/16] 0.0, 128
    %408 = vxpose.xlu0.b32.cont [9/16] 0.0, 128
    %409 = vxpose.xlu0.b32.cont [10/16] 0.0, 128
    %410 = vxpose.xlu0.b32.cont [11/16] 0.0, 128
    %411 = vxpose.xlu0.b32.cont [12/16] 0.0, 128
    %412 = vxpose.xlu0.b32.cont [13/16] 0.0, 128
    %413 = vxpose.xlu0.b32.cont [14/16] 0.0, 128
    %414 = vxpose.xlu0.b32.cont [15/16] 0.0, 128
    %415 = vxpose.xlu0.b32.end [16/16] 0.0, 128
    %v416 = vpop.trf.xlu0
    %v417 = vpop.trf.xlu0
    %v418 = vpop.trf.xlu0
    %v419 = vpop.trf.xlu0
    %v420 = vpop.trf.xlu0
    %v421 = vpop.trf.xlu0
    %v422 = vpop.trf.xlu0
    %v423 = vpop.trf.xlu0
    %v424 = vpop.trf.xlu0
    %v425 = vpop.trf.xlu0
    %v426 = vpop.trf.xlu0
    %v427 = vpop.trf.xlu0
    %v428 = vpop.trf.xlu0
    %v429 = vpop.trf.xlu0
    %v430 = vpop.trf.xlu0
    %v431 = vpop.trf.xlu0
    %432 = vxpose.xlu0.b32.start [1/16] %v230, 128
    %433 = vxpose.xlu0.b32.cont [2/16] 0.0, 128
    %434 = vxpose.xlu0.b32.cont [3/16] 0.0, 128
    %435 = vxpose.xlu0.b32.cont [4/16] 0.0, 128
    %436 = vxpose.xlu0.b32.cont [5/16] 0.0, 128
    %437 = vxpose.xlu0.b32.cont [6/16] 0.0, 128
    %438 = vxpose.xlu0.b32.cont [7/16] 0.0, 128
    %439 = vxpose.xlu0.b32.cont [8/16] 0.0, 128
    %440 = vxpose.xlu0.b32.cont [9/16] 0.0, 128
    %441 = vxpose.xlu0.b32.cont [10/16] 0.0, 128
    %442 = vxpose.xlu0.b32.cont [11/16] 0.0, 128
    %443 = vxpose.xlu0.b32.cont [12/16] 0.0, 128
    %444 = vxpose.xlu0.b32.cont [13/16] 0.0, 128
    %445 = vxpose.xlu0.b32.cont [14/16] 0.0, 128
    %446 = vxpose.xlu0.b32.cont [15/16] 0.0, 128
    %447 = vxpose.xlu0.b32.end [16/16] 0.0, 128
    %v448 = vpop.trf.xlu0
    %v449 = vpop.trf.xlu0
    %v450 = vpop.trf.xlu0
    %v451 = vpop.trf.xlu0
    %v452 = vpop.trf.xlu0
    %v453 = vpop.trf.xlu0
    %v454 = vpop.trf.xlu0
    %v455 = vpop.trf.xlu0
    %v456 = vpop.trf.xlu0
    %v457 = vpop.trf.xlu0
    %v458 = vpop.trf.xlu0
    %v459 = vpop.trf.xlu0
    %v460 = vpop.trf.xlu0
    %v461 = vpop.trf.xlu0
    %v462 = vpop.trf.xlu0
    %v463 = vpop.trf.xlu0
    %464 = vxpose.xlu0.b32.start [1/16] %v231, 128
    %465 = vxpose.xlu0.b32.cont [2/16] 0.0, 128
    %466 = vxpose.xlu0.b32.cont [3/16] 0.0, 128
    %467 = vxpose.xlu0.b32.cont [4/16] 0.0, 128
    %468 = vxpose.xlu0.b32.cont [5/16] 0.0, 128
    %469 = vxpose.xlu0.b32.cont [6/16] 0.0, 128
    %470 = vxpose.xlu0.b32.cont [7/16] 0.0, 128
    %471 = vxpose.xlu0.b32.cont [8/16] 0.0, 128
    %472 = vxpose.xlu0.b32.cont [9/16] 0.0, 128
    %473 = vxpose.xlu0.b32.cont [10/16] 0.0, 128
    %474 = vxpose.xlu0.b32.cont [11/16] 0.0, 128
    %475 = vxpose.xlu0.b32.cont [12/16] 0.0, 128
    %476 = vxpose.xlu0.b32.cont [13/16] 0.0, 128
    %477 = vxpose.xlu0.b32.cont [14/16] 0.0, 128
    %478 = vxpose.xlu0.b32.cont [15/16] 0.0, 128
    %479 = vxpose.xlu0.b32.end [16/16] 0.0, 128
    %v480 = vpop.trf.xlu0
    %v481 = vpop.trf.xlu0
    %v482 = vpop.trf.xlu0
    %v483 = vpop.trf.xlu0
    %v484 = vpop.trf.xlu0
    %v485 = vpop.trf.xlu0
    %v486 = vpop.trf.xlu0
    %v487 = vpop.trf.xlu0
    %v488 = vpop.trf.xlu0
    %v489 = vpop.trf.xlu0
    %v490 = vpop.trf.xlu0
    %v491 = vpop.trf.xlu0
    %v492 = vpop.trf.xlu0
    %v493 = vpop.trf.xlu0
    %v494 = vpop.trf.xlu0
    %v495 = vpop.trf.xlu0
    %496 = vxpose.xlu0.b32.start [1/16] %v232, 128
    %497 = vxpose.xlu0.b32.cont [2/16] 0.0, 128
    %498 = vxpose.xlu0.b32.cont [3/16] 0.0, 128
    %499 = vxpose.xlu0.b32.cont [4/16] 0.0, 128
    %500 = vxpose.xlu0.b32.cont [5/16] 0.0, 128
    %501 = vxpose.xlu0.b32.cont [6/16] 0.0, 128
    %502 = vxpose.xlu0.b32.cont [7/16] 0.0, 128
    %503 = vxpose.xlu0.b32.cont [8/16] 0.0, 128
    %504 = vxpose.xlu0.b32.cont [9/16] 0.0, 128
    %505 = vxpose.xlu0.b32.cont [10/16] 0.0, 128
    %506 = vxpose.xlu0.b32.cont [11/16] 0.0, 128
    %507 = vxpose.xlu0.b32.cont [12/16] 0.0, 128
    %508 = vxpose.xlu0.b32.cont [13/16] 0.0, 128
    %509 = vxpose.xlu0.b32.cont [14/16] 0.0, 128
    %510 = vxpose.xlu0.b32.cont [15/16] 0.0, 128
    %511 = vxpose.xlu0.b32.end [16/16] 0.0, 128
    %v512 = vpop.trf.xlu0
    %v513 = vpop.trf.xlu0
    %v514 = vpop.trf.xlu0
    %v515 = vpop.trf.xlu0
    %v516 = vpop.trf.xlu0
    %v517 = vpop.trf.xlu0
    %v518 = vpop.trf.xlu0
    %v519 = vpop.trf.xlu0
    %v520 = vpop.trf.xlu0
    %v521 = vpop.trf.xlu0
    %v522 = vpop.trf.xlu0
    %v523 = vpop.trf.xlu0
    %v524 = vpop.trf.xlu0
    %v525 = vpop.trf.xlu0
    %v526 = vpop.trf.xlu0
    %v527 = vpop.trf.xlu0
    %528 = vxpose.xlu0.b32.start [1/16] %v233, 128
    %529 = vxpose.xlu0.b32.cont [2/16] 0.0, 128
    %530 = vxpose.xlu0.b32.cont [3/16] 0.0, 128
    %531 = vxpose.xlu0.b32.cont [4/16] 0.0, 128
    %532 = vxpose.xlu0.b32.cont [5/16] 0.0, 128
    %533 = vxpose.xlu0.b32.cont [6/16] 0.0, 128
    %534 = vxpose.xlu0.b32.cont [7/16] 0.0, 128
    %535 = vxpose.xlu0.b32.cont [8/16] 0.0, 128
    %536 = vxpose.xlu0.b32.cont [9/16] 0.0, 128
    %537 = vxpose.xlu0.b32.cont [10/16] 0.0, 128
    %538 = vxpose.xlu0.b32.cont [11/16] 0.0, 128
    %539 = vxpose.xlu0.b32.cont [12/16] 0.0, 128
    %540 = vxpose.xlu0.b32.cont [13/16] 0.0, 128
    %541 = vxpose.xlu0.b32.cont [14/16] 0.0, 128
    %542 = vxpose.xlu0.b32.cont [15/16] 0.0, 128
    %543 = vxpose.xlu0.b32.end [16/16] 0.0, 128
    %v544 = vpop.trf.xlu0
    %v545 = vpop.trf.xlu0
    %v546 = vpop.trf.xlu0
    %v547 = vpop.trf.xlu0
    %v548 = vpop.trf.xlu0
    %v549 = vpop.trf.xlu0
    %v550 = vpop.trf.xlu0
    %v551 = vpop.trf.xlu0
    %v552 = vpop.trf.xlu0
    %v553 = vpop.trf.xlu0
    %v554 = vpop.trf.xlu0
    %v555 = vpop.trf.xlu0
    %v556 = vpop.trf.xlu0
    %v557 = vpop.trf.xlu0
    %v558 = vpop.trf.xlu0
    %v559 = vpop.trf.xlu0
    %560 = vxpose.xlu0.b32.start [1/16] %v234, 128
    %561 = vxpose.xlu0.b32.cont [2/16] 0.0, 128
    %562 = vxpose.xlu0.b32.cont [3/16] 0.0, 128
    %563 = vxpose.xlu0.b32.cont [4/16] 0.0, 128
    %564 = vxpose.xlu0.b32.cont [5/16] 0.0, 128
    %565 = vxpose.xlu0.b32.cont [6/16] 0.0, 128
    %566 = vxpose.xlu0.b32.cont [7/16] 0.0, 128
    %567 = vxpose.xlu0.b32.cont [8/16] 0.0, 128
    %568 = vxpose.xlu0.b32.cont [9/16] 0.0, 128
    %569 = vxpose.xlu0.b32.cont [10/16] 0.0, 128
    %570 = vxpose.xlu0.b32.cont [11/16] 0.0, 128
    %571 = vxpose.xlu0.b32.cont [12/16] 0.0, 128
    %572 = vxpose.xlu0.b32.cont [13/16] 0.0, 128
    %573 = vxpose.xlu0.b32.cont [14/16] 0.0, 128
    %574 = vxpose.xlu0.b32.cont [15/16] 0.0, 128
    %575 = vxpose.xlu0.b32.end [16/16] 0.0, 128
    %v576 = vpop.trf.xlu0
    %v577 = vpop.trf.xlu0
    %v578 = vpop.trf.xlu0
    %v579 = vpop.trf.xlu0
    %v580 = vpop.trf.xlu0
    %v581 = vpop.trf.xlu0
    %v582 = vpop.trf.xlu0
    %v583 = vpop.trf.xlu0
    %v584 = vpop.trf.xlu0
    %v585 = vpop.trf.xlu0
    %v586 = vpop.trf.xlu0
    %v587 = vpop.trf.xlu0
    %v588 = vpop.trf.xlu0
    %v589 = vpop.trf.xlu0
    %v590 = vpop.trf.xlu0
    %v591 = vpop.trf.xlu0
    %592 = vxpose.xlu0.b32.start [1/16] %v235, 128
    %593 = vxpose.xlu0.b32.cont [2/16] 0.0, 128
    %594 = vxpose.xlu0.b32.cont [3/16] 0.0, 128
    %595 = vxpose.xlu0.b32.cont [4/16] 0.0, 128
    %596 = vxpose.xlu0.b32.cont [5/16] 0.0, 128
    %597 = vxpose.xlu0.b32.cont [6/16] 0.0, 128
    %598 = vxpose.xlu0.b32.cont [7/16] 0.0, 128
    %599 = vxpose.xlu0.b32.cont [8/16] 0.0, 128
    %600 = vxpose.xlu0.b32.cont [9/16] 0.0, 128
    %601 = vxpose.xlu0.b32.cont [10/16] 0.0, 128
    %602 = vxpose.xlu0.b32.cont [11/16] 0.0, 128
    %603 = vxpose.xlu0.b32.cont [12/16] 0.0, 128
    %604 = vxpose.xlu0.b32.cont [13/16] 0.0, 128
    %605 = vxpose.xlu0.b32.cont [14/16] 0.0, 128
    %606 = vxpose.xlu0.b32.cont [15/16] 0.0, 128
    %607 = vxpose.xlu0.b32.end [16/16] 0.0, 128
    %v608 = vpop.trf.xlu0
    %v609 = vpop.trf.xlu0
    %v610 = vpop.trf.xlu0
    %v611 = vpop.trf.xlu0
    %v612 = vpop.trf.xlu0
    %v613 = vpop.trf.xlu0
    %v614 = vpop.trf.xlu0
    %v615 = vpop.trf.xlu0
    %v616 = vpop.trf.xlu0
    %v617 = vpop.trf.xlu0
    %v618 = vpop.trf.xlu0
    %v619 = vpop.trf.xlu0
    %v620 = vpop.trf.xlu0
    %v621 = vpop.trf.xlu0
    %v622 = vpop.trf.xlu0
    %v623 = vpop.trf.xlu0
    %vm624 = vcmask 64512
    %v626 = vsel %vm624, %v256, 0
    %v629 = vsel %vm624, %v384, 0
    %631 = vmatprep.subr.mxu0 0.0
    %632 = vmatpush1.xpose.msra.mxu0 %v629
    %633 = vmatprep.subr.mxu0 0.0
    %634 = vmatpush1.xpose.msra.mxu0 0.0
    %635 = vmatprep.subr.mxu0 0.0
    %636 = vmatpush1.xpose.msra.mxu0 0.0
    %637 = vmatprep.subr.mxu0 0.0
    %638 = vmatpush1.xpose.msra.mxu0 0.0
    %639 = vmatprep.subr.mxu0 0.0
    %640 = vmatpush1.xpose.msra.mxu0 0.0
    %641 = vmatprep.subr.mxu0 0.0
    %642 = vmatpush1.xpose.msra.mxu0 0.0
    %643 = vmatprep.subr.mxu0 0.0
    %644 = vmatpush1.xpose.msra.mxu0 0.0
    %645 = vmatprep.subr.mxu0 0.0
    %646 = vmatpush1.xpose.msra.mxu0 0.0
    %647 = vmatprep.subr.mxu0 0.0
    %648 = vmatpush1.xpose.msra.mxu0 0.0
    %649 = vmatprep.subr.mxu0 0.0
    %650 = vmatpush1.xpose.msra.mxu0 0.0
    %651 = vmatprep.subr.mxu0 0.0
    %652 = vmatpush1.xpose.msra.mxu0 0.0
    %653 = vmatprep.subr.mxu0 0.0
    %654 = vmatpush1.xpose.msra.mxu0 0.0
    %655 = vmatprep.subr.mxu0 0.0
    %656 = vmatpush1.xpose.msra.mxu0 0.0
    %657 = vmatprep.subr.mxu0 0.0
    %658 = vmatpush1.xpose.msra.mxu0 0.0
    %659 = vmatprep.subr.mxu0 0.0
    %660 = vmatpush1.xpose.msra.mxu0 0.0
    %661 = vmatprep.subr.mxu0 0.0
    %662 = vmatpush1.xpose.msra.mxu0 0.0
    %663 = vmatprep.subr.mxu0 0.0
    %664 = vmatpush1.xpose.msra.mxu0 0.0
    %665 = vmatprep.subr.mxu0 0.0
    %666 = vmatpush1.xpose.msra.mxu0 0.0
    %667 = vmatprep.subr.mxu0 0.0
    %668 = vmatpush1.xpose.msra.mxu0 0.0
    %669 = vmatprep.subr.mxu0 0.0
    %670 = vmatpush1.xpose.msra.mxu0 0.0
    %671 = vmatprep.subr.mxu0 0.0
    %672 = vmatpush1.xpose.msra.mxu0 0.0
    %673 = vmatprep.subr.mxu0 0.0
    %674 = vmatpush1.xpose.msra.mxu0 0.0
    %675 = vmatprep.subr.mxu0 0.0
    %676 = vmatpush1.xpose.msra.mxu0 0.0
    %677 = vmatprep.subr.mxu0 0.0
    %678 = vmatpush1.xpose.msra.mxu0 0.0
    %679 = vmatprep.subr.mxu0 0.0
    %680 = vmatpush1.xpose.msra.mxu0 0.0
    %681 = vmatprep.subr.mxu0 0.0
    %682 = vmatpush1.xpose.msra.mxu0 0.0
    %683 = vmatprep.subr.mxu0 0.0
    %684 = vmatpush1.xpose.msra.mxu0 0.0
    %685 = vmatprep.subr.mxu0 0.0
    %686 = vmatpush1.xpose.msra.mxu0 0.0
    %687 = vmatprep.subr.mxu0 0.0
    %688 = vmatpush1.xpose.msra.mxu0 0.0
    %689 = vmatprep.subr.mxu0 0.0
    %690 = vmatpush1.xpose.msra.mxu0 0.0
    %691 = vmatprep.subr.mxu0 0.0
    %692 = vmatpush1.xpose.msra.mxu0 0.0
    %693 = vmatprep.subr.mxu0 0.0
    %694 = vmatpush1.xpose.msra.mxu0 0.0
    %695 = vmatprep.mubr.f32.mxu0 0.0
    %696 = vmatmul.mubr.f32.gmra.mrb[0].mxu0 %v626
    %v697 = vpop.f32.mrb[0].mxu0
    %v698 = vadd.f32 0.0, %v697
    %v699 = vpop.f32.mrb[0].mxu0
    %700 = vdwg.mxu0
    %v702 = vsel %vm624, %v257, 0
    %v705 = vsel %vm624, %v385, 0
    %707 = vmatprep.subr.mxu0 0.0
    %708 = vmatpush1.xpose.msra.mxu0 %v705
    %709 = vmatprep.subr.mxu0 0.0
    %710 = vmatpush1.xpose.msra.mxu0 0.0
    %711 = vmatprep.subr.mxu0 0.0
    %712 = vmatpush1.xpose.msra.mxu0 0.0
    %713 = vmatprep.subr.mxu0 0.0
    %714 = vmatpush1.xpose.msra.mxu0 0.0
    %715 = vmatprep.subr.mxu0 0.0
    %716 = vmatpush1.xpose.msra.mxu0 0.0
    %717 = vmatprep.subr.mxu0 0.0
    %718 = vmatpush1.xpose.msra.mxu0 0.0
    %719 = vmatprep.subr.mxu0 0.0
    %720 = vmatpush1.xpose.msra.mxu0 0.0
    %721 = vmatprep.subr.mxu0 0.0
    %722 = vmatpush1.xpose.msra.mxu0 0.0
    %723 = vmatprep.subr.mxu0 0.0
    %724 = vmatpush1.xpose.msra.mxu0 0.0
    %725 = vmatprep.subr.mxu0 0.0
    %726 = vmatpush1.xpose.msra.mxu0 0.0
    %727 = vmatprep.subr.mxu0 0.0
    %728 = vmatpush1.xpose.msra.mxu0 0.0
    %729 = vmatprep.subr.mxu0 0.0
    %730 = vmatpush1.xpose.msra.mxu0 0.0
    %731 = vmatprep.subr.mxu0 0.0
    %732 = vmatpush1.xpose.msra.mxu0 0.0
    %733 = vmatprep.subr.mxu0 0.0
    %734 = vmatpush1.xpose.msra.mxu0 0.0
    %735 = vmatprep.subr.mxu0 0.0
    %736 = vmatpush1.xpose.msra.mxu0 0.0
    %737 = vmatprep.subr.mxu0 0.0
    %738 = vmatpush1.xpose.msra.mxu0 0.0
    %739 = vmatprep.subr.mxu0 0.0
    %740 = vmatpush1.xpose.msra.mxu0 0.0
    %741 = vmatprep.subr.mxu0 0.0
    %742 = vmatpush1.xpose.msra.mxu0 0.0
    %743 = vmatprep.subr.mxu0 0.0
    %744 = vmatpush1.xpose.msra.mxu0 0.0
    %745 = vmatprep.subr.mxu0 0.0
    %746 = vmatpush1.xpose.msra.mxu0 0.0
    %747 = vmatprep.subr.mxu0 0.0
    %748 = vmatpush1.xpose.msra.mxu0 0.0
    %749 = vmatprep.subr.mxu0 0.0
    %750 = vmatpush1.xpose.msra.mxu0 0.0
    %751 = vmatprep.subr.mxu0 0.0
    %752 = vmatpush1.xpose.msra.mxu0 0.0
    %753 = vmatprep.subr.mxu0 0.0
    %754 = vmatpush1.xpose.msra.mxu0 0.0
    %755 = vmatprep.subr.mxu0 0.0
    %756 = vmatpush1.xpose.msra.mxu0 0.0
    %757 = vmatprep.subr.mxu0 0.0
    %758 = vmatpush1.xpose.msra.mxu0 0.0
    %759 = vmatprep.subr.mxu0 0.0
    %760 = vmatpush1.xpose.msra.mxu0 0.0
    %761 = vmatprep.subr.mxu0 0.0
    %762 = vmatpush1.xpose.msra.mxu0 0.0
    %763 = vmatprep.subr.mxu0 0.0
    %764 = vmatpush1.xpose.msra.mxu0 0.0
    %765 = vmatprep.subr.mxu0 0.0
    %766 = vmatpush1.xpose.msra.mxu0 0.0
    %767 = vmatprep.subr.mxu0 0.0
    %768 = vmatpush1.xpose.msra.mxu0 0.0
    %769 = vmatprep.subr.mxu0 0.0
    %770 = vmatpush1.xpose.msra.mxu0 0.0
    %771 = vmatprep.mubr.f32.mxu0 0.0
    %772 = vmatmul.mubr.f32.gmra.mrb[0].mxu0 %v702
    %v773 = vpop.f32.mrb[0].mxu0
    %v774 = vadd.f32 0.0, %v773
    %v775 = vpop.f32.mrb[0].mxu0
    %776 = vdwg.mxu0
    %v778 = vsel %vm624, %v288, 0
    %v781 = vsel %vm624, %v416, 0
    %783 = vmatprep.subr.mxu0 0.0
    %784 = vmatpush1.xpose.msra.mxu0 %v781
    %785 = vmatprep.subr.mxu0 0.0
    %786 = vmatpush1.xpose.msra.mxu0 0.0
    %787 = vmatprep.subr.mxu0 0.0
    %788 = vmatpush1.xpose.msra.mxu0 0.0
    %789 = vmatprep.subr.mxu0 0.0
    %790 = vmatpush1.xpose.msra.mxu0 0.0
    %791 = vmatprep.subr.mxu0 0.0
    %792 = vmatpush1.xpose.msra.mxu0 0.0
    %793 = vmatprep.subr.mxu0 0.0
    %794 = vmatpush1.xpose.msra.mxu0 0.0
    %795 = vmatprep.subr.mxu0 0.0
    %796 = vmatpush1.xpose.msra.mxu0 0.0
    %797 = vmatprep.subr.mxu0 0.0
    %798 = vmatpush1.xpose.msra.mxu0 0.0
    %799 = vmatprep.subr.mxu0 0.0
    %800 = vmatpush1.xpose.msra.mxu0 0.0
    %801 = vmatprep.subr.mxu0 0.0
    %802 = vmatpush1.xpose.msra.mxu0 0.0
    %803 = vmatprep.subr.mxu0 0.0
    %804 = vmatpush1.xpose.msra.mxu0 0.0
    %805 = vmatprep.subr.mxu0 0.0
    %806 = vmatpush1.xpose.msra.mxu0 0.0
    %807 = vmatprep.subr.mxu0 0.0
    %808 = vmatpush1.xpose.msra.mxu0 0.0
    %809 = vmatprep.subr.mxu0 0.0
    %810 = vmatpush1.xpose.msra.mxu0 0.0
    %811 = vmatprep.subr.mxu0 0.0
    %812 = vmatpush1.xpose.msra.mxu0 0.0
    %813 = vmatprep.subr.mxu0 0.0
    %814 = vmatpush1.xpose.msra.mxu0 0.0
    %815 = vmatprep.subr.mxu0 0.0
    %816 = vmatpush1.xpose.msra.mxu0 0.0
    %817 = vmatprep.subr.mxu0 0.0
    %818 = vmatpush1.xpose.msra.mxu0 0.0
    %819 = vmatprep.subr.mxu0 0.0
    %820 = vmatpush1.xpose.msra.mxu0 0.0
    %821 = vmatprep.subr.mxu0 0.0
    %822 = vmatpush1.xpose.msra.mxu0 0.0
    %823 = vmatprep.subr.mxu0 0.0
    %824 = vmatpush1.xpose.msra.mxu0 0.0
    %825 = vmatprep.subr.mxu0 0.0
    %826 = vmatpush1.xpose.msra.mxu0 0.0
    %827 = vmatprep.subr.mxu0 0.0
    %828 = vmatpush1.xpose.msra.mxu0 0.0
    %829 = vmatprep.subr.mxu0 0.0
    %830 = vmatpush1.xpose.msra.mxu0 0.0
    %831 = vmatprep.subr.mxu0 0.0
    %832 = vmatpush1.xpose.msra.mxu0 0.0
    %833 = vmatprep.subr.mxu0 0.0
    %834 = vmatpush1.xpose.msra.mxu0 0.0
    %835 = vmatprep.subr.mxu0 0.0
    %836 = vmatpush1.xpose.msra.mxu0 0.0
    %837 = vmatprep.subr.mxu0 0.0
    %838 = vmatpush1.xpose.msra.mxu0 0.0
    %839 = vmatprep.subr.mxu0 0.0
    %840 = vmatpush1.xpose.msra.mxu0 0.0
    %841 = vmatprep.subr.mxu0 0.0
    %842 = vmatpush1.xpose.msra.mxu0 0.0
    %843 = vmatprep.subr.mxu0 0.0
    %844 = vmatpush1.xpose.msra.mxu0 0.0
    %845 = vmatprep.subr.mxu0 0.0
    %846 = vmatpush1.xpose.msra.mxu0 0.0
    %847 = vmatprep.mubr.f32.mxu0 0.0
    %848 = vmatmul.mubr.f32.gmra.mrb[0].mxu0 %v778
    %v849 = vpop.f32.mrb[0].mxu0
    %v850 = vadd.f32 0.0, %v849
    %v851 = vpop.f32.mrb[0].mxu0
    %852 = vdwg.mxu0
    %v854 = vsel %vm624, %v289, 0
    %v857 = vsel %vm624, %v417, 0
    %859 = vmatprep.subr.mxu0 0.0
    %860 = vmatpush1.xpose.msra.mxu0 %v857
    %861 = vmatprep.subr.mxu0 0.0
    %862 = vmatpush1.xpose.msra.mxu0 0.0
    %863 = vmatprep.subr.mxu0 0.0
    %864 = vmatpush1.xpose.msra.mxu0 0.0
    %865 = vmatprep.subr.mxu0 0.0
    %866 = vmatpush1.xpose.msra.mxu0 0.0
    %867 = vmatprep.subr.mxu0 0.0
    %868 = vmatpush1.xpose.msra.mxu0 0.0
    %869 = vmatprep.subr.mxu0 0.0
    %870 = vmatpush1.xpose.msra.mxu0 0.0
    %871 = vmatprep.subr.mxu0 0.0
    %872 = vmatpush1.xpose.msra.mxu0 0.0
    %873 = vmatprep.subr.mxu0 0.0
    %874 = vmatpush1.xpose.msra.mxu0 0.0
    %875 = vmatprep.subr.mxu0 0.0
    %876 = vmatpush1.xpose.msra.mxu0 0.0
    %877 = vmatprep.subr.mxu0 0.0
    %878 = vmatpush1.xpose.msra.mxu0 0.0
    %879 = vmatprep.subr.mxu0 0.0
    %880 = vmatpush1.xpose.msra.mxu0 0.0
    %881 = vmatprep.subr.mxu0 0.0
    %882 = vmatpush1.xpose.msra.mxu0 0.0
    %883 = vmatprep.subr.mxu0 0.0
    %884 = vmatpush1.xpose.msra.mxu0 0.0
    %885 = vmatprep.subr.mxu0 0.0
    %886 = vmatpush1.xpose.msra.mxu0 0.0
    %887 = vmatprep.subr.mxu0 0.0
    %888 = vmatpush1.xpose.msra.mxu0 0.0
    %889 = vmatprep.subr.mxu0 0.0
    %890 = vmatpush1.xpose.msra.mxu0 0.0
    %891 = vmatprep.subr.mxu0 0.0
    %892 = vmatpush1.xpose.msra.mxu0 0.0
    %893 = vmatprep.subr.mxu0 0.0
    %894 = vmatpush1.xpose.msra.mxu0 0.0
    %895 = vmatprep.subr.mxu0 0.0
    %896 = vmatpush1.xpose.msra.mxu0 0.0
    %897 = vmatprep.subr.mxu0 0.0
    %898 = vmatpush1.xpose.msra.mxu0 0.0
    %899 = vmatprep.subr.mxu0 0.0
    %900 = vmatpush1.xpose.msra.mxu0 0.0
    %901 = vmatprep.subr.mxu0 0.0
    %902 = vmatpush1.xpose.msra.mxu0 0.0
    %903 = vmatprep.subr.mxu0 0.0
    %904 = vmatpush1.xpose.msra.mxu0 0.0
    %905 = vmatprep.subr.mxu0 0.0
    %906 = vmatpush1.xpose.msra.mxu0 0.0
    %907 = vmatprep.subr.mxu0 0.0
    %908 = vmatpush1.xpose.msra.mxu0 0.0
    %909 = vmatprep.subr.mxu0 0.0
    %910 = vmatpush1.xpose.msra.mxu0 0.0
    %911 = vmatprep.subr.mxu0 0.0
    %912 = vmatpush1.xpose.msra.mxu0 0.0
    %913 = vmatprep.subr.mxu0 0.0
    %914 = vmatpush1.xpose.msra.mxu0 0.0
    %915 = vmatprep.subr.mxu0 0.0
    %916 = vmatpush1.xpose.msra.mxu0 0.0
    %917 = vmatprep.subr.mxu0 0.0
    %918 = vmatpush1.xpose.msra.mxu0 0.0
    %919 = vmatprep.subr.mxu0 0.0
    %920 = vmatpush1.xpose.msra.mxu0 0.0
    %921 = vmatprep.subr.mxu0 0.0
    %922 = vmatpush1.xpose.msra.mxu0 0.0
    %923 = vmatprep.mubr.f32.mxu0 0.0
    %924 = vmatmul.mubr.f32.gmra.mrb[0].mxu0 %v854
    %v925 = vpop.f32.mrb[0].mxu0
    %v926 = vadd.f32 0.0, %v925
    %v927 = vpop.f32.mrb[0].mxu0
    %928 = vdwg.mxu0
    %v930 = vsel %vm624, %v320, 0
    %v933 = vsel %vm624, %v448, 0
    %935 = vmatprep.subr.mxu0 0.0
    %936 = vmatpush1.xpose.msra.mxu0 %v933
    %937 = vmatprep.subr.mxu0 0.0
    %938 = vmatpush1.xpose.msra.mxu0 0.0
    %939 = vmatprep.subr.mxu0 0.0
    %940 = vmatpush1.xpose.msra.mxu0 0.0
    %941 = vmatprep.subr.mxu0 0.0
    %942 = vmatpush1.xpose.msra.mxu0 0.0
    %943 = vmatprep.subr.mxu0 0.0
    %944 = vmatpush1.xpose.msra.mxu0 0.0
    %945 = vmatprep.subr.mxu0 0.0
    %946 = vmatpush1.xpose.msra.mxu0 0.0
    %947 = vmatprep.subr.mxu0 0.0
    %948 = vmatpush1.xpose.msra.mxu0 0.0
    %949 = vmatprep.subr.mxu0 0.0
    %950 = vmatpush1.xpose.msra.mxu0 0.0
    %951 = vmatprep.subr.mxu0 0.0
    %952 = vmatpush1.xpose.msra.mxu0 0.0
    %953 = vmatprep.subr.mxu0 0.0
    %954 = vmatpush1.xpose.msra.mxu0 0.0
    %955 = vmatprep.subr.mxu0 0.0
    %956 = vmatpush1.xpose.msra.mxu0 0.0
    %957 = vmatprep.subr.mxu0 0.0
    %958 = vmatpush1.xpose.msra.mxu0 0.0
    %959 = vmatprep.subr.mxu0 0.0
    %960 = vmatpush1.xpose.msra.mxu0 0.0
    %961 = vmatprep.subr.mxu0 0.0
    %962 = vmatpush1.xpose.msra.mxu0 0.0
    %963 = vmatprep.subr.mxu0 0.0
    %964 = vmatpush1.xpose.msra.mxu0 0.0
    %965 = vmatprep.subr.mxu0 0.0
    %966 = vmatpush1.xpose.msra.mxu0 0.0
    %967 = vmatprep.subr.mxu0 0.0
    %968 = vmatpush1.xpose.msra.mxu0 0.0
    %969 = vmatprep.subr.mxu0 0.0
    %970 = vmatpush1.xpose.msra.mxu0 0.0
    %971 = vmatprep.subr.mxu0 0.0
    %972 = vmatpush1.xpose.msra.mxu0 0.0
    %973 = vmatprep.subr.mxu0 0.0
    %974 = vmatpush1.xpose.msra.mxu0 0.0
    %975 = vmatprep.subr.mxu0 0.0
    %976 = vmatpush1.xpose.msra.mxu0 0.0
    %977 = vmatprep.subr.mxu0 0.0
    %978 = vmatpush1.xpose.msra.mxu0 0.0
    %979 = vmatprep.subr.mxu0 0.0
    %980 = vmatpush1.xpose.msra.mxu0 0.0
    %981 = vmatprep.subr.mxu0 0.0
    %982 = vmatpush1.xpose.msra.mxu0 0.0
    %983 = vmatprep.subr.mxu0 0.0
    %984 = vmatpush1.xpose.msra.mxu0 0.0
    %985 = vmatprep.subr.mxu0 0.0
    %986 = vmatpush1.xpose.msra.mxu0 0.0
    %987 = vmatprep.subr.mxu0 0.0
    %988 = vmatpush1.xpose.msra.mxu0 0.0
    %989 = vmatprep.subr.mxu0 0.0
    %990 = vmatpush1.xpose.msra.mxu0 0.0
    %991 = vmatprep.subr.mxu0 0.0
    %992 = vmatpush1.xpose.msra.mxu0 0.0
    %993 = vmatprep.subr.mxu0 0.0
    %994 = vmatpush1.xpose.msra.mxu0 0.0
    %995 = vmatprep.subr.mxu0 0.0
    %996 = vmatpush1.xpose.msra.mxu0 0.0
    %997 = vmatprep.subr.mxu0 0.0
    %998 = vmatpush1.xpose.msra.mxu0 0.0
    %999 = vmatprep.mubr.f32.mxu0 0.0
    %1000 = vmatmul.mubr.f32.gmra.mrb[0].mxu0 %v930
    %v1001 = vpop.f32.mrb[0].mxu0
    %v1002 = vadd.f32 0.0, %v1001
    %v1003 = vpop.f32.mrb[0].mxu0
    %1004 = vdwg.mxu0
    %v1006 = vsel %vm624, %v321, 0
    %v1009 = vsel %vm624, %v449, 0
    %1011 = vmatprep.subr.mxu0 0.0
    %1012 = vmatpush1.xpose.msra.mxu0 %v1009
    %1013 = vmatprep.subr.mxu0 0.0
    %1014 = vmatpush1.xpose.msra.mxu0 0.0
    %1015 = vmatprep.subr.mxu0 0.0
    %1016 = vmatpush1.xpose.msra.mxu0 0.0
    %1017 = vmatprep.subr.mxu0 0.0
    %1018 = vmatpush1.xpose.msra.mxu0 0.0
    %1019 = vmatprep.subr.mxu0 0.0
    %1020 = vmatpush1.xpose.msra.mxu0 0.0
    %1021 = vmatprep.subr.mxu0 0.0
    %1022 = vmatpush1.xpose.msra.mxu0 0.0
    %1023 = vmatprep.subr.mxu0 0.0
    %1024 = vmatpush1.xpose.msra.mxu0 0.0
    %1025 = vmatprep.subr.mxu0 0.0
    %1026 = vmatpush1.xpose.msra.mxu0 0.0
    %1027 = vmatprep.subr.mxu0 0.0
    %1028 = vmatpush1.xpose.msra.mxu0 0.0
    %1029 = vmatprep.subr.mxu0 0.0
    %1030 = vmatpush1.xpose.msra.mxu0 0.0
    %1031 = vmatprep.subr.mxu0 0.0
    %1032 = vmatpush1.xpose.msra.mxu0 0.0
    %1033 = vmatprep.subr.mxu0 0.0
    %1034 = vmatpush1.xpose.msra.mxu0 0.0
    %1035 = vmatprep.subr.mxu0 0.0
    %1036 = vmatpush1.xpose.msra.mxu0 0.0
    %1037 = vmatprep.subr.mxu0 0.0
    %1038 = vmatpush1.xpose.msra.mxu0 0.0
    %1039 = vmatprep.subr.mxu0 0.0
    %1040 = vmatpush1.xpose.msra.mxu0 0.0
    %1041 = vmatprep.subr.mxu0 0.0
    %1042 = vmatpush1.xpose.msra.mxu0 0.0
    %1043 = vmatprep.subr.mxu0 0.0
    %1044 = vmatpush1.xpose.msra.mxu0 0.0
    %1045 = vmatprep.subr.mxu0 0.0
    %1046 = vmatpush1.xpose.msra.mxu0 0.0
    %1047 = vmatprep.subr.mxu0 0.0
    %1048 = vmatpush1.xpose.msra.mxu0 0.0
    %1049 = vmatprep.subr.mxu0 0.0
    %1050 = vmatpush1.xpose.msra.mxu0 0.0
    %1051 = vmatprep.subr.mxu0 0.0
    %1052 = vmatpush1.xpose.msra.mxu0 0.0
    %1053 = vmatprep.subr.mxu0 0.0
    %1054 = vmatpush1.xpose.msra.mxu0 0.0
    %1055 = vmatprep.subr.mxu0 0.0
    %1056 = vmatpush1.xpose.msra.mxu0 0.0
    %1057 = vmatprep.subr.mxu0 0.0
    %1058 = vmatpush1.xpose.msra.mxu0 0.0
    %1059 = vmatprep.subr.mxu0 0.0
    %1060 = vmatpush1.xpose.msra.mxu0 0.0
    %1061 = vmatprep.subr.mxu0 0.0
    %1062 = vmatpush1.xpose.msra.mxu0 0.0
    %1063 = vmatprep.subr.mxu0 0.0
    %1064 = vmatpush1.xpose.msra.mxu0 0.0
    %1065 = vmatprep.subr.mxu0 0.0
    %1066 = vmatpush1.xpose.msra.mxu0 0.0
    %1067 = vmatprep.subr.mxu0 0.0
    %1068 = vmatpush1.xpose.msra.mxu0 0.0
    %1069 = vmatprep.subr.mxu0 0.0
    %1070 = vmatpush1.xpose.msra.mxu0 0.0
    %1071 = vmatprep.subr.mxu0 0.0
    %1072 = vmatpush1.xpose.msra.mxu0 0.0
    %1073 = vmatprep.subr.mxu0 0.0
    %1074 = vmatpush1.xpose.msra.mxu0 0.0
    %1075 = vmatprep.mubr.f32.mxu0 0.0
    %1076 = vmatmul.mubr.f32.gmra.mrb[0].mxu0 %v1006
    %v1077 = vpop.f32.mrb[0].mxu0
    %v1078 = vadd.f32 0.0, %v1077
    %v1079 = vpop.f32.mrb[0].mxu0
    %1080 = vdwg.mxu0
    %v1082 = vsel %vm624, %v352, 0
    %v1085 = vsel %vm624, %v480, 0
    %1087 = vmatprep.subr.mxu0 0.0
    %1088 = vmatpush1.xpose.msra.mxu0 %v1085
    %1089 = vmatprep.subr.mxu0 0.0
    %1090 = vmatpush1.xpose.msra.mxu0 0.0
    %1091 = vmatprep.subr.mxu0 0.0
    %1092 = vmatpush1.xpose.msra.mxu0 0.0
    %1093 = vmatprep.subr.mxu0 0.0
    %1094 = vmatpush1.xpose.msra.mxu0 0.0
    %1095 = vmatprep.subr.mxu0 0.0
    %1096 = vmatpush1.xpose.msra.mxu0 0.0
    %1097 = vmatprep.subr.mxu0 0.0
    %1098 = vmatpush1.xpose.msra.mxu0 0.0
    %1099 = vmatprep.subr.mxu0 0.0
    %1100 = vmatpush1.xpose.msra.mxu0 0.0
    %1101 = vmatprep.subr.mxu0 0.0
    %1102 = vmatpush1.xpose.msra.mxu0 0.0
    %1103 = vmatprep.subr.mxu0 0.0
    %1104 = vmatpush1.xpose.msra.mxu0 0.0
    %1105 = vmatprep.subr.mxu0 0.0
    %1106 = vmatpush1.xpose.msra.mxu0 0.0
    %1107 = vmatprep.subr.mxu0 0.0
    %1108 = vmatpush1.xpose.msra.mxu0 0.0
    %1109 = vmatprep.subr.mxu0 0.0
    %1110 = vmatpush1.xpose.msra.mxu0 0.0
    %1111 = vmatprep.subr.mxu0 0.0
    %1112 = vmatpush1.xpose.msra.mxu0 0.0
    %1113 = vmatprep.subr.mxu0 0.0
    %1114 = vmatpush1.xpose.msra.mxu0 0.0
    %1115 = vmatprep.subr.mxu0 0.0
    %1116 = vmatpush1.xpose.msra.mxu0 0.0
    %1117 = vmatprep.subr.mxu0 0.0
    %1118 = vmatpush1.xpose.msra.mxu0 0.0
    %1119 = vmatprep.subr.mxu0 0.0
    %1120 = vmatpush1.xpose.msra.mxu0 0.0
    %1121 = vmatprep.subr.mxu0 0.0
    %1122 = vmatpush1.xpose.msra.mxu0 0.0
    %1123 = vmatprep.subr.mxu0 0.0
    %1124 = vmatpush1.xpose.msra.mxu0 0.0
    %1125 = vmatprep.subr.mxu0 0.0
    %1126 = vmatpush1.xpose.msra.mxu0 0.0
    %1127 = vmatprep.subr.mxu0 0.0
    %1128 = vmatpush1.xpose.msra.mxu0 0.0
    %1129 = vmatprep.subr.mxu0 0.0
    %1130 = vmatpush1.xpose.msra.mxu0 0.0
    %1131 = vmatprep.subr.mxu0 0.0
    %1132 = vmatpush1.xpose.msra.mxu0 0.0
    %1133 = vmatprep.subr.mxu0 0.0
    %1134 = vmatpush1.xpose.msra.mxu0 0.0
    %1135 = vmatprep.subr.mxu0 0.0
    %1136 = vmatpush1.xpose.msra.mxu0 0.0
    %1137 = vmatprep.subr.mxu0 0.0
    %1138 = vmatpush1.xpose.msra.mxu0 0.0
    %1139 = vmatprep.subr.mxu0 0.0
    %1140 = vmatpush1.xpose.msra.mxu0 0.0
    %1141 = vmatprep.subr.mxu0 0.0
    %1142 = vmatpush1.xpose.msra.mxu0 0.0
    %1143 = vmatprep.subr.mxu0 0.0
    %1144 = vmatpush1.xpose.msra.mxu0 0.0
    %1145 = vmatprep.subr.mxu0 0.0
    %1146 = vmatpush1.xpose.msra.mxu0 0.0
    %1147 = vmatprep.subr.mxu0 0.0
    %1148 = vmatpush1.xpose.msra.mxu0 0.0
    %1149 = vmatprep.subr.mxu0 0.0
    %1150 = vmatpush1.xpose.msra.mxu0 0.0
    %1151 = vmatprep.mubr.f32.mxu0 0.0
    %1152 = vmatmul.mubr.f32.gmra.mrb[0].mxu0 %v1082
    %v1153 = vpop.f32.mrb[0].mxu0
    %v1154 = vadd.f32 0.0, %v1153
    %v1155 = vpop.f32.mrb[0].mxu0
    %1156 = vdwg.mxu0
    %v1158 = vsel %vm624, %v353, 0
    %v1161 = vsel %vm624, %v481, 0
    %1163 = vmatprep.subr.mxu0 0.0
    %1164 = vmatpush1.xpose.msra.mxu0 %v1161
    %1165 = vmatprep.subr.mxu0 0.0
    %1166 = vmatpush1.xpose.msra.mxu0 0.0
    %1167 = vmatprep.subr.mxu0 0.0
    %1168 = vmatpush1.xpose.msra.mxu0 0.0
    %1169 = vmatprep.subr.mxu0 0.0
    %1170 = vmatpush1.xpose.msra.mxu0 0.0
    %1171 = vmatprep.subr.mxu0 0.0
    %1172 = vmatpush1.xpose.msra.mxu0 0.0
    %1173 = vmatprep.subr.mxu0 0.0
    %1174 = vmatpush1.xpose.msra.mxu0 0.0
    %1175 = vmatprep.subr.mxu0 0.0
    %1176 = vmatpush1.xpose.msra.mxu0 0.0
    %1177 = vmatprep.subr.mxu0 0.0
    %1178 = vmatpush1.xpose.msra.mxu0 0.0
    %1179 = vmatprep.subr.mxu0 0.0
    %1180 = vmatpush1.xpose.msra.mxu0 0.0
    %1181 = vmatprep.subr.mxu0 0.0
    %1182 = vmatpush1.xpose.msra.mxu0 0.0
    %1183 = vmatprep.subr.mxu0 0.0
    %1184 = vmatpush1.xpose.msra.mxu0 0.0
    %1185 = vmatprep.subr.mxu0 0.0
    %1186 = vmatpush1.xpose.msra.mxu0 0.0
    %1187 = vmatprep.subr.mxu0 0.0
    %1188 = vmatpush1.xpose.msra.mxu0 0.0
    %1189 = vmatprep.subr.mxu0 0.0
    %1190 = vmatpush1.xpose.msra.mxu0 0.0
    %1191 = vmatprep.subr.mxu0 0.0
    %1192 = vmatpush1.xpose.msra.mxu0 0.0
    %1193 = vmatprep.subr.mxu0 0.0
    %1194 = vmatpush1.xpose.msra.mxu0 0.0
    %1195 = vmatprep.subr.mxu0 0.0
    %1196 = vmatpush1.xpose.msra.mxu0 0.0
    %1197 = vmatprep.subr.mxu0 0.0
    %1198 = vmatpush1.xpose.msra.mxu0 0.0
    %1199 = vmatprep.subr.mxu0 0.0
    %1200 = vmatpush1.xpose.msra.mxu0 0.0
    %1201 = vmatprep.subr.mxu0 0.0
    %1202 = vmatpush1.xpose.msra.mxu0 0.0
    %1203 = vmatprep.subr.mxu0 0.0
    %1204 = vmatpush1.xpose.msra.mxu0 0.0
    %1205 = vmatprep.subr.mxu0 0.0
    %1206 = vmatpush1.xpose.msra.mxu0 0.0
    %1207 = vmatprep.subr.mxu0 0.0
    %1208 = vmatpush1.xpose.msra.mxu0 0.0
    %1209 = vmatprep.subr.mxu0 0.0
    %1210 = vmatpush1.xpose.msra.mxu0 0.0
    %1211 = vmatprep.subr.mxu0 0.0
    %1212 = vmatpush1.xpose.msra.mxu0 0.0
    %1213 = vmatprep.subr.mxu0 0.0
    %1214 = vmatpush1.xpose.msra.mxu0 0.0
    %1215 = vmatprep.subr.mxu0 0.0
    %1216 = vmatpush1.xpose.msra.mxu0 0.0
    %1217 = vmatprep.subr.mxu0 0.0
    %1218 = vmatpush1.xpose.msra.mxu0 0.0
    %1219 = vmatprep.subr.mxu0 0.0
    %1220 = vmatpush1.xpose.msra.mxu0 0.0
    %1221 = vmatprep.subr.mxu0 0.0
    %1222 = vmatpush1.xpose.msra.mxu0 0.0
    %1223 = vmatprep.subr.mxu0 0.0
    %1224 = vmatpush1.xpose.msra.mxu0 0.0
    %1225 = vmatprep.subr.mxu0 0.0
    %1226 = vmatpush1.xpose.msra.mxu0 0.0
    %1227 = vmatprep.mubr.f32.mxu0 0.0
    %1228 = vmatmul.mubr.f32.gmra.mrb[0].mxu0 %v1158
    %v1229 = vpop.f32.mrb[0].mxu0
    %v1230 = vadd.f32 0.0, %v1229
    %v1231 = vpop.f32.mrb[0].mxu0
    %1232 = vdwg.mxu0
    %v1233 = vmul.f32 %v698, 0.35355338
    %v1234 = vmul.f32 %v774, 0.35355338
    %v1235 = vmul.f32 %v850, 0.35355338
    %v1236 = vmul.f32 %v926, 0.35355338
    %v1237 = vmul.f32 %v1002, 0.35355338
    %v1238 = vmul.f32 %v1078, 0.35355338
    %v1239 = vmul.f32 %v1154, 0.35355338
    %v1240 = vmul.f32 %v1230, 0.35355338
    %v1241 = vadd.f32 %v1233, %v70
    %v1242 = vadd.f32 %v1234, %v71
    %v1243 = vadd.f32 %v1235, %v70
    %v1244 = vadd.f32 %v1236, %v71
    %v1245 = vadd.f32 %v1237, %v70
    %v1246 = vadd.f32 %v1238, %v71
    %v1247 = vadd.f32 %v1239, %v70
    %v1248 = vadd.f32 %v1240, %v71
    %v1249 = vsel %vm624, %v1241, -inf
    %1250 = vmax.xlane.f32.xlu0 %v1249
    %v1251 = vpop.xlane.xlu0 %1250
    %v1252 = vsel %vm624, %v1242, -inf
    %1253 = vmax.xlane.f32.xlu0 %v1252
    %v1254 = vpop.xlane.xlu0 %1253
    %v1255 = vsel %vm624, %v1243, -inf
    %1256 = vmax.xlane.f32.xlu0 %v1255
    %v1257 = vpop.xlane.xlu0 %1256
    %v1258 = vsel %vm624, %v1244, -inf
    %1259 = vmax.xlane.f32.xlu0 %v1258
    %v1260 = vpop.xlane.xlu0 %1259
    %v1261 = vsel %vm624, %v1245, -inf
    %1262 = vmax.xlane.f32.xlu0 %v1261
    %v1263 = vpop.xlane.xlu0 %1262
    %v1264 = vsel %vm624, %v1246, -inf
    %1265 = vmax.xlane.f32.xlu0 %v1264
    %v1266 = vpop.xlane.xlu0 %1265
    %v1267 = vsel %vm624, %v1247, -inf
    %1268 = vmax.xlane.f32.xlu0 %v1267
    %v1269 = vpop.xlane.xlu0 %1268
    %v1270 = vsel %vm624, %v1248, -inf
    %1271 = vmax.xlane.f32.xlu0 %v1270
    %v1272 = vpop.xlane.xlu0 %1271
    %v1273 = vsub.f32 %v1241, %v1251
    %v1274 = vsub.f32 %v1242, %v1254
    %v1275 = vsub.f32 %v1243, %v1257
    %v1276 = vsub.f32 %v1244, %v1260
    %v1277 = vsub.f32 %v1245, %v1263
    %v1278 = vsub.f32 %v1246, %v1266
    %v1279 = vsub.f32 %v1247, %v1269
    %v1280 = vsub.f32 %v1248, %v1272
    %v1281 = vmul.f32 %v1273, 1.442695
    %v1282 = vpow.pop %v1281
    %v1283 = vmul.f32 %v1274, 1.442695
    %v1284 = vpow.pop %v1283
    %v1285 = vmul.f32 %v1275, 1.442695
    %v1286 = vpow.pop %v1285
    %v1287 = vmul.f32 %v1276, 1.442695
    %v1288 = vpow.pop %v1287
    %v1289 = vmul.f32 %v1277, 1.442695
    %v1290 = vpow.pop %v1289
    %v1291 = vmul.f32 %v1278, 1.442695
    %v1292 = vpow.pop %v1291
    %v1293 = vmul.f32 %v1279, 1.442695
    %v1294 = vpow.pop %v1293
    %v1295 = vmul.f32 %v1280, 1.442695
    %v1296 = vpow.pop %v1295
    %v1297 = vsel %vm624, %v1282, 0.0
    %1298 = vadd.xlane.f32.xlu0 %v1297
    %v1299 = vpop.xlane.xlu0 %1298
    %v1300 = vsel %vm624, %v1284, 0.0
    %1301 = vadd.xlane.f32.xlu0 %v1300
    %v1302 = vpop.xlane.xlu0 %1301
    %v1303 = vsel %vm624, %v1286, 0.0
    %1304 = vadd.xlane.f32.xlu0 %v1303
    %v1305 = vpop.xlane.xlu0 %1304
    %v1306 = vsel %vm624, %v1288, 0.0
    %1307 = vadd.xlane.f32.xlu0 %v1306
    %v1308 = vpop.xlane.xlu0 %1307
    %v1309 = vsel %vm624, %v1290, 0.0
    %1310 = vadd.xlane.f32.xlu0 %v1309
    %v1311 = vpop.xlane.xlu0 %1310
    %v1312 = vsel %vm624, %v1292, 0.0
    %1313 = vadd.xlane.f32.xlu0 %v1312
    %v1314 = vpop.xlane.xlu0 %1313
    %v1315 = vsel %vm624, %v1294, 0.0
    %1316 = vadd.xlane.f32.xlu0 %v1315
    %v1317 = vpop.xlane.xlu0 %1316
    %v1318 = vsel %vm624, %v1296, 0.0
    %1319 = vadd.xlane.f32.xlu0 %v1318
    %v1320 = vpop.xlane.xlu0 %1319
    %v1321 = vrcp.pop %v1299
    %v1322 = vrcp.pop %v1302
    %v1323 = vrcp.pop %v1305
    %v1324 = vrcp.pop %v1308
    %v1325 = vrcp.pop %v1311
    %v1326 = vrcp.pop %v1314
    %v1327 = vrcp.pop %v1317
    %v1328 = vrcp.pop %v1320
    %v1329 = vmul.f32 %v1282, %v1321
    %v1330 = vmul.f32 %v1284, %v1322
    %v1331 = vmul.f32 %v1286, %v1323
    %v1332 = vmul.f32 %v1288, %v1324
    %v1333 = vmul.f32 %v1290, %v1325
    %v1334 = vmul.f32 %v1292, %v1326
    %v1335 = vmul.f32 %v1294, %v1327
    %v1336 = vmul.f32 %v1296, %v1328
    %v1338 = vsel %vm624, %v1329, 0
    %1340 = vmatprep.subr.mxu0 0.0
    %1341 = vmatpush1.msra.mxu0 %v512
    %1342 = vmatprep.subr.mxu0 0.0
    %1343 = vmatpush1.msra.mxu0 0.0
    %1344 = vmatprep.subr.mxu0 0.0
    %1345 = vmatpush1.msra.mxu0 0.0
    %1346 = vmatprep.subr.mxu0 0.0
    %1347 = vmatpush1.msra.mxu0 0.0
    %1348 = vmatprep.subr.mxu0 0.0
    %1349 = vmatpush1.msra.mxu0 0.0
    %1350 = vmatprep.subr.mxu0 0.0
    %1351 = vmatpush1.msra.mxu0 0.0
    %1352 = vmatprep.subr.mxu0 0.0
    %1353 = vmatpush1.msra.mxu0 0.0
    %1354 = vmatprep.subr.mxu0 0.0
    %1355 = vmatpush1.msra.mxu0 0.0
    %1356 = vmatprep.subr.mxu0 0.0
    %1357 = vmatpush1.msra.mxu0 0.0
    %1358 = vmatprep.subr.mxu0 0.0
    %1359 = vmatpush1.msra.mxu0 0.0
    %1360 = vmatprep.subr.mxu0 0.0
    %1361 = vmatpush1.msra.mxu0 0.0
    %1362 = vmatprep.subr.mxu0 0.0
    %1363 = vmatpush1.msra.mxu0 0.0
    %1364 = vmatprep.subr.mxu0 0.0
    %1365 = vmatpush1.msra.mxu0 0.0
    %1366 = vmatprep.subr.mxu0 0.0
    %1367 = vmatpush1.msra.mxu0 0.0
    %1368 = vmatprep.subr.mxu0 0.0
    %1369 = vmatpush1.msra.mxu0 0.0
    %1370 = vmatprep.subr.mxu0 0.0
    %1371 = vmatpush1.msra.mxu0 0.0
    %1372 = vmatprep.subr.mxu0 0.0
    %1373 = vmatpush1.msra.mxu0 0.0
    %1374 = vmatprep.subr.mxu0 0.0
    %1375 = vmatpush1.msra.mxu0 0.0
    %1376 = vmatprep.subr.mxu0 0.0
    %1377 = vmatpush1.msra.mxu0 0.0
    %1378 = vmatprep.subr.mxu0 0.0
    %1379 = vmatpush1.msra.mxu0 0.0
    %1380 = vmatprep.subr.mxu0 0.0
    %1381 = vmatpush1.msra.mxu0 0.0
    %1382 = vmatprep.subr.mxu0 0.0
    %1383 = vmatpush1.msra.mxu0 0.0
    %1384 = vmatprep.subr.mxu0 0.0
    %1385 = vmatpush1.msra.mxu0 0.0
    %1386 = vmatprep.subr.mxu0 0.0
    %1387 = vmatpush1.msra.mxu0 0.0
    %1388 = vmatprep.subr.mxu0 0.0
    %1389 = vmatpush1.msra.mxu0 0.0
    %1390 = vmatprep.subr.mxu0 0.0
    %1391 = vmatpush1.msra.mxu0 0.0
    %1392 = vmatprep.subr.mxu0 0.0
    %1393 = vmatpush1.msra.mxu0 0.0
    %1394 = vmatprep.subr.mxu0 0.0
    %1395 = vmatpush1.msra.mxu0 0.0
    %1396 = vmatprep.subr.mxu0 0.0
    %1397 = vmatpush1.msra.mxu0 0.0
    %1398 = vmatprep.subr.mxu0 0.0
    %1399 = vmatpush1.msra.mxu0 0.0
    %1400 = vmatprep.subr.mxu0 0.0
    %1401 = vmatpush1.msra.mxu0 0.0
    %1402 = vmatprep.subr.mxu0 0.0
    %1403 = vmatpush1.msra.mxu0 0.0
    %1404 = vmatprep.mubr.f32.mxu0 0.0
    %1405 = vmatmul.mubr.f32.gmra.mrb[0].mxu0 %v1338
    %v1406 = vpop.f32.mrb[0].mxu0
    %v1407 = vadd.f32 0.0, %v1406
    %v1408 = vpop.f32.mrb[0].mxu0
    %1409 = vdwg.mxu0
    %v1411 = vsel %vm624, %v1330, 0
    %1413 = vmatprep.subr.mxu0 0.0
    %1414 = vmatpush1.msra.mxu0 %v513
    %1415 = vmatprep.subr.mxu0 0.0
    %1416 = vmatpush1.msra.mxu0 0.0
    %1417 = vmatprep.subr.mxu0 0.0
    %1418 = vmatpush1.msra.mxu0 0.0
    %1419 = vmatprep.subr.mxu0 0.0
    %1420 = vmatpush1.msra.mxu0 0.0
    %1421 = vmatprep.subr.mxu0 0.0
    %1422 = vmatpush1.msra.mxu0 0.0
    %1423 = vmatprep.subr.mxu0 0.0
    %1424 = vmatpush1.msra.mxu0 0.0
    %1425 = vmatprep.subr.mxu0 0.0
    %1426 = vmatpush1.msra.mxu0 0.0
    %1427 = vmatprep.subr.mxu0 0.0
    %1428 = vmatpush1.msra.mxu0 0.0
    %1429 = vmatprep.subr.mxu0 0.0
    %1430 = vmatpush1.msra.mxu0 0.0
    %1431 = vmatprep.subr.mxu0 0.0
    %1432 = vmatpush1.msra.mxu0 0.0
    %1433 = vmatprep.subr.mxu0 0.0
    %1434 = vmatpush1.msra.mxu0 0.0
    %1435 = vmatprep.subr.mxu0 0.0
    %1436 = vmatpush1.msra.mxu0 0.0
    %1437 = vmatprep.subr.mxu0 0.0
    %1438 = vmatpush1.msra.mxu0 0.0
    %1439 = vmatprep.subr.mxu0 0.0
    %1440 = vmatpush1.msra.mxu0 0.0
    %1441 = vmatprep.subr.mxu0 0.0
    %1442 = vmatpush1.msra.mxu0 0.0
    %1443 = vmatprep.subr.mxu0 0.0
    %1444 = vmatpush1.msra.mxu0 0.0
    %1445 = vmatprep.subr.mxu0 0.0
    %1446 = vmatpush1.msra.mxu0 0.0
    %1447 = vmatprep.subr.mxu0 0.0
    %1448 = vmatpush1.msra.mxu0 0.0
    %1449 = vmatprep.subr.mxu0 0.0
    %1450 = vmatpush1.msra.mxu0 0.0
    %1451 = vmatprep.subr.mxu0 0.0
    %1452 = vmatpush1.msra.mxu0 0.0
    %1453 = vmatprep.subr.mxu0 0.0
    %1454 = vmatpush1.msra.mxu0 0.0
    %1455 = vmatprep.subr.mxu0 0.0
    %1456 = vmatpush1.msra.mxu0 0.0
    %1457 = vmatprep.subr.mxu0 0.0
    %1458 = vmatpush1.msra.mxu0 0.0
    %1459 = vmatprep.subr.mxu0 0.0
    %1460 = vmatpush1.msra.mxu0 0.0
    %1461 = vmatprep.subr.mxu0 0.0
    %1462 = vmatpush1.msra.mxu0 0.0
    %1463 = vmatprep.subr.mxu0 0.0
    %1464 = vmatpush1.msra.mxu0 0.0
    %1465 = vmatprep.subr.mxu0 0.0
    %1466 = vmatpush1.msra.mxu0 0.0
    %1467 = vmatprep.subr.mxu0 0.0
    %1468 = vmatpush1.msra.mxu0 0.0
    %1469 = vmatprep.subr.mxu0 0.0
    %1470 = vmatpush1.msra.mxu0 0.0
    %1471 = vmatprep.subr.mxu0 0.0
    %1472 = vmatpush1.msra.mxu0 0.0
    %1473 = vmatprep.subr.mxu0 0.0
    %1474 = vmatpush1.msra.mxu0 0.0
    %1475 = vmatprep.subr.mxu0 0.0
    %1476 = vmatpush1.msra.mxu0 0.0
    %1477 = vmatprep.mubr.f32.mxu0 0.0
    %1478 = vmatmul.mubr.f32.gmra.mrb[0].mxu0 %v1411
    %v1479 = vpop.f32.mrb[0].mxu0
    %v1480 = vadd.f32 0.0, %v1479
    %v1481 = vpop.f32.mrb[0].mxu0
    %1482 = vdwg.mxu0
    %v1484 = vsel %vm624, %v1331, 0
    %1486 = vmatprep.subr.mxu0 0.0
    %1487 = vmatpush1.msra.mxu0 %v544
    %1488 = vmatprep.subr.mxu0 0.0
    %1489 = vmatpush1.msra.mxu0 0.0
    %1490 = vmatprep.subr.mxu0 0.0
    %1491 = vmatpush1.msra.mxu0 0.0
    %1492 = vmatprep.subr.mxu0 0.0
    %1493 = vmatpush1.msra.mxu0 0.0
    %1494 = vmatprep.subr.mxu0 0.0
    %1495 = vmatpush1.msra.mxu0 0.0
    %1496 = vmatprep.subr.mxu0 0.0
    %1497 = vmatpush1.msra.mxu0 0.0
    %1498 = vmatprep.subr.mxu0 0.0
    %1499 = vmatpush1.msra.mxu0 0.0
    %1500 = vmatprep.subr.mxu0 0.0
    %1501 = vmatpush1.msra.mxu0 0.0
    %1502 = vmatprep.subr.mxu0 0.0
    %1503 = vmatpush1.msra.mxu0 0.0
    %1504 = vmatprep.subr.mxu0 0.0
    %1505 = vmatpush1.msra.mxu0 0.0
    %1506 = vmatprep.subr.mxu0 0.0
    %1507 = vmatpush1.msra.mxu0 0.0
    %1508 = vmatprep.subr.mxu0 0.0
    %1509 = vmatpush1.msra.mxu0 0.0
    %1510 = vmatprep.subr.mxu0 0.0
    %1511 = vmatpush1.msra.mxu0 0.0
    %1512 = vmatprep.subr.mxu0 0.0
    %1513 = vmatpush1.msra.mxu0 0.0
    %1514 = vmatprep.subr.mxu0 0.0
    %1515 = vmatpush1.msra.mxu0 0.0
    %1516 = vmatprep.subr.mxu0 0.0
    %1517 = vmatpush1.msra.mxu0 0.0
    %1518 = vmatprep.subr.mxu0 0.0
    %1519 = vmatpush1.msra.mxu0 0.0
    %1520 = vmatprep.subr.mxu0 0.0
    %1521 = vmatpush1.msra.mxu0 0.0
    %1522 = vmatprep.subr.mxu0 0.0
    %1523 = vmatpush1.msra.mxu0 0.0
    %1524 = vmatprep.subr.mxu0 0.0
    %1525 = vmatpush1.msra.mxu0 0.0
    %1526 = vmatprep.subr.mxu0 0.0
    %1527 = vmatpush1.msra.mxu0 0.0
    %1528 = vmatprep.subr.mxu0 0.0
    %1529 = vmatpush1.msra.mxu0 0.0
    %1530 = vmatprep.subr.mxu0 0.0
    %1531 = vmatpush1.msra.mxu0 0.0
    %1532 = vmatprep.subr.mxu0 0.0
    %1533 = vmatpush1.msra.mxu0 0.0
    %1534 = vmatprep.subr.mxu0 0.0
    %1535 = vmatpush1.msra.mxu0 0.0
    %1536 = vmatprep.subr.mxu0 0.0
    %1537 = vmatpush1.msra.mxu0 0.0
    %1538 = vmatprep.subr.mxu0 0.0
    %1539 = vmatpush1.msra.mxu0 0.0
    %1540 = vmatprep.subr.mxu0 0.0
    %1541 = vmatpush1.msra.mxu0 0.0
    %1542 = vmatprep.subr.mxu0 0.0
    %1543 = vmatpush1.msra.mxu0 0.0
    %1544 = vmatprep.subr.mxu0 0.0
    %1545 = vmatpush1.msra.mxu0 0.0
    %1546 = vmatprep.subr.mxu0 0.0
    %1547 = vmatpush1.msra.mxu0 0.0
    %1548 = vmatprep.subr.mxu0 0.0
    %1549 = vmatpush1.msra.mxu0 0.0
    %1550 = vmatprep.mubr.f32.mxu0 0.0
    %1551 = vmatmul.mubr.f32.gmra.mrb[0].mxu0 %v1484
    %v1552 = vpop.f32.mrb[0].mxu0
    %v1553 = vadd.f32 0.0, %v1552
    %v1554 = vpop.f32.mrb[0].mxu0
    %1555 = vdwg.mxu0
    %v1557 = vsel %vm624, %v1332, 0
    %1559 = vmatprep.subr.mxu0 0.0
    %1560 = vmatpush1.msra.mxu0 %v545
    %1561 = vmatprep.subr.mxu0 0.0
    %1562 = vmatpush1.msra.mxu0 0.0
    %1563 = vmatprep.subr.mxu0 0.0
    %1564 = vmatpush1.msra.mxu0 0.0
    %1565 = vmatprep.subr.mxu0 0.0
    %1566 = vmatpush1.msra.mxu0 0.0
    %1567 = vmatprep.subr.mxu0 0.0
    %1568 = vmatpush1.msra.mxu0 0.0
    %1569 = vmatprep.subr.mxu0 0.0
    %1570 = vmatpush1.msra.mxu0 0.0
    %1571 = vmatprep.subr.mxu0 0.0
    %1572 = vmatpush1.msra.mxu0 0.0
    %1573 = vmatprep.subr.mxu0 0.0
    %1574 = vmatpush1.msra.mxu0 0.0
    %1575 = vmatprep.subr.mxu0 0.0
    %1576 = vmatpush1.msra.mxu0 0.0
    %1577 = vmatprep.subr.mxu0 0.0
    %1578 = vmatpush1.msra.mxu0 0.0
    %1579 = vmatprep.subr.mxu0 0.0
    %1580 = vmatpush1.msra.mxu0 0.0
    %1581 = vmatprep.subr.mxu0 0.0
    %1582 = vmatpush1.msra.mxu0 0.0
    %1583 = vmatprep.subr.mxu0 0.0
    %1584 = vmatpush1.msra.mxu0 0.0
    %1585 = vmatprep.subr.mxu0 0.0
    %1586 = vmatpush1.msra.mxu0 0.0
    %1587 = vmatprep.subr.mxu0 0.0
    %1588 = vmatpush1.msra.mxu0 0.0
    %1589 = vmatprep.subr.mxu0 0.0
    %1590 = vmatpush1.msra.mxu0 0.0
    %1591 = vmatprep.subr.mxu0 0.0
    %1592 = vmatpush1.msra.mxu0 0.0
    %1593 = vmatprep.subr.mxu0 0.0
    %1594 = vmatpush1.msra.mxu0 0.0
    %1595 = vmatprep.subr.mxu0 0.0
    %1596 = vmatpush1.msra.mxu0 0.0
    %1597 = vmatprep.subr.mxu0 0.0
    %1598 = vmatpush1.msra.mxu0 0.0
    %1599 = vmatprep.subr.mxu0 0.0
    %1600 = vmatpush1.msra.mxu0 0.0
    %1601 = vmatprep.subr.mxu0 0.0
    %1602 = vmatpush1.msra.mxu0 0.0
    %1603 = vmatprep.subr.mxu0 0.0
    %1604 = vmatpush1.msra.mxu0 0.0
    %1605 = vmatprep.subr.mxu0 0.0
    %1606 = vmatpush1.msra.mxu0 0.0
    %1607 = vmatprep.subr.mxu0 0.0
    %1608 = vmatpush1.msra.mxu0 0.0
    %1609 = vmatprep.subr.mxu0 0.0
    %1610 = vmatpush1.msra.mxu0 0.0
    %1611 = vmatprep.subr.mxu0 0.0
    %1612 = vmatpush1.msra.mxu0 0.0
    %1613 = vmatprep.subr.mxu0 0.0
    %1614 = vmatpush1.msra.mxu0 0.0
    %1615 = vmatprep.subr.mxu0 0.0
    %1616 = vmatpush1.msra.mxu0 0.0
    %1617 = vmatprep.subr.mxu0 0.0
    %1618 = vmatpush1.msra.mxu0 0.0
    %1619 = vmatprep.subr.mxu0 0.0
    %1620 = vmatpush1.msra.mxu0 0.0
    %1621 = vmatprep.subr.mxu0 0.0
    %1622 = vmatpush1.msra.mxu0 0.0
    %1623 = vmatprep.mubr.f32.mxu0 0.0
    %1624 = vmatmul.mubr.f32.gmra.mrb[0].mxu0 %v1557
    %v1625 = vpop.f32.mrb[0].mxu0
    %v1626 = vadd.f32 0.0, %v1625
    %v1627 = vpop.f32.mrb[0].mxu0
    %1628 = vdwg.mxu0
    %v1630 = vsel %vm624, %v1333, 0
    %1632 = vmatprep.subr.mxu0 0.0
    %1633 = vmatpush1.msra.mxu0 %v576
    %1634 = vmatprep.subr.mxu0 0.0
    %1635 = vmatpush1.msra.mxu0 0.0
    %1636 = vmatprep.subr.mxu0 0.0
    %1637 = vmatpush1.msra.mxu0 0.0
    %1638 = vmatprep.subr.mxu0 0.0
    %1639 = vmatpush1.msra.mxu0 0.0
    %1640 = vmatprep.subr.mxu0 0.0
    %1641 = vmatpush1.msra.mxu0 0.0
    %1642 = vmatprep.subr.mxu0 0.0
    %1643 = vmatpush1.msra.mxu0 0.0
    %1644 = vmatprep.subr.mxu0 0.0
    %1645 = vmatpush1.msra.mxu0 0.0
    %1646 = vmatprep.subr.mxu0 0.0
    %1647 = vmatpush1.msra.mxu0 0.0
    %1648 = vmatprep.subr.mxu0 0.0
    %1649 = vmatpush1.msra.mxu0 0.0
    %1650 = vmatprep.subr.mxu0 0.0
    %1651 = vmatpush1.msra.mxu0 0.0
    %1652 = vmatprep.subr.mxu0 0.0
    %1653 = vmatpush1.msra.mxu0 0.0
    %1654 = vmatprep.subr.mxu0 0.0
    %1655 = vmatpush1.msra.mxu0 0.0
    %1656 = vmatprep.subr.mxu0 0.0
    %1657 = vmatpush1.msra.mxu0 0.0
    %1658 = vmatprep.subr.mxu0 0.0
    %1659 = vmatpush1.msra.mxu0 0.0
    %1660 = vmatprep.subr.mxu0 0.0
    %1661 = vmatpush1.msra.mxu0 0.0
    %1662 = vmatprep.subr.mxu0 0.0
    %1663 = vmatpush1.msra.mxu0 0.0
    %1664 = vmatprep.subr.mxu0 0.0
    %1665 = vmatpush1.msra.mxu0 0.0
    %1666 = vmatprep.subr.mxu0 0.0
    %1667 = vmatpush1.msra.mxu0 0.0
    %1668 = vmatprep.subr.mxu0 0.0
    %1669 = vmatpush1.msra.mxu0 0.0
    %1670 = vmatprep.subr.mxu0 0.0
    %1671 = vmatpush1.msra.mxu0 0.0
    %1672 = vmatprep.subr.mxu0 0.0
    %1673 = vmatpush1.msra.mxu0 0.0
    %1674 = vmatprep.subr.mxu0 0.0
    %1675 = vmatpush1.msra.mxu0 0.0
    %1676 = vmatprep.subr.mxu0 0.0
    %1677 = vmatpush1.msra.mxu0 0.0
    %1678 = vmatprep.subr.mxu0 0.0
    %1679 = vmatpush1.msra.mxu0 0.0
    %1680 = vmatprep.subr.mxu0 0.0
    %1681 = vmatpush1.msra.mxu0 0.0
    %1682 = vmatprep.subr.mxu0 0.0
    %1683 = vmatpush1.msra.mxu0 0.0
    %1684 = vmatprep.subr.mxu0 0.0
    %1685 = vmatpush1.msra.mxu0 0.0
    %1686 = vmatprep.subr.mxu0 0.0
    %1687 = vmatpush1.msra.mxu0 0.0
    %1688 = vmatprep.subr.mxu0 0.0
    %1689 = vmatpush1.msra.mxu0 0.0
    %1690 = vmatprep.subr.mxu0 0.0
    %1691 = vmatpush1.msra.mxu0 0.0
    %1692 = vmatprep.subr.mxu0 0.0
    %1693 = vmatpush1.msra.mxu0 0.0
    %1694 = vmatprep.subr.mxu0 0.0
    %1695 = vmatpush1.msra.mxu0 0.0
    %1696 = vmatprep.mubr.f32.mxu0 0.0
    %1697 = vmatmul.mubr.f32.gmra.mrb[0].mxu0 %v1630
    %v1698 = vpop.f32.mrb[0].mxu0
    %v1699 = vadd.f32 0.0, %v1698
    %v1700 = vpop.f32.mrb[0].mxu0
    %1701 = vdwg.mxu0
    %v1703 = vsel %vm624, %v1334, 0
    %1705 = vmatprep.subr.mxu0 0.0
    %1706 = vmatpush1.msra.mxu0 %v577
    %1707 = vmatprep.subr.mxu0 0.0
    %1708 = vmatpush1.msra.mxu0 0.0
    %1709 = vmatprep.subr.mxu0 0.0
    %1710 = vmatpush1.msra.mxu0 0.0
    %1711 = vmatprep.subr.mxu0 0.0
    %1712 = vmatpush1.msra.mxu0 0.0
    %1713 = vmatprep.subr.mxu0 0.0
    %1714 = vmatpush1.msra.mxu0 0.0
    %1715 = vmatprep.subr.mxu0 0.0
    %1716 = vmatpush1.msra.mxu0 0.0
    %1717 = vmatprep.subr.mxu0 0.0
    %1718 = vmatpush1.msra.mxu0 0.0
    %1719 = vmatprep.subr.mxu0 0.0
    %1720 = vmatpush1.msra.mxu0 0.0
    %1721 = vmatprep.subr.mxu0 0.0
    %1722 = vmatpush1.msra.mxu0 0.0
    %1723 = vmatprep.subr.mxu0 0.0
    %1724 = vmatpush1.msra.mxu0 0.0
    %1725 = vmatprep.subr.mxu0 0.0
    %1726 = vmatpush1.msra.mxu0 0.0
    %1727 = vmatprep.subr.mxu0 0.0
    %1728 = vmatpush1.msra.mxu0 0.0
    %1729 = vmatprep.subr.mxu0 0.0
    %1730 = vmatpush1.msra.mxu0 0.0
    %1731 = vmatprep.subr.mxu0 0.0
    %1732 = vmatpush1.msra.mxu0 0.0
    %1733 = vmatprep.subr.mxu0 0.0
    %1734 = vmatpush1.msra.mxu0 0.0
    %1735 = vmatprep.subr.mxu0 0.0
    %1736 = vmatpush1.msra.mxu0 0.0
    %1737 = vmatprep.subr.mxu0 0.0
    %1738 = vmatpush1.msra.mxu0 0.0
    %1739 = vmatprep.subr.mxu0 0.0
    %1740 = vmatpush1.msra.mxu0 0.0
    %1741 = vmatprep.subr.mxu0 0.0
    %1742 = vmatpush1.msra.mxu0 0.0
    %1743 = vmatprep.subr.mxu0 0.0
    %1744 = vmatpush1.msra.mxu0 0.0
    %1745 = vmatprep.subr.mxu0 0.0
    %1746 = vmatpush1.msra.mxu0 0.0
    %1747 = vmatprep.subr.mxu0 0.0
    %1748 = vmatpush1.msra.mxu0 0.0
    %1749 = vmatprep.subr.mxu0 0.0
    %1750 = vmatpush1.msra.mxu0 0.0
    %1751 = vmatprep.subr.mxu0 0.0
    %1752 = vmatpush1.msra.mxu0 0.0
    %1753 = vmatprep.subr.mxu0 0.0
    %1754 = vmatpush1.msra.mxu0 0.0
    %1755 = vmatprep.subr.mxu0 0.0
    %1756 = vmatpush1.msra.mxu0 0.0
    %1757 = vmatprep.subr.mxu0 0.0
    %1758 = vmatpush1.msra.mxu0 0.0
    %1759 = vmatprep.subr.mxu0 0.0
    %1760 = vmatpush1.msra.mxu0 0.0
    %1761 = vmatprep.subr.mxu0 0.0
    %1762 = vmatpush1.msra.mxu0 0.0
    %1763 = vmatprep.subr.mxu0 0.0
    %1764 = vmatpush1.msra.mxu0 0.0
    %1765 = vmatprep.subr.mxu0 0.0
    %1766 = vmatpush1.msra.mxu0 0.0
    %1767 = vmatprep.subr.mxu0 0.0
    %1768 = vmatpush1.msra.mxu0 0.0
    %1769 = vmatprep.mubr.f32.mxu0 0.0
    %1770 = vmatmul.mubr.f32.gmra.mrb[0].mxu0 %v1703
    %v1771 = vpop.f32.mrb[0].mxu0
    %v1772 = vadd.f32 0.0, %v1771
    %v1773 = vpop.f32.mrb[0].mxu0
    %1774 = vdwg.mxu0
    %v1776 = vsel %vm624, %v1335, 0
    %1778 = vmatprep.subr.mxu0 0.0
    %1779 = vmatpush1.msra.mxu0 %v608
    %1780 = vmatprep.subr.mxu0 0.0
    %1781 = vmatpush1.msra.mxu0 0.0
    %1782 = vmatprep.subr.mxu0 0.0
    %1783 = vmatpush1.msra.mxu0 0.0
    %1784 = vmatprep.subr.mxu0 0.0
    %1785 = vmatpush1.msra.mxu0 0.0
    %1786 = vmatprep.subr.mxu0 0.0
    %1787 = vmatpush1.msra.mxu0 0.0
    %1788 = vmatprep.subr.mxu0 0.0
    %1789 = vmatpush1.msra.mxu0 0.0
    %1790 = vmatprep.subr.mxu0 0.0
    %1791 = vmatpush1.msra.mxu0 0.0
    %1792 = vmatprep.subr.mxu0 0.0
    %1793 = vmatpush1.msra.mxu0 0.0
    %1794 = vmatprep.subr.mxu0 0.0
    %1795 = vmatpush1.msra.mxu0 0.0
    %1796 = vmatprep.subr.mxu0 0.0
    %1797 = vmatpush1.msra.mxu0 0.0
    %1798 = vmatprep.subr.mxu0 0.0
    %1799 = vmatpush1.msra.mxu0 0.0
    %1800 = vmatprep.subr.mxu0 0.0
    %1801 = vmatpush1.msra.mxu0 0.0
    %1802 = vmatprep.subr.mxu0 0.0
    %1803 = vmatpush1.msra.mxu0 0.0
    %1804 = vmatprep.subr.mxu0 0.0
    %1805 = vmatpush1.msra.mxu0 0.0
    %1806 = vmatprep.subr.mxu0 0.0
    %1807 = vmatpush1.msra.mxu0 0.0
    %1808 = vmatprep.subr.mxu0 0.0
    %1809 = vmatpush1.msra.mxu0 0.0
    %1810 = vmatprep.subr.mxu0 0.0
    %1811 = vmatpush1.msra.mxu0 0.0
    %1812 = vmatprep.subr.mxu0 0.0
    %1813 = vmatpush1.msra.mxu0 0.0
    %1814 = vmatprep.subr.mxu0 0.0
    %1815 = vmatpush1.msra.mxu0 0.0
    %1816 = vmatprep.subr.mxu0 0.0
    %1817 = vmatpush1.msra.mxu0 0.0
    %1818 = vmatprep.subr.mxu0 0.0
    %1819 = vmatpush1.msra.mxu0 0.0
    %1820 = vmatprep.subr.mxu0 0.0
    %1821 = vmatpush1.msra.mxu0 0.0
    %1822 = vmatprep.subr.mxu0 0.0
    %1823 = vmatpush1.msra.mxu0 0.0
    %1824 = vmatprep.subr.mxu0 0.0
    %1825 = vmatpush1.msra.mxu0 0.0
    %1826 = vmatprep.subr.mxu0 0.0
    %1827 = vmatpush1.msra.mxu0 0.0
    %1828 = vmatprep.subr.mxu0 0.0
    %1829 = vmatpush1.msra.mxu0 0.0
    %1830 = vmatprep.subr.mxu0 0.0
    %1831 = vmatpush1.msra.mxu0 0.0
    %1832 = vmatprep.subr.mxu0 0.0
    %1833 = vmatpush1.msra.mxu0 0.0
    %1834 = vmatprep.subr.mxu0 0.0
    %1835 = vmatpush1.msra.mxu0 0.0
    %1836 = vmatprep.subr.mxu0 0.0
    %1837 = vmatpush1.msra.mxu0 0.0
    %1838 = vmatprep.subr.mxu0 0.0
    %1839 = vmatpush1.msra.mxu0 0.0
    %1840 = vmatprep.subr.mxu0 0.0
    %1841 = vmatpush1.msra.mxu0 0.0
    %1842 = vmatprep.mubr.f32.mxu0 0.0
    %1843 = vmatmul.mubr.f32.gmra.mrb[0].mxu0 %v1776
    %v1844 = vpop.f32.mrb[0].mxu0
    %v1845 = vadd.f32 0.0, %v1844
    %v1846 = vpop.f32.mrb[0].mxu0
    %1847 = vdwg.mxu0
    %v1849 = vsel %vm624, %v1336, 0
    %1851 = vmatprep.subr.mxu0 0.0
    %1852 = vmatpush1.msra.mxu0 %v609
    %1853 = vmatprep.subr.mxu0 0.0
    %1854 = vmatpush1.msra.mxu0 0.0
    %1855 = vmatprep.subr.mxu0 0.0
    %1856 = vmatpush1.msra.mxu0 0.0
    %1857 = vmatprep.subr.mxu0 0.0
    %1858 = vmatpush1.msra.mxu0 0.0
    %1859 = vmatprep.subr.mxu0 0.0
    %1860 = vmatpush1.msra.mxu0 0.0
    %1861 = vmatprep.subr.mxu0 0.0
    %1862 = vmatpush1.msra.mxu0 0.0
    %1863 = vmatprep.subr.mxu0 0.0
    %1864 = vmatpush1.msra.mxu0 0.0
    %1865 = vmatprep.subr.mxu0 0.0
    %1866 = vmatpush1.msra.mxu0 0.0
    %1867 = vmatprep.subr.mxu0 0.0
    %1868 = vmatpush1.msra.mxu0 0.0
    %1869 = vmatprep.subr.mxu0 0.0
    %1870 = vmatpush1.msra.mxu0 0.0
    %1871 = vmatprep.subr.mxu0 0.0
    %1872 = vmatpush1.msra.mxu0 0.0
    %1873 = vmatprep.subr.mxu0 0.0
    %1874 = vmatpush1.msra.mxu0 0.0
    %1875 = vmatprep.subr.mxu0 0.0
    %1876 = vmatpush1.msra.mxu0 0.0
    %1877 = vmatprep.subr.mxu0 0.0
    %1878 = vmatpush1.msra.mxu0 0.0
    %1879 = vmatprep.subr.mxu0 0.0
    %1880 = vmatpush1.msra.mxu0 0.0
    %1881 = vmatprep.subr.mxu0 0.0
    %1882 = vmatpush1.msra.mxu0 0.0
    %1883 = vmatprep.subr.mxu0 0.0
    %1884 = vmatpush1.msra.mxu0 0.0
    %1885 = vmatprep.subr.mxu0 0.0
    %1886 = vmatpush1.msra.mxu0 0.0
    %1887 = vmatprep.subr.mxu0 0.0
    %1888 = vmatpush1.msra.mxu0 0.0
    %1889 = vmatprep.subr.mxu0 0.0
    %1890 = vmatpush1.msra.mxu0 0.0
    %1891 = vmatprep.subr.mxu0 0.0
    %1892 = vmatpush1.msra.mxu0 0.0
    %1893 = vmatprep.subr.mxu0 0.0
    %1894 = vmatpush1.msra.mxu0 0.0
    %1895 = vmatprep.subr.mxu0 0.0
    %1896 = vmatpush1.msra.mxu0 0.0
    %1897 = vmatprep.subr.mxu0 0.0
    %1898 = vmatpush1.msra.mxu0 0.0
    %1899 = vmatprep.subr.mxu0 0.0
    %1900 = vmatpush1.msra.mxu0 0.0
    %1901 = vmatprep.subr.mxu0 0.0
    %1902 = vmatpush1.msra.mxu0 0.0
    %1903 = vmatprep.subr.mxu0 0.0
    %1904 = vmatpush1.msra.mxu0 0.0
    %1905 = vmatprep.subr.mxu0 0.0
    %1906 = vmatpush1.msra.mxu0 0.0
    %1907 = vmatprep.subr.mxu0 0.0
    %1908 = vmatpush1.msra.mxu0 0.0
    %1909 = vmatprep.subr.mxu0 0.0
    %1910 = vmatpush1.msra.mxu0 0.0
    %1911 = vmatprep.subr.mxu0 0.0
    %1912 = vmatpush1.msra.mxu0 0.0
    %1913 = vmatprep.subr.mxu0 0.0
    %1914 = vmatpush1.msra.mxu0 0.0
    %1915 = vmatprep.mubr.f32.mxu0 0.0
    %1916 = vmatmul.mubr.f32.gmra.mrb[0].mxu0 %v1849
    %v1917 = vpop.f32.mrb[0].mxu0
    %v1918 = vadd.f32 0.0, %v1917
    %v1919 = vpop.f32.mrb[0].mxu0
    %1920 = vdwg.mxu0
    %1921 = vxpose.xlu0.b32.start [1/16] %v1407, 128
    %1922 = vxpose.xlu0.b32.cont [2/16] %v1480, 128
    %1923 = vxpose.xlu0.b32.cont [3/16] 0.0, 128
    %1924 = vxpose.xlu0.b32.cont [4/16] 0.0, 128
    %1925 = vxpose.xlu0.b32.cont [5/16] 0.0, 128
    %1926 = vxpose.xlu0.b32.cont [6/16] 0.0, 128
    %1927 = vxpose.xlu0.b32.cont [7/16] 0.0, 128
    %1928 = vxpose.xlu0.b32.cont [8/16] 0.0, 128
    %1929 = vxpose.xlu0.b32.cont [9/16] 0.0, 128
    %1930 = vxpose.xlu0.b32.cont [10/16] 0.0, 128
    %1931 = vxpose.xlu0.b32.cont [11/16] 0.0, 128
    %1932 = vxpose.xlu0.b32.cont [12/16] 0.0, 128
    %1933 = vxpose.xlu0.b32.cont [13/16] 0.0, 128
    %1934 = vxpose.xlu0.b32.cont [14/16] 0.0, 128
    %1935 = vxpose.xlu0.b32.cont [15/16] 0.0, 128
    %1936 = vxpose.xlu0.b32.end [16/16] 0.0, 128
    %v1937 = vpop.trf.xlu0
    %v1938 = vpop.trf.xlu0
    %v1939 = vpop.trf.xlu0
    %v1940 = vpop.trf.xlu0
    %v1941 = vpop.trf.xlu0
    %v1942 = vpop.trf.xlu0
    %v1943 = vpop.trf.xlu0
    %v1944 = vpop.trf.xlu0
    %v1945 = vpop.trf.xlu0
    %v1946 = vpop.trf.xlu0
    %v1947 = vpop.trf.xlu0
    %v1948 = vpop.trf.xlu0
    %v1949 = vpop.trf.xlu0
    %v1950 = vpop.trf.xlu0
    %v1951 = vpop.trf.xlu0
    %v1952 = vpop.trf.xlu0
    %1953 = vxpose.xlu0.b32.start [1/16] %v1553, 128
    %1954 = vxpose.xlu0.b32.cont [2/16] %v1626, 128
    %1955 = vxpose.xlu0.b32.cont [3/16] 0.0, 128
    %1956 = vxpose.xlu0.b32.cont [4/16] 0.0, 128
    %1957 = vxpose.xlu0.b32.cont [5/16] 0.0, 128
    %1958 = vxpose.xlu0.b32.cont [6/16] 0.0, 128
    %1959 = vxpose.xlu0.b32.cont [7/16] 0.0, 128
    %1960 = vxpose.xlu0.b32.cont [8/16] 0.0, 128
    %1961 = vxpose.xlu0.b32.cont [9/16] 0.0, 128
    %1962 = vxpose.xlu0.b32.cont [10/16] 0.0, 128
    %1963 = vxpose.xlu0.b32.cont [11/16] 0.0, 128
    %1964 = vxpose.xlu0.b32.cont [12/16] 0.0, 128
    %1965 = vxpose.xlu0.b32.cont [13/16] 0.0, 128
    %1966 = vxpose.xlu0.b32.cont [14/16] 0.0, 128
    %1967 = vxpose.xlu0.b32.cont [15/16] 0.0, 128
    %1968 = vxpose.xlu0.b32.end [16/16] 0.0, 128
    %v1969 = vpop.trf.xlu0
    %v1970 = vpop.trf.xlu0
    %v1971 = vpop.trf.xlu0
    %v1972 = vpop.trf.xlu0
    %v1973 = vpop.trf.xlu0
    %v1974 = vpop.trf.xlu0
    %v1975 = vpop.trf.xlu0
    %v1976 = vpop.trf.xlu0
    %v1977 = vpop.trf.xlu0
    %v1978 = vpop.trf.xlu0
    %v1979 = vpop.trf.xlu0
    %v1980 = vpop.trf.xlu0
    %v1981 = vpop.trf.xlu0
    %v1982 = vpop.trf.xlu0
    %v1983 = vpop.trf.xlu0
    %v1984 = vpop.trf.xlu0
    %1985 = vxpose.xlu0.b32.start [1/16] %v1699, 128
    %1986 = vxpose.xlu0.b32.cont [2/16] %v1772, 128
    %1987 = vxpose.xlu0.b32.cont [3/16] 0.0, 128
    %1988 = vxpose.xlu0.b32.cont [4/16] 0.0, 128
    %1989 = vxpose.xlu0.b32.cont [5/16] 0.0, 128
    %1990 = vxpose.xlu0.b32.cont [6/16] 0.0, 128
    %1991 = vxpose.xlu0.b32.cont [7/16] 0.0, 128
    %1992 = vxpose.xlu0.b32.cont [8/16] 0.0, 128
    %1993 = vxpose.xlu0.b32.cont [9/16] 0.0, 128
    %1994 = vxpose.xlu0.b32.cont [10/16] 0.0, 128
    %1995 = vxpose.xlu0.b32.cont [11/16] 0.0, 128
    %1996 = vxpose.xlu0.b32.cont [12/16] 0.0, 128
    %1997 = vxpose.xlu0.b32.cont [13/16] 0.0, 128
    %1998 = vxpose.xlu0.b32.cont [14/16] 0.0, 128
    %1999 = vxpose.xlu0.b32.cont [15/16] 0.0, 128
    %2000 = vxpose.xlu0.b32.end [16/16] 0.0, 128
    %v2001 = vpop.trf.xlu0
    %v2002 = vpop.trf.xlu0
    %v2003 = vpop.trf.xlu0
    %v2004 = vpop.trf.xlu0
    %v2005 = vpop.trf.xlu0
    %v2006 = vpop.trf.xlu0
    %v2007 = vpop.trf.xlu0
    %v2008 = vpop.trf.xlu0
    %v2009 = vpop.trf.xlu0
    %v2010 = vpop.trf.xlu0
    %v2011 = vpop.trf.xlu0
    %v2012 = vpop.trf.xlu0
    %v2013 = vpop.trf.xlu0
    %v2014 = vpop.trf.xlu0
    %v2015 = vpop.trf.xlu0
    %v2016 = vpop.trf.xlu0
    %2017 = vxpose.xlu0.b32.start [1/16] %v1845, 128
    %2018 = vxpose.xlu0.b32.cont [2/16] %v1918, 128
    %2019 = vxpose.xlu0.b32.cont [3/16] 0.0, 128
    %2020 = vxpose.xlu0.b32.cont [4/16] 0.0, 128
    %2021 = vxpose.xlu0.b32.cont [5/16] 0.0, 128
    %2022 = vxpose.xlu0.b32.cont [6/16] 0.0, 128
    %2023 = vxpose.xlu0.b32.cont [7/16] 0.0, 128
    %2024 = vxpose.xlu0.b32.cont [8/16] 0.0, 128
    %2025 = vxpose.xlu0.b32.cont [9/16] 0.0, 128
    %2026 = vxpose.xlu0.b32.cont [10/16] 0.0, 128
    %2027 = vxpose.xlu0.b32.cont [11/16] 0.0, 128
    %2028 = vxpose.xlu0.b32.cont [12/16] 0.0, 128
    %2029 = vxpose.xlu0.b32.cont [13/16] 0.0, 128
    %2030 = vxpose.xlu0.b32.cont [14/16] 0.0, 128
    %2031 = vxpose.xlu0.b32.cont [15/16] 0.0, 128
    %2032 = vxpose.xlu0.b32.end [16/16] 0.0, 128
    %v2033 = vpop.trf.xlu0
    %v2034 = vpop.trf.xlu0
    %v2035 = vpop.trf.xlu0
    %v2036 = vpop.trf.xlu0
    %v2037 = vpop.trf.xlu0
    %v2038 = vpop.trf.xlu0
    %v2039 = vpop.trf.xlu0
    %v2040 = vpop.trf.xlu0
    %v2041 = vpop.trf.xlu0
    %v2042 = vpop.trf.xlu0
    %v2043 = vpop.trf.xlu0
    %v2044 = vpop.trf.xlu0
    %v2045 = vpop.trf.xlu0
    %v2046 = vpop.trf.xlu0
    %v2047 = vpop.trf.xlu0
    %v2048 = vpop.trf.xlu0
    %2049 = vxpose.xlu0.b32.start [1/16] %v1937, 128
    %2050 = vxpose.xlu0.b32.cont [2/16] %v1969, 128
    %2051 = vxpose.xlu0.b32.cont [3/16] %v2001, 128
    %2052 = vxpose.xlu0.b32.cont [4/16] %v2033, 128
    %2053 = vxpose.xlu0.b32.cont [5/16] 0.0, 128
    %2054 = vxpose.xlu0.b32.cont [6/16] 0.0, 128
    %2055 = vxpose.xlu0.b32.cont [7/16] 0.0, 128
    %2056 = vxpose.xlu0.b32.cont [8/16] 0.0, 128
    %2057 = vxpose.xlu0.b32.cont [9/16] 0.0, 128
    %2058 = vxpose.xlu0.b32.cont [10/16] 0.0, 128
    %2059 = vxpose.xlu0.b32.cont [11/16] 0.0, 128
    %2060 = vxpose.xlu0.b32.cont [12/16] 0.0, 128
    %2061 = vxpose.xlu0.b32.cont [13/16] 0.0, 128
    %2062 = vxpose.xlu0.b32.cont [14/16] 0.0, 128
    %2063 = vxpose.xlu0.b32.cont [15/16] 0.0, 128
    %2064 = vxpose.xlu0.b32.end [16/16] 0.0, 128
    %v2065 = vpop.trf.xlu0
    %v2066 = vpop.trf.xlu0
    %v2067 = vpop.trf.xlu0
    %v2068 = vpop.trf.xlu0
    %v2069 = vpop.trf.xlu0
    %v2070 = vpop.trf.xlu0
    %v2071 = vpop.trf.xlu0
    %v2072 = vpop.trf.xlu0
    %v2073 = vpop.trf.xlu0
    %v2074 = vpop.trf.xlu0
    %v2075 = vpop.trf.xlu0
    %v2076 = vpop.trf.xlu0
    %v2077 = vpop.trf.xlu0
    %v2078 = vpop.trf.xlu0
    %v2079 = vpop.trf.xlu0
    %v2080 = vpop.trf.xlu0
    %v2081 = vld [vmem:[%s6] sm:$0xff]
    %v2082 = vld [vmem:[%s6 + $0x8] sm:$0xff]
    %v2083 = vld [vmem:[%s6 + $0x10] sm:$0xff]
    %v2084 = vld [vmem:[%s6 + $0x18] sm:$0xff]
    %v2085 = vld [vmem:[%s7] sm:$0x1]
    %v2087 = vlaneseq
    %v2088 = vshrl.u32 %v2087, 7
    %v2089 = vsub.s32 0, %v2088
    %v2090 = vrot.slane %v2085, %v2089
    %v2093 = vsel %vm76, %v2065, 0
    %v2096 = vsel %vm76, %v2066, 0
    %2098 = vmatprep.subr.mxu0 0.0
    %2099 = vmatpush1.msra.mxu0 %v2081
    %2100 = vmatprep.subr.mxu0 0.0
    %2101 = vmatpush1.msra.mxu0 %v2082
    %2102 = vmatprep.subr.mxu0 0.0
    %2103 = vmatpush1.msra.mxu0 %v2083
    %2104 = vmatprep.subr.mxu0 0.0
    %2105 = vmatpush1.msra.mxu0 %v2084
    %2106 = vmatprep.subr.mxu0 0.0
    %2107 = vmatpush1.msra.mxu0 0.0
    %2108 = vmatprep.subr.mxu0 0.0
    %2109 = vmatpush1.msra.mxu0 0.0
    %2110 = vmatprep.subr.mxu0 0.0
    %2111 = vmatpush1.msra.mxu0 0.0
    %2112 = vmatprep.subr.mxu0 0.0
    %2113 = vmatpush1.msra.mxu0 0.0
    %2114 = vmatprep.subr.mxu0 0.0
    %2115 = vmatpush1.msra.mxu0 0.0
    %2116 = vmatprep.subr.mxu0 0.0
    %2117 = vmatpush1.msra.mxu0 0.0
    %2118 = vmatprep.subr.mxu0 0.0
    %2119 = vmatpush1.msra.mxu0 0.0
    %2120 = vmatprep.subr.mxu0 0.0
    %2121 = vmatpush1.msra.mxu0 0.0
    %2122 = vmatprep.subr.mxu0 0.0
    %2123 = vmatpush1.msra.mxu0 0.0
    %2124 = vmatprep.subr.mxu0 0.0
    %2125 = vmatpush1.msra.mxu0 0.0
    %2126 = vmatprep.subr.mxu0 0.0
    %2127 = vmatpush1.msra.mxu0 0.0
    %2128 = vmatprep.subr.mxu0 0.0
    %2129 = vmatpush1.msra.mxu0 0.0
    %2130 = vmatprep.subr.mxu0 0.0
    %2131 = vmatpush1.msra.mxu0 0.0
    %2132 = vmatprep.subr.mxu0 0.0
    %2133 = vmatpush1.msra.mxu0 0.0
    %2134 = vmatprep.subr.mxu0 0.0
    %2135 = vmatpush1.msra.mxu0 0.0
    %2136 = vmatprep.subr.mxu0 0.0
    %2137 = vmatpush1.msra.mxu0 0.0
    %2138 = vmatprep.subr.mxu0 0.0
    %2139 = vmatpush1.msra.mxu0 0.0
    %2140 = vmatprep.subr.mxu0 0.0
    %2141 = vmatpush1.msra.mxu0 0.0
    %2142 = vmatprep.subr.mxu0 0.0
    %2143 = vmatpush1.msra.mxu0 0.0
    %2144 = vmatprep.subr.mxu0 0.0
    %2145 = vmatpush1.msra.mxu0 0.0
    %2146 = vmatprep.subr.mxu0 0.0
    %2147 = vmatpush1.msra.mxu0 0.0
    %2148 = vmatprep.subr.mxu0 0.0
    %2149 = vmatpush1.msra.mxu0 0.0
    %2150 = vmatprep.subr.mxu0 0.0
    %2151 = vmatpush1.msra.mxu0 0.0
    %2152 = vmatprep.subr.mxu0 0.0
    %2153 = vmatpush1.msra.mxu0 0.0
    %2154 = vmatprep.subr.mxu0 0.0
    %2155 = vmatpush1.msra.mxu0 0.0
    %2156 = vmatprep.subr.mxu0 0.0
    %2157 = vmatpush1.msra.mxu0 0.0
    %2158 = vmatprep.subr.mxu0 0.0
    %2159 = vmatpush1.msra.mxu0 0.0
    %2160 = vmatprep.subr.mxu0 0.0
    %2161 = vmatpush1.msra.mxu0 0.0
    %2162 = vmatprep.mubr.f32.mxu0 0.0
    %2163 = vmatmul.mubr.f32.gmra.mrb[0].mxu0 %v2093
    %v2164 = vpop.f32.mrb[0].mxu0
    %v2165 = vadd.f32 %v2090, %v2164
    %v2166 = vpop.f32.mrb[0].mxu0
    %2167 = vmatprep.mubr.f32.mxu0 0.0
    %2168 = vmatmul.mubr.f32.gmra.mrb[0].mxu0 %v2096
    %v2169 = vpop.f32.mrb[0].mxu0
    %v2170 = vadd.f32 %v2090, %v2169
    %v2171 = vpop.f32.mrb[0].mxu0
    %2172 = vdwg.mxu0
    %v2173 = vadd.f32 %v66, %v2165
    %v2174 = vadd.f32 %v67, %v2170
    %v2175 = vld [vmem:[%s18 + $0x1] sm:$0x1]
    %v2176 = vld [vmem:[%s19 + $0x1] sm:$0x1]
    %v2177 = vsel %vm76, %v2173, 0.0
    %2178 = vadd.xlane.f32.xlu0 %v2177
    %v2179 = vpop.xlane.xlu0 %2178
    %v2180 = vsel %vm76, %v2174, 0.0
    %2181 = vadd.xlane.f32.xlu0 %v2180
    %v2182 = vpop.xlane.xlu0 %2181
    %v2183 = vmul.f32 %v2179, %v83
    %v2184 = vmul.f32 %v2182, %v83
    %v2185 = vsub.f32 %v2173, %v2183
    %v2186 = vsub.f32 %v2174, %v2184
    %v2187 = vmul.f32 %v2185, %v2185
    %v2188 = vmul.f32 %v2186, %v2186
    %v2189 = vsel %vm76, %v2187, 0.0
    %2190 = vadd.xlane.f32.xlu0 %v2189
    %v2191 = vpop.xlane.xlu0 %2190
    %v2192 = vsel %vm76, %v2188, 0.0
    %2193 = vadd.xlane.f32.xlu0 %v2192
    %v2194 = vpop.xlane.xlu0 %2193
    %v2195 = vmul.f32 %v2191, %v83
    %v2196 = vmul.f32 %v2194, %v83
    %v2197 = vadd.f32 %v2195, 1e-05
    %v2198 = vadd.f32 %v2196, 1e-05
    %v2199 = vrsqrt.pop %v2197
    %v2200 = vrsqrt.pop %v2198
    %v2201 = vmul.f32 %v2185, %v2199
    %v2202 = vmul.f32 %v2186, %v2200
    %v2203 = vlaneseq
    %v2204 = vshrl.u32 %v2203, 7
    %v2205 = vsub.s32 0, %v2204
    %v2206 = vrot.slane %v2175, %v2205
    %v2207 = vmul.f32 %v2201, %v2206
    %v2208 = vmul.f32 %v2202, %v2206
    %v2209 = vlaneseq
    %v2210 = vshrl.u32 %v2209, 7
    %v2211 = vsub.s32 0, %v2210
    %v2212 = vrot.slane %v2176, %v2211
    %v2213 = vadd.f32 %v2207, %v2212
    %v2214 = vadd.f32 %v2208, %v2212
    %v2215 = vld [vmem:[%s8] sm:$0xff]
    %v2216 = vld [vmem:[%s8 + $0x8] sm:$0xff]
    %v2217 = vld [vmem:[%s8 + $0x10] sm:$0xff]
    %v2218 = vld [vmem:[%s8 + $0x18] sm:$0xff]
    %v2219 = vld [vmem:[%s9] sm:$0x1]
    %v2221 = vlaneseq
    %v2222 = vshrl.u32 %v2221, 7
    %v2223 = vsub.s32 0, %v2222
    %v2224 = vrot.slane %v2219, %v2223
    %v2227 = vsel %vm76, %v2213, 0
    %v2230 = vsel %vm76, %v2214, 0
    %2232 = vmatprep.subr.mxu0 0.0
    %2233 = vmatpush1.msra.mxu0 %v2215
    %2234 = vmatprep.subr.mxu0 0.0
    %2235 = vmatpush1.msra.mxu0 %v2216
    %2236 = vmatprep.subr.mxu0 0.0
    %2237 = vmatpush1.msra.mxu0 %v2217
    %2238 = vmatprep.subr.mxu0 0.0
    %2239 = vmatpush1.msra.mxu0 %v2218
    %2240 = vmatprep.subr.mxu0 0.0
    %2241 = vmatpush1.msra.mxu0 0.0
    %2242 = vmatprep.subr.mxu0 0.0
    %2243 = vmatpush1.msra.mxu0 0.0
    %2244 = vmatprep.subr.mxu0 0.0
    %2245 = vmatpush1.msra.mxu0 0.0
    %2246 = vmatprep.subr.mxu0 0.0
    %2247 = vmatpush1.msra.mxu0 0.0
    %2248 = vmatprep.subr.mxu0 0.0
    %2249 = vmatpush1.msra.mxu0 0.0
    %2250 = vmatprep.subr.mxu0 0.0
    %2251 = vmatpush1.msra.mxu0 0.0
    %2252 = vmatprep.subr.mxu0 0.0
    %2253 = vmatpush1.msra.mxu0 0.0
    %2254 = vmatprep.subr.mxu0 0.0
    %2255 = vmatpush1.msra.mxu0 0.0
    %2256 = vmatprep.subr.mxu0 0.0
    %2257 = vmatpush1.msra.mxu0 0.0
    %2258 = vmatprep.subr.mxu0 0.0
    %2259 = vmatpush1.msra.mxu0 0.0
    %2260 = vmatprep.subr.mxu0 0.0
    %2261 = vmatpush1.msra.mxu0 0.0
    %2262 = vmatprep.subr.mxu0 0.0
    %2263 = vmatpush1.msra.mxu0 0.0
    %2264 = vmatprep.subr.mxu0 0.0
    %2265 = vmatpush1.msra.mxu0 0.0
    %2266 = vmatprep.subr.mxu0 0.0
    %2267 = vmatpush1.msra.mxu0 0.0
    %2268 = vmatprep.subr.mxu0 0.0
    %2269 = vmatpush1.msra.mxu0 0.0
    %2270 = vmatprep.subr.mxu0 0.0
    %2271 = vmatpush1.msra.mxu0 0.0
    %2272 = vmatprep.subr.mxu0 0.0
    %2273 = vmatpush1.msra.mxu0 0.0
    %2274 = vmatprep.subr.mxu0 0.0
    %2275 = vmatpush1.msra.mxu0 0.0
    %2276 = vmatprep.subr.mxu0 0.0
    %2277 = vmatpush1.msra.mxu0 0.0
    %2278 = vmatprep.subr.mxu0 0.0
    %2279 = vmatpush1.msra.mxu0 0.0
    %2280 = vmatprep.subr.mxu0 0.0
    %2281 = vmatpush1.msra.mxu0 0.0
    %2282 = vmatprep.subr.mxu0 0.0
    %2283 = vmatpush1.msra.mxu0 0.0
    %2284 = vmatprep.subr.mxu0 0.0
    %2285 = vmatpush1.msra.mxu0 0.0
    %2286 = vmatprep.subr.mxu0 0.0
    %2287 = vmatpush1.msra.mxu0 0.0
    %2288 = vmatprep.subr.mxu0 0.0
    %2289 = vmatpush1.msra.mxu0 0.0
    %2290 = vmatprep.subr.mxu0 0.0
    %2291 = vmatpush1.msra.mxu0 0.0
    %2292 = vmatprep.subr.mxu0 0.0
    %2293 = vmatpush1.msra.mxu0 0.0
    %2294 = vmatprep.subr.mxu0 0.0
    %2295 = vmatpush1.msra.mxu0 0.0
    %2296 = vmatprep.mubr.f32.mxu0 0.0
    %2297 = vmatmul.mubr.f32.gmra.mrb[0].mxu0 %v2227
    %v2298 = vpop.f32.mrb[0].mxu0
    %v2299 = vadd.f32 %v2224, %v2298
    %v2300 = vpop.f32.mrb[0].mxu0
    %2301 = vmatprep.mubr.f32.mxu0 0.0
    %2302 = vmatmul.mubr.f32.gmra.mrb[0].mxu0 %v2230
    %v2303 = vpop.f32.mrb[0].mxu0
    %v2304 = vadd.f32 %v2224, %v2303
    %v2305 = vpop.f32.mrb[0].mxu0
    %2306 = vdwg.mxu0
    %v2307 = vld [vmem:[%s10] sm:$0xff]
    %v2308 = vld [vmem:[%s10 + $0x8] sm:$0xff]
    %v2309 = vld [vmem:[%s10 + $0x10] sm:$0xff]
    %v2310 = vld [vmem:[%s10 + $0x18] sm:$0xff]
    %v2311 = vld [vmem:[%s11] sm:$0x1]
    %v2313 = vlaneseq
    %v2314 = vshrl.u32 %v2313, 7
    %v2315 = vsub.s32 0, %v2314
    %v2316 = vrot.slane %v2311, %v2315
    %v2319 = vsel %vm76, %v68, 0
    %v2322 = vsel %vm76, %v69, 0
    %2324 = vmatprep.subr.mxu0 0.0
    %2325 = vmatpush1.msra.mxu0 %v2307
    %2326 = vmatprep.subr.mxu0 0.0
    %2327 = vmatpush1.msra.mxu0 %v2308
    %2328 = vmatprep.subr.mxu0 0.0
    %2329 = vmatpush1.msra.mxu0 %v2309
    %2330 = vmatprep.subr.mxu0 0.0
    %2331 = vmatpush1.msra.mxu0 %v2310
    %2332 = vmatprep.subr.mxu0 0.0
    %2333 = vmatpush1.msra.mxu0 0.0
    %2334 = vmatprep.subr.mxu0 0.0
    %2335 = vmatpush1.msra.mxu0 0.0
    %2336 = vmatprep.subr.mxu0 0.0
    %2337 = vmatpush1.msra.mxu0 0.0
    %2338 = vmatprep.subr.mxu0 0.0
    %2339 = vmatpush1.msra.mxu0 0.0
    %2340 = vmatprep.subr.mxu0 0.0
    %2341 = vmatpush1.msra.mxu0 0.0
    %2342 = vmatprep.subr.mxu0 0.0
    %2343 = vmatpush1.msra.mxu0 0.0
    %2344 = vmatprep.subr.mxu0 0.0
    %2345 = vmatpush1.msra.mxu0 0.0
    %2346 = vmatprep.subr.mxu0 0.0
    %2347 = vmatpush1.msra.mxu0 0.0
    %2348 = vmatprep.subr.mxu0 0.0
    %2349 = vmatpush1.msra.mxu0 0.0
    %2350 = vmatprep.subr.mxu0 0.0
    %2351 = vmatpush1.msra.mxu0 0.0
    %2352 = vmatprep.subr.mxu0 0.0
    %2353 = vmatpush1.msra.mxu0 0.0
    %2354 = vmatprep.subr.mxu0 0.0
    %2355 = vmatpush1.msra.mxu0 0.0
    %2356 = vmatprep.subr.mxu0 0.0
    %2357 = vmatpush1.msra.mxu0 0.0
    %2358 = vmatprep.subr.mxu0 0.0
    %2359 = vmatpush1.msra.mxu0 0.0
    %2360 = vmatprep.subr.mxu0 0.0
    %2361 = vmatpush1.msra.mxu0 0.0
    %2362 = vmatprep.subr.mxu0 0.0
    %2363 = vmatpush1.msra.mxu0 0.0
    %2364 = vmatprep.subr.mxu0 0.0
    %2365 = vmatpush1.msra.mxu0 0.0
    %2366 = vmatprep.subr.mxu0 0.0
    %2367 = vmatpush1.msra.mxu0 0.0
    %2368 = vmatprep.subr.mxu0 0.0
    %2369 = vmatpush1.msra.mxu0 0.0
    %2370 = vmatprep.subr.mxu0 0.0
    %2371 = vmatpush1.msra.mxu0 0.0
    %2372 = vmatprep.subr.mxu0 0.0
    %2373 = vmatpush1.msra.mxu0 0.0
    %2374 = vmatprep.subr.mxu0 0.0
    %2375 = vmatpush1.msra.mxu0 0.0
    %2376 = vmatprep.subr.mxu0 0.0
    %2377 = vmatpush1.msra.mxu0 0.0
    %2378 = vmatprep.subr.mxu0 0.0
    %2379 = vmatpush1.msra.mxu0 0.0
    %2380 = vmatprep.subr.mxu0 0.0
    %2381 = vmatpush1.msra.mxu0 0.0
    %2382 = vmatprep.subr.mxu0 0.0
    %2383 = vmatpush1.msra.mxu0 0.0
    %2384 = vmatprep.subr.mxu0 0.0
    %2385 = vmatpush1.msra.mxu0 0.0
    %2386 = vmatprep.subr.mxu0 0.0
    %2387 = vmatpush1.msra.mxu0 0.0
    %2388 = vmatprep.mubr.f32.mxu0 0.0
    %2389 = vmatmul.mubr.f32.gmra.mrb[0].mxu0 %v2319
    %v2390 = vpop.f32.mrb[0].mxu0
    %v2391 = vadd.f32 %v2316, %v2390
    %v2392 = vpop.f32.mrb[0].mxu0
    %2393 = vmatprep.mubr.f32.mxu0 0.0
    %2394 = vmatmul.mubr.f32.gmra.mrb[0].mxu0 %v2322
    %v2395 = vpop.f32.mrb[0].mxu0
    %v2396 = vadd.f32 %v2316, %v2395
    %v2397 = vpop.f32.mrb[0].mxu0
    %2398 = vdwg.mxu0
    %2399 = vxpose.xlu0.b32.start [1/16] %v2391, 128
    %2400 = vxpose.xlu0.b32.cont [2/16] %v2396, 128
    %2401 = vxpose.xlu0.b32.cont [3/16] 0.0, 128
    %2402 = vxpose.xlu0.b32.cont [4/16] 0.0, 128
    %2403 = vxpose.xlu0.b32.cont [5/16] 0.0, 128
    %2404 = vxpose.xlu0.b32.cont [6/16] 0.0, 128
    %2405 = vxpose.xlu0.b32.cont [7/16] 0.0, 128
    %2406 = vxpose.xlu0.b32.cont [8/16] 0.0, 128
    %2407 = vxpose.xlu0.b32.cont [9/16] 0.0, 128
    %2408 = vxpose.xlu0.b32.cont [10/16] 0.0, 128
    %2409 = vxpose.xlu0.b32.cont [11/16] 0.0, 128
    %2410 = vxpose.xlu0.b32.cont [12/16] 0.0, 128
    %2411 = vxpose.xlu0.b32.cont [13/16] 0.0, 128
    %2412 = vxpose.xlu0.b32.cont [14/16] 0.0, 128
    %2413 = vxpose.xlu0.b32.cont [15/16] 0.0, 128
    %2414 = vxpose.xlu0.b32.end [16/16] 0.0, 128
    %v2415 = vpop.trf.xlu0
    %v2416 = vpop.trf.xlu0
    %v2417 = vpop.trf.xlu0
    %v2418 = vpop.trf.xlu0
    %v2419 = vpop.trf.xlu0
    %v2420 = vpop.trf.xlu0
    %v2421 = vpop.trf.xlu0
    %v2422 = vpop.trf.xlu0
    %v2423 = vpop.trf.xlu0
    %v2424 = vpop.trf.xlu0
    %v2425 = vpop.trf.xlu0
    %v2426 = vpop.trf.xlu0
    %v2427 = vpop.trf.xlu0
    %v2428 = vpop.trf.xlu0
    %v2429 = vpop.trf.xlu0
    %v2430 = vpop.trf.xlu0
    %2431 = vxpose.xlu0.b32.start [1/16] %v2415, 128
    %2432 = vxpose.xlu0.b32.cont [2/16] 0.0, 128
    %2433 = vxpose.xlu0.b32.cont [3/16] 0.0, 128
    %2434 = vxpose.xlu0.b32.cont [4/16] 0.0, 128
    %2435 = vxpose.xlu0.b32.cont [5/16] 0.0, 128
    %2436 = vxpose.xlu0.b32.cont [6/16] 0.0, 128
    %2437 = vxpose.xlu0.b32.cont [7/16] 0.0, 128
    %2438 = vxpose.xlu0.b32.cont [8/16] 0.0, 128
    %2439 = vxpose.xlu0.b32.cont [9/16] 0.0, 128
    %2440 = vxpose.xlu0.b32.cont [10/16] 0.0, 128
    %2441 = vxpose.xlu0.b32.cont [11/16] 0.0, 128
    %2442 = vxpose.xlu0.b32.cont [12/16] 0.0, 128
    %2443 = vxpose.xlu0.b32.cont [13/16] 0.0, 128
    %2444 = vxpose.xlu0.b32.cont [14/16] 0.0, 128
    %2445 = vxpose.xlu0.b32.cont [15/16] 0.0, 128
    %2446 = vxpose.xlu0.b32.end [16/16] 0.0, 128
    %v2447 = vpop.trf.xlu0
    %v2448 = vpop.trf.xlu0
    %v2449 = vpop.trf.xlu0
    %v2450 = vpop.trf.xlu0
    %v2451 = vpop.trf.xlu0
    %v2452 = vpop.trf.xlu0
    %v2453 = vpop.trf.xlu0
    %v2454 = vpop.trf.xlu0
    %v2455 = vpop.trf.xlu0
    %v2456 = vpop.trf.xlu0
    %v2457 = vpop.trf.xlu0
    %v2458 = vpop.trf.xlu0
    %v2459 = vpop.trf.xlu0
    %v2460 = vpop.trf.xlu0
    %v2461 = vpop.trf.xlu0
    %v2462 = vpop.trf.xlu0
    %2463 = vxpose.xlu0.b32.start [1/16] %v2416, 128
    %2464 = vxpose.xlu0.b32.cont [2/16] 0.0, 128
    %2465 = vxpose.xlu0.b32.cont [3/16] 0.0, 128
    %2466 = vxpose.xlu0.b32.cont [4/16] 0.0, 128
    %2467 = vxpose.xlu0.b32.cont [5/16] 0.0, 128
    %2468 = vxpose.xlu0.b32.cont [6/16] 0.0, 128
    %2469 = vxpose.xlu0.b32.cont [7/16] 0.0, 128
    %2470 = vxpose.xlu0.b32.cont [8/16] 0.0, 128
    %2471 = vxpose.xlu0.b32.cont [9/16] 0.0, 128
    %2472 = vxpose.xlu0.b32.cont [10/16] 0.0, 128
    %2473 = vxpose.xlu0.b32.cont [11/16] 0.0, 128
    %2474 = vxpose.xlu0.b32.cont [12/16] 0.0, 128
    %2475 = vxpose.xlu0.b32.cont [13/16] 0.0, 128
    %2476 = vxpose.xlu0.b32.cont [14/16] 0.0, 128
    %2477 = vxpose.xlu0.b32.cont [15/16] 0.0, 128
    %2478 = vxpose.xlu0.b32.end [16/16] 0.0, 128
    %v2479 = vpop.trf.xlu0
    %v2480 = vpop.trf.xlu0
    %v2481 = vpop.trf.xlu0
    %v2482 = vpop.trf.xlu0
    %v2483 = vpop.trf.xlu0
    %v2484 = vpop.trf.xlu0
    %v2485 = vpop.trf.xlu0
    %v2486 = vpop.trf.xlu0
    %v2487 = vpop.trf.xlu0
    %v2488 = vpop.trf.xlu0
    %v2489 = vpop.trf.xlu0
    %v2490 = vpop.trf.xlu0
    %v2491 = vpop.trf.xlu0
    %v2492 = vpop.trf.xlu0
    %v2493 = vpop.trf.xlu0
    %v2494 = vpop.trf.xlu0
    %2495 = vxpose.xlu0.b32.start [1/16] %v2417, 128
    %2496 = vxpose.xlu0.b32.cont [2/16] 0.0, 128
    %2497 = vxpose.xlu0.b32.cont [3/16] 0.0, 128
    %2498 = vxpose.xlu0.b32.cont [4/16] 0.0, 128
    %2499 = vxpose.xlu0.b32.cont [5/16] 0.0, 128
    %2500 = vxpose.xlu0.b32.cont [6/16] 0.0, 128
    %2501 = vxpose.xlu0.b32.cont [7/16] 0.0, 128
    %2502 = vxpose.xlu0.b32.cont [8/16] 0.0, 128
    %2503 = vxpose.xlu0.b32.cont [9/16] 0.0, 128
    %2504 = vxpose.xlu0.b32.cont [10/16] 0.0, 128
    %2505 = vxpose.xlu0.b32.cont [11/16] 0.0, 128
    %2506 = vxpose.xlu0.b32.cont [12/16] 0.0, 128
    %2507 = vxpose.xlu0.b32.cont [13/16] 0.0, 128
    %2508 = vxpose.xlu0.b32.cont [14/16] 0.0, 128
    %2509 = vxpose.xlu0.b32.cont [15/16] 0.0, 128
    %2510 = vxpose.xlu0.b32.end [16/16] 0.0, 128
    %v2511 = vpop.trf.xlu0
    %v2512 = vpop.trf.xlu0
    %v2513 = vpop.trf.xlu0
    %v2514 = vpop.trf.xlu0
    %v2515 = vpop.trf.xlu0
    %v2516 = vpop.trf.xlu0
    %v2517 = vpop.trf.xlu0
    %v2518 = vpop.trf.xlu0
    %v2519 = vpop.trf.xlu0
    %v2520 = vpop.trf.xlu0
    %v2521 = vpop.trf.xlu0
    %v2522 = vpop.trf.xlu0
    %v2523 = vpop.trf.xlu0
    %v2524 = vpop.trf.xlu0
    %v2525 = vpop.trf.xlu0
    %v2526 = vpop.trf.xlu0
    %2527 = vxpose.xlu0.b32.start [1/16] %v2418, 128
    %2528 = vxpose.xlu0.b32.cont [2/16] 0.0, 128
    %2529 = vxpose.xlu0.b32.cont [3/16] 0.0, 128
    %2530 = vxpose.xlu0.b32.cont [4/16] 0.0, 128
    %2531 = vxpose.xlu0.b32.cont [5/16] 0.0, 128
    %2532 = vxpose.xlu0.b32.cont [6/16] 0.0, 128
    %2533 = vxpose.xlu0.b32.cont [7/16] 0.0, 128
    %2534 = vxpose.xlu0.b32.cont [8/16] 0.0, 128
    %2535 = vxpose.xlu0.b32.cont [9/16] 0.0, 128
    %2536 = vxpose.xlu0.b32.cont [10/16] 0.0, 128
    %2537 = vxpose.xlu0.b32.cont [11/16] 0.0, 128
    %2538 = vxpose.xlu0.b32.cont [12/16] 0.0, 128
    %2539 = vxpose.xlu0.b32.cont [13/16] 0.0, 128
    %2540 = vxpose.xlu0.b32.cont [14/16] 0.0, 128
    %2541 = vxpose.xlu0.b32.cont [15/16] 0.0, 128
    %2542 = vxpose.xlu0.b32.end [16/16] 0.0, 128
    %v2543 = vpop.trf.xlu0
    %v2544 = vpop.trf.xlu0
    %v2545 = vpop.trf.xlu0
    %v2546 = vpop.trf.xlu0
    %v2547 = vpop.trf.xlu0
    %v2548 = vpop.trf.xlu0
    %v2549 = vpop.trf.xlu0
    %v2550 = vpop.trf.xlu0
    %v2551 = vpop.trf.xlu0
    %v2552 = vpop.trf.xlu0
    %v2553 = vpop.trf.xlu0
    %v2554 = vpop.trf.xlu0
    %v2555 = vpop.trf.xlu0
    %v2556 = vpop.trf.xlu0
    %v2557 = vpop.trf.xlu0
    %v2558 = vpop.trf.xlu0
    %2559 = vxpose.xlu0.b32.start [1/16] %v2419, 128
    %2560 = vxpose.xlu0.b32.cont [2/16] 0.0, 128
    %2561 = vxpose.xlu0.b32.cont [3/16] 0.0, 128
    %2562 = vxpose.xlu0.b32.cont [4/16] 0.0, 128
    %2563 = vxpose.xlu0.b32.cont [5/16] 0.0, 128
    %2564 = vxpose.xlu0.b32.cont [6/16] 0.0, 128
    %2565 = vxpose.xlu0.b32.cont [7/16] 0.0, 128
    %2566 = vxpose.xlu0.b32.cont [8/16] 0.0, 128
    %2567 = vxpose.xlu0.b32.cont [9/16] 0.0, 128
    %2568 = vxpose.xlu0.b32.cont [10/16] 0.0, 128
    %2569 = vxpose.xlu0.b32.cont [11/16] 0.0, 128
    %2570 = vxpose.xlu0.b32.cont [12/16] 0.0, 128
    %2571 = vxpose.xlu0.b32.cont [13/16] 0.0, 128
    %2572 = vxpose.xlu0.b32.cont [14/16] 0.0, 128
    %2573 = vxpose.xlu0.b32.cont [15/16] 0.0, 128
    %2574 = vxpose.xlu0.b32.end [16/16] 0.0, 128
    %v2575 = vpop.trf.xlu0
    %v2576 = vpop.trf.xlu0
    %v2577 = vpop.trf.xlu0
    %v2578 = vpop.trf.xlu0
    %v2579 = vpop.trf.xlu0
    %v2580 = vpop.trf.xlu0
    %v2581 = vpop.trf.xlu0
    %v2582 = vpop.trf.xlu0
    %v2583 = vpop.trf.xlu0
    %v2584 = vpop.trf.xlu0
    %v2585 = vpop.trf.xlu0
    %v2586 = vpop.trf.xlu0
    %v2587 = vpop.trf.xlu0
    %v2588 = vpop.trf.xlu0
    %v2589 = vpop.trf.xlu0
    %v2590 = vpop.trf.xlu0
    %2591 = vxpose.xlu0.b32.start [1/16] %v2420, 128
    %2592 = vxpose.xlu0.b32.cont [2/16] 0.0, 128
    %2593 = vxpose.xlu0.b32.cont [3/16] 0.0, 128
    %2594 = vxpose.xlu0.b32.cont [4/16] 0.0, 128
    %2595 = vxpose.xlu0.b32.cont [5/16] 0.0, 128
    %2596 = vxpose.xlu0.b32.cont [6/16] 0.0, 128
    %2597 = vxpose.xlu0.b32.cont [7/16] 0.0, 128
    %2598 = vxpose.xlu0.b32.cont [8/16] 0.0, 128
    %2599 = vxpose.xlu0.b32.cont [9/16] 0.0, 128
    %2600 = vxpose.xlu0.b32.cont [10/16] 0.0, 128
    %2601 = vxpose.xlu0.b32.cont [11/16] 0.0, 128
    %2602 = vxpose.xlu0.b32.cont [12/16] 0.0, 128
    %2603 = vxpose.xlu0.b32.cont [13/16] 0.0, 128
    %2604 = vxpose.xlu0.b32.cont [14/16] 0.0, 128
    %2605 = vxpose.xlu0.b32.cont [15/16] 0.0, 128
    %2606 = vxpose.xlu0.b32.end [16/16] 0.0, 128
    %v2607 = vpop.trf.xlu0
    %v2608 = vpop.trf.xlu0
    %v2609 = vpop.trf.xlu0
    %v2610 = vpop.trf.xlu0
    %v2611 = vpop.trf.xlu0
    %v2612 = vpop.trf.xlu0
    %v2613 = vpop.trf.xlu0
    %v2614 = vpop.trf.xlu0
    %v2615 = vpop.trf.xlu0
    %v2616 = vpop.trf.xlu0
    %v2617 = vpop.trf.xlu0
    %v2618 = vpop.trf.xlu0
    %v2619 = vpop.trf.xlu0
    %v2620 = vpop.trf.xlu0
    %v2621 = vpop.trf.xlu0
    %v2622 = vpop.trf.xlu0
    %2623 = vxpose.xlu0.b32.start [1/16] %v2421, 128
    %2624 = vxpose.xlu0.b32.cont [2/16] 0.0, 128
    %2625 = vxpose.xlu0.b32.cont [3/16] 0.0, 128
    %2626 = vxpose.xlu0.b32.cont [4/16] 0.0, 128
    %2627 = vxpose.xlu0.b32.cont [5/16] 0.0, 128
    %2628 = vxpose.xlu0.b32.cont [6/16] 0.0, 128
    %2629 = vxpose.xlu0.b32.cont [7/16] 0.0, 128
    %2630 = vxpose.xlu0.b32.cont [8/16] 0.0, 128
    %2631 = vxpose.xlu0.b32.cont [9/16] 0.0, 128
    %2632 = vxpose.xlu0.b32.cont [10/16] 0.0, 128
    %2633 = vxpose.xlu0.b32.cont [11/16] 0.0, 128
    %2634 = vxpose.xlu0.b32.cont [12/16] 0.0, 128
    %2635 = vxpose.xlu0.b32.cont [13/16] 0.0, 128
    %2636 = vxpose.xlu0.b32.cont [14/16] 0.0, 128
    %2637 = vxpose.xlu0.b32.cont [15/16] 0.0, 128
    %2638 = vxpose.xlu0.b32.end [16/16] 0.0, 128
    %v2639 = vpop.trf.xlu0
    %v2640 = vpop.trf.xlu0
    %v2641 = vpop.trf.xlu0
    %v2642 = vpop.trf.xlu0
    %v2643 = vpop.trf.xlu0
    %v2644 = vpop.trf.xlu0
    %v2645 = vpop.trf.xlu0
    %v2646 = vpop.trf.xlu0
    %v2647 = vpop.trf.xlu0
    %v2648 = vpop.trf.xlu0
    %v2649 = vpop.trf.xlu0
    %v2650 = vpop.trf.xlu0
    %v2651 = vpop.trf.xlu0
    %v2652 = vpop.trf.xlu0
    %v2653 = vpop.trf.xlu0
    %v2654 = vpop.trf.xlu0
    %2655 = vxpose.xlu0.b32.start [1/16] %v2422, 128
    %2656 = vxpose.xlu0.b32.cont [2/16] 0.0, 128
    %2657 = vxpose.xlu0.b32.cont [3/16] 0.0, 128
    %2658 = vxpose.xlu0.b32.cont [4/16] 0.0, 128
    %2659 = vxpose.xlu0.b32.cont [5/16] 0.0, 128
    %2660 = vxpose.xlu0.b32.cont [6/16] 0.0, 128
    %2661 = vxpose.xlu0.b32.cont [7/16] 0.0, 128
    %2662 = vxpose.xlu0.b32.cont [8/16] 0.0, 128
    %2663 = vxpose.xlu0.b32.cont [9/16] 0.0, 128
    %2664 = vxpose.xlu0.b32.cont [10/16] 0.0, 128
    %2665 = vxpose.xlu0.b32.cont [11/16] 0.0, 128
    %2666 = vxpose.xlu0.b32.cont [12/16] 0.0, 128
    %2667 = vxpose.xlu0.b32.cont [13/16] 0.0, 128
    %2668 = vxpose.xlu0.b32.cont [14/16] 0.0, 128
    %2669 = vxpose.xlu0.b32.cont [15/16] 0.0, 128
    %2670 = vxpose.xlu0.b32.end [16/16] 0.0, 128
    %v2671 = vpop.trf.xlu0
    %v2672 = vpop.trf.xlu0
    %v2673 = vpop.trf.xlu0
    %v2674 = vpop.trf.xlu0
    %v2675 = vpop.trf.xlu0
    %v2676 = vpop.trf.xlu0
    %v2677 = vpop.trf.xlu0
    %v2678 = vpop.trf.xlu0
    %v2679 = vpop.trf.xlu0
    %v2680 = vpop.trf.xlu0
    %v2681 = vpop.trf.xlu0
    %v2682 = vpop.trf.xlu0
    %v2683 = vpop.trf.xlu0
    %v2684 = vpop.trf.xlu0
    %v2685 = vpop.trf.xlu0
    %v2686 = vpop.trf.xlu0
    %2687 = vxpose.xlu0.b32.start [1/16] %v2299, 128
    %2688 = vxpose.xlu0.b32.cont [2/16] %v2304, 128
    %2689 = vxpose.xlu0.b32.cont [3/16] 0.0, 128
    %2690 = vxpose.xlu0.b32.cont [4/16] 0.0, 128
    %2691 = vxpose.xlu0.b32.cont [5/16] 0.0, 128
    %2692 = vxpose.xlu0.b32.cont [6/16] 0.0, 128
    %2693 = vxpose.xlu0.b32.cont [7/16] 0.0, 128
    %2694 = vxpose.xlu0.b32.cont [8/16] 0.0, 128
    %2695 = vxpose.xlu0.b32.cont [9/16] 0.0, 128
    %2696 = vxpose.xlu0.b32.cont [10/16] 0.0, 128
    %2697 = vxpose.xlu0.b32.cont [11/16] 0.0, 128
    %2698 = vxpose.xlu0.b32.cont [12/16] 0.0, 128
    %2699 = vxpose.xlu0.b32.cont [13/16] 0.0, 128
    %2700 = vxpose.xlu0.b32.cont [14/16] 0.0, 128
    %2701 = vxpose.xlu0.b32.cont [15/16] 0.0, 128
    %2702 = vxpose.xlu0.b32.end [16/16] 0.0, 128
    %v2703 = vpop.trf.xlu0
    %v2704 = vpop.trf.xlu0
    %v2705 = vpop.trf.xlu0
    %v2706 = vpop.trf.xlu0
    %v2707 = vpop.trf.xlu0
    %v2708 = vpop.trf.xlu0
    %v2709 = vpop.trf.xlu0
    %v2710 = vpop.trf.xlu0
    %v2711 = vpop.trf.xlu0
    %v2712 = vpop.trf.xlu0
    %v2713 = vpop.trf.xlu0
    %v2714 = vpop.trf.xlu0
    %v2715 = vpop.trf.xlu0
    %v2716 = vpop.trf.xlu0
    %v2717 = vpop.trf.xlu0
    %v2718 = vpop.trf.xlu0
    %2719 = vxpose.xlu0.b32.start [1/16] %v2703, 128
    %2720 = vxpose.xlu0.b32.cont [2/16] 0.0, 128
    %2721 = vxpose.xlu0.b32.cont [3/16] 0.0, 128
    %2722 = vxpose.xlu0.b32.cont [4/16] 0.0, 128
    %2723 = vxpose.xlu0.b32.cont [5/16] 0.0, 128
    %2724 = vxpose.xlu0.b32.cont [6/16] 0.0, 128
    %2725 = vxpose.xlu0.b32.cont [7/16] 0.0, 128
    %2726 = vxpose.xlu0.b32.cont [8/16] 0.0, 128
    %2727 = vxpose.xlu0.b32.cont [9/16] 0.0, 128
    %2728 = vxpose.xlu0.b32.cont [10/16] 0.0, 128
    %2729 = vxpose.xlu0.b32.cont [11/16] 0.0, 128
    %2730 = vxpose.xlu0.b32.cont [12/16] 0.0, 128
    %2731 = vxpose.xlu0.b32.cont [13/16] 0.0, 128
    %2732 = vxpose.xlu0.b32.cont [14/16] 0.0, 128
    %2733 = vxpose.xlu0.b32.cont [15/16] 0.0, 128
    %2734 = vxpose.xlu0.b32.end [16/16] 0.0, 128
    %v2735 = vpop.trf.xlu0
    %v2736 = vpop.trf.xlu0
    %v2737 = vpop.trf.xlu0
    %v2738 = vpop.trf.xlu0
    %v2739 = vpop.trf.xlu0
    %v2740 = vpop.trf.xlu0
    %v2741 = vpop.trf.xlu0
    %v2742 = vpop.trf.xlu0
    %v2743 = vpop.trf.xlu0
    %v2744 = vpop.trf.xlu0
    %v2745 = vpop.trf.xlu0
    %v2746 = vpop.trf.xlu0
    %v2747 = vpop.trf.xlu0
    %v2748 = vpop.trf.xlu0
    %v2749 = vpop.trf.xlu0
    %v2750 = vpop.trf.xlu0
    %2751 = vxpose.xlu0.b32.start [1/16] %v2704, 128
    %2752 = vxpose.xlu0.b32.cont [2/16] 0.0, 128
    %2753 = vxpose.xlu0.b32.cont [3/16] 0.0, 128
    %2754 = vxpose.xlu0.b32.cont [4/16] 0.0, 128
    %2755 = vxpose.xlu0.b32.cont [5/16] 0.0, 128
    %2756 = vxpose.xlu0.b32.cont [6/16] 0.0, 128
    %2757 = vxpose.xlu0.b32.cont [7/16] 0.0, 128
    %2758 = vxpose.xlu0.b32.cont [8/16] 0.0, 128
    %2759 = vxpose.xlu0.b32.cont [9/16] 0.0, 128
    %2760 = vxpose.xlu0.b32.cont [10/16] 0.0, 128
    %2761 = vxpose.xlu0.b32.cont [11/16] 0.0, 128
    %2762 = vxpose.xlu0.b32.cont [12/16] 0.0, 128
    %2763 = vxpose.xlu0.b32.cont [13/16] 0.0, 128
    %2764 = vxpose.xlu0.b32.cont [14/16] 0.0, 128
    %2765 = vxpose.xlu0.b32.cont [15/16] 0.0, 128
    %2766 = vxpose.xlu0.b32.end [16/16] 0.0, 128
    %v2767 = vpop.trf.xlu0
    %v2768 = vpop.trf.xlu0
    %v2769 = vpop.trf.xlu0
    %v2770 = vpop.trf.xlu0
    %v2771 = vpop.trf.xlu0
    %v2772 = vpop.trf.xlu0
    %v2773 = vpop.trf.xlu0
    %v2774 = vpop.trf.xlu0
    %v2775 = vpop.trf.xlu0
    %v2776 = vpop.trf.xlu0
    %v2777 = vpop.trf.xlu0
    %v2778 = vpop.trf.xlu0
    %v2779 = vpop.trf.xlu0
    %v2780 = vpop.trf.xlu0
    %v2781 = vpop.trf.xlu0
    %v2782 = vpop.trf.xlu0
    %2783 = vxpose.xlu0.b32.start [1/16] %v2705, 128
    %2784 = vxpose.xlu0.b32.cont [2/16] 0.0, 128
    %2785 = vxpose.xlu0.b32.cont [3/16] 0.0, 128
    %2786 = vxpose.xlu0.b32.cont [4/16] 0.0, 128
    %2787 = vxpose.xlu0.b32.cont [5/16] 0.0, 128
    %2788 = vxpose.xlu0.b32.cont [6/16] 0.0, 128
    %2789 = vxpose.xlu0.b32.cont [7/16] 0.0, 128
    %2790 = vxpose.xlu0.b32.cont [8/16] 0.0, 128
    %2791 = vxpose.xlu0.b32.cont [9/16] 0.0, 128
    %2792 = vxpose.xlu0.b32.cont [10/16] 0.0, 128
    %2793 = vxpose.xlu0.b32.cont [11/16] 0.0, 128
    %2794 = vxpose.xlu0.b32.cont [12/16] 0.0, 128
    %2795 = vxpose.xlu0.b32.cont [13/16] 0.0, 128
    %2796 = vxpose.xlu0.b32.cont [14/16] 0.0, 128
    %2797 = vxpose.xlu0.b32.cont [15/16] 0.0, 128
    %2798 = vxpose.xlu0.b32.end [16/16] 0.0, 128
    %v2799 = vpop.trf.xlu0
    %v2800 = vpop.trf.xlu0
    %v2801 = vpop.trf.xlu0
    %v2802 = vpop.trf.xlu0
    %v2803 = vpop.trf.xlu0
    %v2804 = vpop.trf.xlu0
    %v2805 = vpop.trf.xlu0
    %v2806 = vpop.trf.xlu0
    %v2807 = vpop.trf.xlu0
    %v2808 = vpop.trf.xlu0
    %v2809 = vpop.trf.xlu0
    %v2810 = vpop.trf.xlu0
    %v2811 = vpop.trf.xlu0
    %v2812 = vpop.trf.xlu0
    %v2813 = vpop.trf.xlu0
    %v2814 = vpop.trf.xlu0
    %2815 = vxpose.xlu0.b32.start [1/16] %v2706, 128
    %2816 = vxpose.xlu0.b32.cont [2/16] 0.0, 128
    %2817 = vxpose.xlu0.b32.cont [3/16] 0.0, 128
    %2818 = vxpose.xlu0.b32.cont [4/16] 0.0, 128
    %2819 = vxpose.xlu0.b32.cont [5/16] 0.0, 128
    %2820 = vxpose.xlu0.b32.cont [6/16] 0.0, 128
    %2821 = vxpose.xlu0.b32.cont [7/16] 0.0, 128
    %2822 = vxpose.xlu0.b32.cont [8/16] 0.0, 128
    %2823 = vxpose.xlu0.b32.cont [9/16] 0.0, 128
    %2824 = vxpose.xlu0.b32.cont [10/16] 0.0, 128
    %2825 = vxpose.xlu0.b32.cont [11/16] 0.0, 128
    %2826 = vxpose.xlu0.b32.cont [12/16] 0.0, 128
    %2827 = vxpose.xlu0.b32.cont [13/16] 0.0, 128
    %2828 = vxpose.xlu0.b32.cont [14/16] 0.0, 128
    %2829 = vxpose.xlu0.b32.cont [15/16] 0.0, 128
    %2830 = vxpose.xlu0.b32.end [16/16] 0.0, 128
    %v2831 = vpop.trf.xlu0
    %v2832 = vpop.trf.xlu0
    %v2833 = vpop.trf.xlu0
    %v2834 = vpop.trf.xlu0
    %v2835 = vpop.trf.xlu0
    %v2836 = vpop.trf.xlu0
    %v2837 = vpop.trf.xlu0
    %v2838 = vpop.trf.xlu0
    %v2839 = vpop.trf.xlu0
    %v2840 = vpop.trf.xlu0
    %v2841 = vpop.trf.xlu0
    %v2842 = vpop.trf.xlu0
    %v2843 = vpop.trf.xlu0
    %v2844 = vpop.trf.xlu0
    %v2845 = vpop.trf.xlu0
    %v2846 = vpop.trf.xlu0
    %v2848 = vsel %vm624, %v2735, 0
    %v2851 = vsel %vm624, %v2447, 0
    %2853 = vmatprep.subr.mxu0 0.0
    %2854 = vmatpush1.xpose.msra.mxu0 %v2851
    %2855 = vmatprep.subr.mxu0 0.0
    %2856 = vmatpush1.xpose.msra.mxu0 0.0
    %2857 = vmatprep.subr.mxu0 0.0
    %2858 = vmatpush1.xpose.msra.mxu0 0.0
    %2859 = vmatprep.subr.mxu0 0.0
    %2860 = vmatpush1.xpose.msra.mxu0 0.0
    %2861 = vmatprep.subr.mxu0 0.0
    %2862 = vmatpush1.xpose.msra.mxu0 0.0
    %2863 = vmatprep.subr.mxu0 0.0
    %2864 = vmatpush1.xpose.msra.mxu0 0.0
    %2865 = vmatprep.subr.mxu0 0.0
    %2866 = vmatpush1.xpose.msra.mxu0 0.0
    %2867 = vmatprep.subr.mxu0 0.0
    %2868 = vmatpush1.xpose.msra.mxu0 0.0
    %2869 = vmatprep.subr.mxu0 0.0
    %2870 = vmatpush1.xpose.msra.mxu0 0.0
    %2871 = vmatprep.subr.mxu0 0.0
    %2872 = vmatpush1.xpose.msra.mxu0 0.0
    %2873 = vmatprep.subr.mxu0 0.0
    %2874 = vmatpush1.xpose.msra.mxu0 0.0
    %2875 = vmatprep.subr.mxu0 0.0
    %2876 = vmatpush1.xpose.msra.mxu0 0.0
    %2877 = vmatprep.subr.mxu0 0.0
    %2878 = vmatpush1.xpose.msra.mxu0 0.0
    %2879 = vmatprep.subr.mxu0 0.0
    %2880 = vmatpush1.xpose.msra.mxu0 0.0
    %2881 = vmatprep.subr.mxu0 0.0
    %2882 = vmatpush1.xpose.msra.mxu0 0.0
    %2883 = vmatprep.subr.mxu0 0.0
    %2884 = vmatpush1.xpose.msra.mxu0 0.0
    %2885 = vmatprep.subr.mxu0 0.0
    %2886 = vmatpush1.xpose.msra.mxu0 0.0
    %2887 = vmatprep.subr.mxu0 0.0
    %2888 = vmatpush1.xpose.msra.mxu0 0.0
    %2889 = vmatprep.subr.mxu0 0.0
    %2890 = vmatpush1.xpose.msra.mxu0 0.0
    %2891 = vmatprep.subr.mxu0 0.0
    %2892 = vmatpush1.xpose.msra.mxu0 0.0
    %2893 = vmatprep.subr.mxu0 0.0
    %2894 = vmatpush1.xpose.msra.mxu0 0.0
    %2895 = vmatprep.subr.mxu0 0.0
    %2896 = vmatpush1.xpose.msra.mxu0 0.0
    %2897 = vmatprep.subr.mxu0 0.0
    %2898 = vmatpush1.xpose.msra.mxu0 0.0
    %2899 = vmatprep.subr.mxu0 0.0
    %2900 = vmatpush1.xpose.msra.mxu0 0.0
    %2901 = vmatprep.subr.mxu0 0.0
    %2902 = vmatpush1.xpose.msra.mxu0 0.0
    %2903 = vmatprep.subr.mxu0 0.0
    %2904 = vmatpush1.xpose.msra.mxu0 0.0
    %2905 = vmatprep.subr.mxu0 0.0
    %2906 = vmatpush1.xpose.msra.mxu0 0.0
    %2907 = vmatprep.subr.mxu0 0.0
    %2908 = vmatpush1.xpose.msra.mxu0 0.0
    %2909 = vmatprep.subr.mxu0 0.0
    %2910 = vmatpush1.xpose.msra.mxu0 0.0
    %2911 = vmatprep.subr.mxu0 0.0
    %2912 = vmatpush1.xpose.msra.mxu0 0.0
    %2913 = vmatprep.subr.mxu0 0.0
    %2914 = vmatpush1.xpose.msra.mxu0 0.0
    %2915 = vmatprep.subr.mxu0 0.0
    %2916 = vmatpush1.xpose.msra.mxu0 0.0
    %2917 = vmatprep.mubr.f32.mxu0 0.0
    %2918 = vmatmul.mubr.f32.gmra.mrb[0].mxu0 %v2848
    %v2919 = vpop.f32.mrb[0].mxu0
    %v2920 = vadd.f32 0.0, %v2919
    %v2921 = vpop.f32.mrb[0].mxu0
    %2922 = vdwg.mxu0
    %v2924 = vsel %vm624, %v2736, 0
    %v2927 = vsel %vm624, %v2448, 0
    %2929 = vmatprep.subr.mxu0 0.0
    %2930 = vmatpush1.xpose.msra.mxu0 %v2927
    %2931 = vmatprep.subr.mxu0 0.0
    %2932 = vmatpush1.xpose.msra.mxu0 0.0
    %2933 = vmatprep.subr.mxu0 0.0
    %2934 = vmatpush1.xpose.msra.mxu0 0.0
    %2935 = vmatprep.subr.mxu0 0.0
    %2936 = vmatpush1.xpose.msra.mxu0 0.0
    %2937 = vmatprep.subr.mxu0 0.0
    %2938 = vmatpush1.xpose.msra.mxu0 0.0
    %2939 = vmatprep.subr.mxu0 0.0
    %2940 = vmatpush1.xpose.msra.mxu0 0.0
    %2941 = vmatprep.subr.mxu0 0.0
    %2942 = vmatpush1.xpose.msra.mxu0 0.0
    %2943 = vmatprep.subr.mxu0 0.0
    %2944 = vmatpush1.xpose.msra.mxu0 0.0
    %2945 = vmatprep.subr.mxu0 0.0
    %2946 = vmatpush1.xpose.msra.mxu0 0.0
    %2947 = vmatprep.subr.mxu0 0.0
    %2948 = vmatpush1.xpose.msra.mxu0 0.0
    %2949 = vmatprep.subr.mxu0 0.0
    %2950 = vmatpush1.xpose.msra.mxu0 0.0
    %2951 = vmatprep.subr.mxu0 0.0
    %2952 = vmatpush1.xpose.msra.mxu0 0.0
    %2953 = vmatprep.subr.mxu0 0.0
    %2954 = vmatpush1.xpose.msra.mxu0 0.0
    %2955 = vmatprep.subr.mxu0 0.0
    %2956 = vmatpush1.xpose.msra.mxu0 0.0
    %2957 = vmatprep.subr.mxu0 0.0
    %2958 = vmatpush1.xpose.msra.mxu0 0.0
    %2959 = vmatprep.subr.mxu0 0.0
    %2960 = vmatpush1.xpose.msra.mxu0 0.0
    %2961 = vmatprep.subr.mxu0 0.0
    %2962 = vmatpush1.xpose.msra.mxu0 0.0
    %2963 = vmatprep.subr.mxu0 0.0
    %2964 = vmatpush1.xpose.msra.mxu0 0.0
    %2965 = vmatprep.subr.mxu0 0.0
    %2966 = vmatpush1.xpose.msra.mxu0 0.0
    %2967 = vmatprep.subr.mxu0 0.0
    %2968 = vmatpush1.xpose.msra.mxu0 0.0
    %2969 = vmatprep.subr.mxu0 0.0
    %2970 = vmatpush1.xpose.msra.mxu0 0.0
    %2971 = vmatprep.subr.mxu0 0.0
    %2972 = vmatpush1.xpose.msra.mxu0 0.0
    %2973 = vmatprep.subr.mxu0 0.0
    %2974 = vmatpush1.xpose.msra.mxu0 0.0
    %2975 = vmatprep.subr.mxu0 0.0
    %2976 = vmatpush1.xpose.msra.mxu0 0.0
    %2977 = vmatprep.subr.mxu0 0.0
    %2978 = vmatpush1.xpose.msra.mxu0 0.0
    %2979 = vmatprep.subr.mxu0 0.0
    %2980 = vmatpush1.xpose.msra.mxu0 0.0
    %2981 = vmatprep.subr.mxu0 0.0
    %2982 = vmatpush1.xpose.msra.mxu0 0.0
    %2983 = vmatprep.subr.mxu0 0.0
    %2984 = vmatpush1.xpose.msra.mxu0 0.0
    %2985 = vmatprep.subr.mxu0 0.0
    %2986 = vmatpush1.xpose.msra.mxu0 0.0
    %2987 = vmatprep.subr.mxu0 0.0
    %2988 = vmatpush1.xpose.msra.mxu0 0.0
    %2989 = vmatprep.subr.mxu0 0.0
    %2990 = vmatpush1.xpose.msra.mxu0 0.0
    %2991 = vmatprep.subr.mxu0 0.0
    %2992 = vmatpush1.xpose.msra.mxu0 0.0
    %2993 = vmatprep.mubr.f32.mxu0 0.0
    %2994 = vmatmul.mubr.f32.gmra.mrb[0].mxu0 %v2924
    %v2995 = vpop.f32.mrb[0].mxu0
    %v2996 = vadd.f32 0.0, %v2995
    %v2997 = vpop.f32.mrb[0].mxu0
    %2998 = vdwg.mxu0
    %v3000 = vsel %vm624, %v2767, 0
    %v3003 = vsel %vm624, %v2479, 0
    %3005 = vmatprep.subr.mxu0 0.0
    %3006 = vmatpush1.xpose.msra.mxu0 %v3003
    %3007 = vmatprep.subr.mxu0 0.0
    %3008 = vmatpush1.xpose.msra.mxu0 0.0
    %3009 = vmatprep.subr.mxu0 0.0
    %3010 = vmatpush1.xpose.msra.mxu0 0.0
    %3011 = vmatprep.subr.mxu0 0.0
    %3012 = vmatpush1.xpose.msra.mxu0 0.0
    %3013 = vmatprep.subr.mxu0 0.0
    %3014 = vmatpush1.xpose.msra.mxu0 0.0
    %3015 = vmatprep.subr.mxu0 0.0
    %3016 = vmatpush1.xpose.msra.mxu0 0.0
    %3017 = vmatprep.subr.mxu0 0.0
    %3018 = vmatpush1.xpose.msra.mxu0 0.0
    %3019 = vmatprep.subr.mxu0 0.0
    %3020 = vmatpush1.xpose.msra.mxu0 0.0
    %3021 = vmatprep.subr.mxu0 0.0
    %3022 = vmatpush1.xpose.msra.mxu0 0.0
    %3023 = vmatprep.subr.mxu0 0.0
    %3024 = vmatpush1.xpose.msra.mxu0 0.0
    %3025 = vmatprep.subr.mxu0 0.0
    %3026 = vmatpush1.xpose.msra.mxu0 0.0
    %3027 = vmatprep.subr.mxu0 0.0
    %3028 = vmatpush1.xpose.msra.mxu0 0.0
    %3029 = vmatprep.subr.mxu0 0.0
    %3030 = vmatpush1.xpose.msra.mxu0 0.0
    %3031 = vmatprep.subr.mxu0 0.0
    %3032 = vmatpush1.xpose.msra.mxu0 0.0
    %3033 = vmatprep.subr.mxu0 0.0
    %3034 = vmatpush1.xpose.msra.mxu0 0.0
    %3035 = vmatprep.subr.mxu0 0.0
    %3036 = vmatpush1.xpose.msra.mxu0 0.0
    %3037 = vmatprep.subr.mxu0 0.0
    %3038 = vmatpush1.xpose.msra.mxu0 0.0
    %3039 = vmatprep.subr.mxu0 0.0
    %3040 = vmatpush1.xpose.msra.mxu0 0.0
    %3041 = vmatprep.subr.mxu0 0.0
    %3042 = vmatpush1.xpose.msra.mxu0 0.0
    %3043 = vmatprep.subr.mxu0 0.0
    %3044 = vmatpush1.xpose.msra.mxu0 0.0
    %3045 = vmatprep.subr.mxu0 0.0
    %3046 = vmatpush1.xpose.msra.mxu0 0.0
    %3047 = vmatprep.subr.mxu0 0.0
    %3048 = vmatpush1.xpose.msra.mxu0 0.0
    %3049 = vmatprep.subr.mxu0 0.0
    %3050 = vmatpush1.xpose.msra.mxu0 0.0
    %3051 = vmatprep.subr.mxu0 0.0
    %3052 = vmatpush1.xpose.msra.mxu0 0.0
    %3053 = vmatprep.subr.mxu0 0.0
    %3054 = vmatpush1.xpose.msra.mxu0 0.0
    %3055 = vmatprep.subr.mxu0 0.0
    %3056 = vmatpush1.xpose.msra.mxu0 0.0
    %3057 = vmatprep.subr.mxu0 0.0
    %3058 = vmatpush1.xpose.msra.mxu0 0.0
    %3059 = vmatprep.subr.mxu0 0.0
    %3060 = vmatpush1.xpose.msra.mxu0 0.0
    %3061 = vmatprep.subr.mxu0 0.0
    %3062 = vmatpush1.xpose.msra.mxu0 0.0
    %3063 = vmatprep.subr.mxu0 0.0
    %3064 = vmatpush1.xpose.msra.mxu0 0.0
    %3065 = vmatprep.subr.mxu0 0.0
    %3066 = vmatpush1.xpose.msra.mxu0 0.0
    %3067 = vmatprep.subr.mxu0 0.0
    %3068 = vmatpush1.xpose.msra.mxu0 0.0
    %3069 = vmatprep.mubr.f32.mxu0 0.0
    %3070 = vmatmul.mubr.f32.gmra.mrb[0].mxu0 %v3000
    %v3071 = vpop.f32.mrb[0].mxu0
    %v3072 = vadd.f32 0.0, %v3071
    %v3073 = vpop.f32.mrb[0].mxu0
    %3074 = vdwg.mxu0
    %v3076 = vsel %vm624, %v2768, 0
    %v3079 = vsel %vm624, %v2480, 0
    %3081 = vmatprep.subr.mxu0 0.0
    %3082 = vmatpush1.xpose.msra.mxu0 %v3079
    %3083 = vmatprep.subr.mxu0 0.0
    %3084 = vmatpush1.xpose.msra.mxu0 0.0
    %3085 = vmatprep.subr.mxu0 0.0
    %3086 = vmatpush1.xpose.msra.mxu0 0.0
    %3087 = vmatprep.subr.mxu0 0.0
    %3088 = vmatpush1.xpose.msra.mxu0 0.0
    %3089 = vmatprep.subr.mxu0 0.0
    %3090 = vmatpush1.xpose.msra.mxu0 0.0
    %3091 = vmatprep.subr.mxu0 0.0
    %3092 = vmatpush1.xpose.msra.mxu0 0.0
    %3093 = vmatprep.subr.mxu0 0.0
    %3094 = vmatpush1.xpose.msra.mxu0 0.0
    %3095 = vmatprep.subr.mxu0 0.0
    %3096 = vmatpush1.xpose.msra.mxu0 0.0
    %3097 = vmatprep.subr.mxu0 0.0
    %3098 = vmatpush1.xpose.msra.mxu0 0.0
    %3099 = vmatprep.subr.mxu0 0.0
    %3100 = vmatpush1.xpose.msra.mxu0 0.0
    %3101 = vmatprep.subr.mxu0 0.0
    %3102 = vmatpush1.xpose.msra.mxu0 0.0
    %3103 = vmatprep.subr.mxu0 0.0
    %3104 = vmatpush1.xpose.msra.mxu0 0.0
    %3105 = vmatprep.subr.mxu0 0.0
    %3106 = vmatpush1.xpose.msra.mxu0 0.0
    %3107 = vmatprep.subr.mxu0 0.0
    %3108 = vmatpush1.xpose.msra.mxu0 0.0
    %3109 = vmatprep.subr.mxu0 0.0
    %3110 = vmatpush1.xpose.msra.mxu0 0.0
    %3111 = vmatprep.subr.mxu0 0.0
    %3112 = vmatpush1.xpose.msra.mxu0 0.0
    %3113 = vmatprep.subr.mxu0 0.0
    %3114 = vmatpush1.xpose.msra.mxu0 0.0
    %3115 = vmatprep.subr.mxu0 0.0
    %3116 = vmatpush1.xpose.msra.mxu0 0.0
    %3117 = vmatprep.subr.mxu0 0.0
    %3118 = vmatpush1.xpose.msra.mxu0 0.0
    %3119 = vmatprep.subr.mxu0 0.0
    %3120 = vmatpush1.xpose.msra.mxu0 0.0
    %3121 = vmatprep.subr.mxu0 0.0
    %3122 = vmatpush1.xpose.msra.mxu0 0.0
    %3123 = vmatprep.subr.mxu0 0.0
    %3124 = vmatpush1.xpose.msra.mxu0 0.0
    %3125 = vmatprep.subr.mxu0 0.0
    %3126 = vmatpush1.xpose.msra.mxu0 0.0
    %3127 = vmatprep.subr.mxu0 0.0
    %3128 = vmatpush1.xpose.msra.mxu0 0.0
    %3129 = vmatprep.subr.mxu0 0.0
    %3130 = vmatpush1.xpose.msra.mxu0 0.0
    %3131 = vmatprep.subr.mxu0 0.0
    %3132 = vmatpush1.xpose.msra.mxu0 0.0
    %3133 = vmatprep.subr.mxu0 0.0
    %3134 = vmatpush1.xpose.msra.mxu0 0.0
    %3135 = vmatprep.subr.mxu0 0.0
    %3136 = vmatpush1.xpose.msra.mxu0 0.0
    %3137 = vmatprep.subr.mxu0 0.0
    %3138 = vmatpush1.xpose.msra.mxu0 0.0
    %3139 = vmatprep.subr.mxu0 0.0
    %3140 = vmatpush1.xpose.msra.mxu0 0.0
    %3141 = vmatprep.subr.mxu0 0.0
    %3142 = vmatpush1.xpose.msra.mxu0 0.0
    %3143 = vmatprep.subr.mxu0 0.0
    %3144 = vmatpush1.xpose.msra.mxu0 0.0
    %3145 = vmatprep.mubr.f32.mxu0 0.0
    %3146 = vmatmul.mubr.f32.gmra.mrb[0].mxu0 %v3076
    %v3147 = vpop.f32.mrb[0].mxu0
    %v3148 = vadd.f32 0.0, %v3147
    %v3149 = vpop.f32.mrb[0].mxu0
    %3150 = vdwg.mxu0
    %v3152 = vsel %vm624, %v2799, 0
    %v3155 = vsel %vm624, %v2511, 0
    %3157 = vmatprep.subr.mxu0 0.0
    %3158 = vmatpush1.xpose.msra.mxu0 %v3155
    %3159 = vmatprep.subr.mxu0 0.0
    %3160 = vmatpush1.xpose.msra.mxu0 0.0
    %3161 = vmatprep.subr.mxu0 0.0
    %3162 = vmatpush1.xpose.msra.mxu0 0.0
    %3163 = vmatprep.subr.mxu0 0.0
    %3164 = vmatpush1.xpose.msra.mxu0 0.0
    %3165 = vmatprep.subr.mxu0 0.0
    %3166 = vmatpush1.xpose.msra.mxu0 0.0
    %3167 = vmatprep.subr.mxu0 0.0
    %3168 = vmatpush1.xpose.msra.mxu0 0.0
    %3169 = vmatprep.subr.mxu0 0.0
    %3170 = vmatpush1.xpose.msra.mxu0 0.0
    %3171 = vmatprep.subr.mxu0 0.0
    %3172 = vmatpush1.xpose.msra.mxu0 0.0
    %3173 = vmatprep.subr.mxu0 0.0
    %3174 = vmatpush1.xpose.msra.mxu0 0.0
    %3175 = vmatprep.subr.mxu0 0.0
    %3176 = vmatpush1.xpose.msra.mxu0 0.0
    %3177 = vmatprep.subr.mxu0 0.0
    %3178 = vmatpush1.xpose.msra.mxu0 0.0
    %3179 = vmatprep.subr.mxu0 0.0
    %3180 = vmatpush1.xpose.msra.mxu0 0.0
    %3181 = vmatprep.subr.mxu0 0.0
    %3182 = vmatpush1.xpose.msra.mxu0 0.0
    %3183 = vmatprep.subr.mxu0 0.0
    %3184 = vmatpush1.xpose.msra.mxu0 0.0
    %3185 = vmatprep.subr.mxu0 0.0
    %3186 = vmatpush1.xpose.msra.mxu0 0.0
    %3187 = vmatprep.subr.mxu0 0.0
    %3188 = vmatpush1.xpose.msra.mxu0 0.0
    %3189 = vmatprep.subr.mxu0 0.0
    %3190 = vmatpush1.xpose.msra.mxu0 0.0
    %3191 = vmatprep.subr.mxu0 0.0
    %3192 = vmatpush1.xpose.msra.mxu0 0.0
    %3193 = vmatprep.subr.mxu0 0.0
    %3194 = vmatpush1.xpose.msra.mxu0 0.0
    %3195 = vmatprep.subr.mxu0 0.0
    %3196 = vmatpush1.xpose.msra.mxu0 0.0
    %3197 = vmatprep.subr.mxu0 0.0
    %3198 = vmatpush1.xpose.msra.mxu0 0.0
    %3199 = vmatprep.subr.mxu0 0.0
    %3200 = vmatpush1.xpose.msra.mxu0 0.0
    %3201 = vmatprep.subr.mxu0 0.0
    %3202 = vmatpush1.xpose.msra.mxu0 0.0
    %3203 = vmatprep.subr.mxu0 0.0
    %3204 = vmatpush1.xpose.msra.mxu0 0.0
    %3205 = vmatprep.subr.mxu0 0.0
    %3206 = vmatpush1.xpose.msra.mxu0 0.0
    %3207 = vmatprep.subr.mxu0 0.0
    %3208 = vmatpush1.xpose.msra.mxu0 0.0
    %3209 = vmatprep.subr.mxu0 0.0
    %3210 = vmatpush1.xpose.msra.mxu0 0.0
    %3211 = vmatprep.subr.mxu0 0.0
    %3212 = vmatpush1.xpose.msra.mxu0 0.0
    %3213 = vmatprep.subr.mxu0 0.0
    %3214 = vmatpush1.xpose.msra.mxu0 0.0
    %3215 = vmatprep.subr.mxu0 0.0
    %3216 = vmatpush1.xpose.msra.mxu0 0.0
    %3217 = vmatprep.subr.mxu0 0.0
    %3218 = vmatpush1.xpose.msra.mxu0 0.0
    %3219 = vmatprep.subr.mxu0 0.0
    %3220 = vmatpush1.xpose.msra.mxu0 0.0
    %3221 = vmatprep.mubr.f32.mxu0 0.0
    %3222 = vmatmul.mubr.f32.gmra.mrb[0].mxu0 %v3152
    %v3223 = vpop.f32.mrb[0].mxu0
    %v3224 = vadd.f32 0.0, %v3223
    %v3225 = vpop.f32.mrb[0].mxu0
    %3226 = vdwg.mxu0
    %v3228 = vsel %vm624, %v2800, 0
    %v3231 = vsel %vm624, %v2512, 0
    %3233 = vmatprep.subr.mxu0 0.0
    %3234 = vmatpush1.xpose.msra.mxu0 %v3231
    %3235 = vmatprep.subr.mxu0 0.0
    %3236 = vmatpush1.xpose.msra.mxu0 0.0
    %3237 = vmatprep.subr.mxu0 0.0
    %3238 = vmatpush1.xpose.msra.mxu0 0.0
    %3239 = vmatprep.subr.mxu0 0.0
    %3240 = vmatpush1.xpose.msra.mxu0 0.0
    %3241 = vmatprep.subr.mxu0 0.0
    %3242 = vmatpush1.xpose.msra.mxu0 0.0
    %3243 = vmatprep.subr.mxu0 0.0
    %3244 = vmatpush1.xpose.msra.mxu0 0.0
    %3245 = vmatprep.subr.mxu0 0.0
    %3246 = vmatpush1.xpose.msra.mxu0 0.0
    %3247 = vmatprep.subr.mxu0 0.0
    %3248 = vmatpush1.xpose.msra.mxu0 0.0
    %3249 = vmatprep.subr.mxu0 0.0
    %3250 = vmatpush1.xpose.msra.mxu0 0.0
    %3251 = vmatprep.subr.mxu0 0.0
    %3252 = vmatpush1.xpose.msra.mxu0 0.0
    %3253 = vmatprep.subr.mxu0 0.0
    %3254 = vmatpush1.xpose.msra.mxu0 0.0
    %3255 = vmatprep.subr.mxu0 0.0
    %3256 = vmatpush1.xpose.msra.mxu0 0.0
    %3257 = vmatprep.subr.mxu0 0.0
    %3258 = vmatpush1.xpose.msra.mxu0 0.0
    %3259 = vmatprep.subr.mxu0 0.0
    %3260 = vmatpush1.xpose.msra.mxu0 0.0
    %3261 = vmatprep.subr.mxu0 0.0
    %3262 = vmatpush1.xpose.msra.mxu0 0.0
    %3263 = vmatprep.subr.mxu0 0.0
    %3264 = vmatpush1.xpose.msra.mxu0 0.0
    %3265 = vmatprep.subr.mxu0 0.0
    %3266 = vmatpush1.xpose.msra.mxu0 0.0
    %3267 = vmatprep.subr.mxu0 0.0
    %3268 = vmatpush1.xpose.msra.mxu0 0.0
    %3269 = vmatprep.subr.mxu0 0.0
    %3270 = vmatpush1.xpose.msra.mxu0 0.0
    %3271 = vmatprep.subr.mxu0 0.0
    %3272 = vmatpush1.xpose.msra.mxu0 0.0
    %3273 = vmatprep.subr.mxu0 0.0
    %3274 = vmatpush1.xpose.msra.mxu0 0.0
    %3275 = vmatprep.subr.mxu0 0.0
    %3276 = vmatpush1.xpose.msra.mxu0 0.0
    %3277 = vmatprep.subr.mxu0 0.0
    %3278 = vmatpush1.xpose.msra.mxu0 0.0
    %3279 = vmatprep.subr.mxu0 0.0
    %3280 = vmatpush1.xpose.msra.mxu0 0.0
    %3281 = vmatprep.subr.mxu0 0.0
    %3282 = vmatpush1.xpose.msra.mxu0 0.0
    %3283 = vmatprep.subr.mxu0 0.0
    %3284 = vmatpush1.xpose.msra.mxu0 0.0
    %3285 = vmatprep.subr.mxu0 0.0
    %3286 = vmatpush1.xpose.msra.mxu0 0.0
    %3287 = vmatprep.subr.mxu0 0.0
    %3288 = vmatpush1.xpose.msra.mxu0 0.0
    %3289 = vmatprep.subr.mxu0 0.0
    %3290 = vmatpush1.xpose.msra.mxu0 0.0
    %3291 = vmatprep.subr.mxu0 0.0
    %3292 = vmatpush1.xpose.msra.mxu0 0.0
    %3293 = vmatprep.subr.mxu0 0.0
    %3294 = vmatpush1.xpose.msra.mxu0 0.0
    %3295 = vmatprep.subr.mxu0 0.0
    %3296 = vmatpush1.xpose.msra.mxu0 0.0
    %3297 = vmatprep.mubr.f32.mxu0 0.0
    %3298 = vmatmul.mubr.f32.gmra.mrb[0].mxu0 %v3228
    %v3299 = vpop.f32.mrb[0].mxu0
    %v3300 = vadd.f32 0.0, %v3299
    %v3301 = vpop.f32.mrb[0].mxu0
    %3302 = vdwg.mxu0
    %v3304 = vsel %vm624, %v2831, 0
    %v3307 = vsel %vm624, %v2543, 0
    %3309 = vmatprep.subr.mxu0 0.0
    %3310 = vmatpush1.xpose.msra.mxu0 %v3307
    %3311 = vmatprep.subr.mxu0 0.0
    %3312 = vmatpush1.xpose.msra.mxu0 0.0
    %3313 = vmatprep.subr.mxu0 0.0
    %3314 = vmatpush1.xpose.msra.mxu0 0.0
    %3315 = vmatprep.subr.mxu0 0.0
    %3316 = vmatpush1.xpose.msra.mxu0 0.0
    %3317 = vmatprep.subr.mxu0 0.0
    %3318 = vmatpush1.xpose.msra.mxu0 0.0
    %3319 = vmatprep.subr.mxu0 0.0
    %3320 = vmatpush1.xpose.msra.mxu0 0.0
    %3321 = vmatprep.subr.mxu0 0.0
    %3322 = vmatpush1.xpose.msra.mxu0 0.0
    %3323 = vmatprep.subr.mxu0 0.0
    %3324 = vmatpush1.xpose.msra.mxu0 0.0
    %3325 = vmatprep.subr.mxu0 0.0
    %3326 = vmatpush1.xpose.msra.mxu0 0.0
    %3327 = vmatprep.subr.mxu0 0.0
    %3328 = vmatpush1.xpose.msra.mxu0 0.0
    %3329 = vmatprep.subr.mxu0 0.0
    %3330 = vmatpush1.xpose.msra.mxu0 0.0
    %3331 = vmatprep.subr.mxu0 0.0
    %3332 = vmatpush1.xpose.msra.mxu0 0.0
    %3333 = vmatprep.subr.mxu0 0.0
    %3334 = vmatpush1.xpose.msra.mxu0 0.0
    %3335 = vmatprep.subr.mxu0 0.0
    %3336 = vmatpush1.xpose.msra.mxu0 0.0
    %3337 = vmatprep.subr.mxu0 0.0
    %3338 = vmatpush1.xpose.msra.mxu0 0.0
    %3339 = vmatprep.subr.mxu0 0.0
    %3340 = vmatpush1.xpose.msra.mxu0 0.0
    %3341 = vmatprep.subr.mxu0 0.0
    %3342 = vmatpush1.xpose.msra.mxu0 0.0
    %3343 = vmatprep.subr.mxu0 0.0
    %3344 = vmatpush1.xpose.msra.mxu0 0.0
    %3345 = vmatprep.subr.mxu0 0.0
    %3346 = vmatpush1.xpose.msra.mxu0 0.0
    %3347 = vmatprep.subr.mxu0 0.0
    %3348 = vmatpush1.xpose.msra.mxu0 0.0
    %3349 = vmatprep.subr.mxu0 0.0
    %3350 = vmatpush1.xpose.msra.mxu0 0.0
    %3351 = vmatprep.subr.mxu0 0.0
    %3352 = vmatpush1.xpose.msra.mxu0 0.0
    %3353 = vmatprep.subr.mxu0 0.0
    %3354 = vmatpush1.xpose.msra.mxu0 0.0
    %3355 = vmatprep.subr.mxu0 0.0
    %3356 = vmatpush1.xpose.msra.mxu0 0.0
    %3357 = vmatprep.subr.mxu0 0.0
    %3358 = vmatpush1.xpose.msra.mxu0 0.0
    %3359 = vmatprep.subr.mxu0 0.0
    %3360 = vmatpush1.xpose.msra.mxu0 0.0
    %3361 = vmatprep.subr.mxu0 0.0
    %3362 = vmatpush1.xpose.msra.mxu0 0.0
    %3363 = vmatprep.subr.mxu0 0.0
    %3364 = vmatpush1.xpose.msra.mxu0 0.0
    %3365 = vmatprep.subr.mxu0 0.0
    %3366 = vmatpush1.xpose.msra.mxu0 0.0
    %3367 = vmatprep.subr.mxu0 0.0
    %3368 = vmatpush1.xpose.msra.mxu0 0.0
    %3369 = vmatprep.subr.mxu0 0.0
    %3370 = vmatpush1.xpose.msra.mxu0 0.0
    %3371 = vmatprep.subr.mxu0 0.0
    %3372 = vmatpush1.xpose.msra.mxu0 0.0
    %3373 = vmatprep.mubr.f32.mxu0 0.0
    %3374 = vmatmul.mubr.f32.gmra.mrb[0].mxu0 %v3304
    %v3375 = vpop.f32.mrb[0].mxu0
    %v3376 = vadd.f32 0.0, %v3375
    %v3377 = vpop.f32.mrb[0].mxu0
    %3378 = vdwg.mxu0
    %v3380 = vsel %vm624, %v2832, 0
    %v3383 = vsel %vm624, %v2544, 0
    %3385 = vmatprep.subr.mxu0 0.0
    %3386 = vmatpush1.xpose.msra.mxu0 %v3383
    %3387 = vmatprep.subr.mxu0 0.0
    %3388 = vmatpush1.xpose.msra.mxu0 0.0
    %3389 = vmatprep.subr.mxu0 0.0
    %3390 = vmatpush1.xpose.msra.mxu0 0.0
    %3391 = vmatprep.subr.mxu0 0.0
    %3392 = vmatpush1.xpose.msra.mxu0 0.0
    %3393 = vmatprep.subr.mxu0 0.0
    %3394 = vmatpush1.xpose.msra.mxu0 0.0
    %3395 = vmatprep.subr.mxu0 0.0
    %3396 = vmatpush1.xpose.msra.mxu0 0.0
    %3397 = vmatprep.subr.mxu0 0.0
    %3398 = vmatpush1.xpose.msra.mxu0 0.0
    %3399 = vmatprep.subr.mxu0 0.0
    %3400 = vmatpush1.xpose.msra.mxu0 0.0
    %3401 = vmatprep.subr.mxu0 0.0
    %3402 = vmatpush1.xpose.msra.mxu0 0.0
    %3403 = vmatprep.subr.mxu0 0.0
    %3404 = vmatpush1.xpose.msra.mxu0 0.0
    %3405 = vmatprep.subr.mxu0 0.0
    %3406 = vmatpush1.xpose.msra.mxu0 0.0
    %3407 = vmatprep.subr.mxu0 0.0
    %3408 = vmatpush1.xpose.msra.mxu0 0.0
    %3409 = vmatprep.subr.mxu0 0.0
    %3410 = vmatpush1.xpose.msra.mxu0 0.0
    %3411 = vmatprep.subr.mxu0 0.0
    %3412 = vmatpush1.xpose.msra.mxu0 0.0
    %3413 = vmatprep.subr.mxu0 0.0
    %3414 = vmatpush1.xpose.msra.mxu0 0.0
    %3415 = vmatprep.subr.mxu0 0.0
    %3416 = vmatpush1.xpose.msra.mxu0 0.0
    %3417 = vmatprep.subr.mxu0 0.0
    %3418 = vmatpush1.xpose.msra.mxu0 0.0
    %3419 = vmatprep.subr.mxu0 0.0
    %3420 = vmatpush1.xpose.msra.mxu0 0.0
    %3421 = vmatprep.subr.mxu0 0.0
    %3422 = vmatpush1.xpose.msra.mxu0 0.0
    %3423 = vmatprep.subr.mxu0 0.0
    %3424 = vmatpush1.xpose.msra.mxu0 0.0
    %3425 = vmatprep.subr.mxu0 0.0
    %3426 = vmatpush1.xpose.msra.mxu0 0.0
    %3427 = vmatprep.subr.mxu0 0.0
    %3428 = vmatpush1.xpose.msra.mxu0 0.0
    %3429 = vmatprep.subr.mxu0 0.0
    %3430 = vmatpush1.xpose.msra.mxu0 0.0
    %3431 = vmatprep.subr.mxu0 0.0
    %3432 = vmatpush1.xpose.msra.mxu0 0.0
    %3433 = vmatprep.subr.mxu0 0.0
    %3434 = vmatpush1.xpose.msra.mxu0 0.0
    %3435 = vmatprep.subr.mxu0 0.0
    %3436 = vmatpush1.xpose.msra.mxu0 0.0
    %3437 = vmatprep.subr.mxu0 0.0
    %3438 = vmatpush1.xpose.msra.mxu0 0.0
    %3439 = vmatprep.subr.mxu0 0.0
    %3440 = vmatpush1.xpose.msra.mxu0 0.0
    %3441 = vmatprep.subr.mxu0 0.0
    %3442 = vmatpush1.xpose.msra.mxu0 0.0
    %3443 = vmatprep.subr.mxu0 0.0
    %3444 = vmatpush1.xpose.msra.mxu0 0.0
    %3445 = vmatprep.subr.mxu0 0.0
    %3446 = vmatpush1.xpose.msra.mxu0 0.0
    %3447 = vmatprep.subr.mxu0 0.0
    %3448 = vmatpush1.xpose.msra.mxu0 0.0
    %3449 = vmatprep.mubr.f32.mxu0 0.0
    %3450 = vmatmul.mubr.f32.gmra.mrb[0].mxu0 %v3380
    %v3451 = vpop.f32.mrb[0].mxu0
    %v3452 = vadd.f32 0.0, %v3451
    %v3453 = vpop.f32.mrb[0].mxu0
    %3454 = vdwg.mxu0
    %v3455 = vmul.f32 %v2920, 0.35355338
    %v3456 = vmul.f32 %v2996, 0.35355338
    %v3457 = vmul.f32 %v3072, 0.35355338
    %v3458 = vmul.f32 %v3148, 0.35355338
    %v3459 = vmul.f32 %v3224, 0.35355338
    %v3460 = vmul.f32 %v3300, 0.35355338
    %v3461 = vmul.f32 %v3376, 0.35355338
    %v3462 = vmul.f32 %v3452, 0.35355338
    %v3463 = vadd.f32 %v3455, %v72
    %v3464 = vadd.f32 %v3456, %v73
    %v3465 = vadd.f32 %v3457, %v72
    %v3466 = vadd.f32 %v3458, %v73
    %v3467 = vadd.f32 %v3459, %v72
    %v3468 = vadd.f32 %v3460, %v73
    %v3469 = vadd.f32 %v3461, %v72
    %v3470 = vadd.f32 %v3462, %v73
    %v3471 = vsel %vm624, %v3463, -inf
    %3472 = vmax.xlane.f32.xlu0 %v3471
    %v3473 = vpop.xlane.xlu0 %3472
    %v3474 = vsel %vm624, %v3464, -inf
    %3475 = vmax.xlane.f32.xlu0 %v3474
    %v3476 = vpop.xlane.xlu0 %3475
    %v3477 = vsel %vm624, %v3465, -inf
    %3478 = vmax.xlane.f32.xlu0 %v3477
    %v3479 = vpop.xlane.xlu0 %3478
    %v3480 = vsel %vm624, %v3466, -inf
    %3481 = vmax.xlane.f32.xlu0 %v3480
    %v3482 = vpop.xlane.xlu0 %3481
    %v3483 = vsel %vm624, %v3467, -inf
    %3484 = vmax.xlane.f32.xlu0 %v3483
    %v3485 = vpop.xlane.xlu0 %3484
    %v3486 = vsel %vm624, %v3468, -inf
    %3487 = vmax.xlane.f32.xlu0 %v3486
    %v3488 = vpop.xlane.xlu0 %3487
    %v3489 = vsel %vm624, %v3469, -inf
    %3490 = vmax.xlane.f32.xlu0 %v3489
    %v3491 = vpop.xlane.xlu0 %3490
    %v3492 = vsel %vm624, %v3470, -inf
    %3493 = vmax.xlane.f32.xlu0 %v3492
    %v3494 = vpop.xlane.xlu0 %3493
    %v3495 = vsub.f32 %v3463, %v3473
    %v3496 = vsub.f32 %v3464, %v3476
    %v3497 = vsub.f32 %v3465, %v3479
    %v3498 = vsub.f32 %v3466, %v3482
    %v3499 = vsub.f32 %v3467, %v3485
    %v3500 = vsub.f32 %v3468, %v3488
    %v3501 = vsub.f32 %v3469, %v3491
    %v3502 = vsub.f32 %v3470, %v3494
    %v3503 = vmul.f32 %v3495, 1.442695
    %v3504 = vpow.pop %v3503
    %v3505 = vmul.f32 %v3496, 1.442695
    %v3506 = vpow.pop %v3505
    %v3507 = vmul.f32 %v3497, 1.442695
    %v3508 = vpow.pop %v3507
    %v3509 = vmul.f32 %v3498, 1.442695
    %v3510 = vpow.pop %v3509
    %v3511 = vmul.f32 %v3499, 1.442695
    %v3512 = vpow.pop %v3511
    %v3513 = vmul.f32 %v3500, 1.442695
    %v3514 = vpow.pop %v3513
    %v3515 = vmul.f32 %v3501, 1.442695
    %v3516 = vpow.pop %v3515
    %v3517 = vmul.f32 %v3502, 1.442695
    %v3518 = vpow.pop %v3517
    %v3519 = vsel %vm624, %v3504, 0.0
    %3520 = vadd.xlane.f32.xlu0 %v3519
    %v3521 = vpop.xlane.xlu0 %3520
    %v3522 = vsel %vm624, %v3506, 0.0
    %3523 = vadd.xlane.f32.xlu0 %v3522
    %v3524 = vpop.xlane.xlu0 %3523
    %v3525 = vsel %vm624, %v3508, 0.0
    %3526 = vadd.xlane.f32.xlu0 %v3525
    %v3527 = vpop.xlane.xlu0 %3526
    %v3528 = vsel %vm624, %v3510, 0.0
    %3529 = vadd.xlane.f32.xlu0 %v3528
    %v3530 = vpop.xlane.xlu0 %3529
    %v3531 = vsel %vm624, %v3512, 0.0
    %3532 = vadd.xlane.f32.xlu0 %v3531
    %v3533 = vpop.xlane.xlu0 %3532
    %v3534 = vsel %vm624, %v3514, 0.0
    %3535 = vadd.xlane.f32.xlu0 %v3534
    %v3536 = vpop.xlane.xlu0 %3535
    %v3537 = vsel %vm624, %v3516, 0.0
    %3538 = vadd.xlane.f32.xlu0 %v3537
    %v3539 = vpop.xlane.xlu0 %3538
    %v3540 = vsel %vm624, %v3518, 0.0
    %3541 = vadd.xlane.f32.xlu0 %v3540
    %v3542 = vpop.xlane.xlu0 %3541
    %v3543 = vrcp.pop %v3521
    %v3544 = vrcp.pop %v3524
    %v3545 = vrcp.pop %v3527
    %v3546 = vrcp.pop %v3530
    %v3547 = vrcp.pop %v3533
    %v3548 = vrcp.pop %v3536
    %v3549 = vrcp.pop %v3539
    %v3550 = vrcp.pop %v3542
    %v3551 = vmul.f32 %v3504, %v3543
    %v3552 = vmul.f32 %v3506, %v3544
    %v3553 = vmul.f32 %v3508, %v3545
    %v3554 = vmul.f32 %v3510, %v3546
    %v3555 = vmul.f32 %v3512, %v3547
    %v3556 = vmul.f32 %v3514, %v3548
    %v3557 = vmul.f32 %v3516, %v3549
    %v3558 = vmul.f32 %v3518, %v3550
    %v3560 = vsel %vm624, %v3551, 0
    %3562 = vmatprep.subr.mxu0 0.0
    %3563 = vmatpush1.msra.mxu0 %v2575
    %3564 = vmatprep.subr.mxu0 0.0
    %3565 = vmatpush1.msra.mxu0 0.0
    %3566 = vmatprep.subr.mxu0 0.0
    %3567 = vmatpush1.msra.mxu0 0.0
    %3568 = vmatprep.subr.mxu0 0.0
    %3569 = vmatpush1.msra.mxu0 0.0
    %3570 = vmatprep.subr.mxu0 0.0
    %3571 = vmatpush1.msra.mxu0 0.0
    %3572 = vmatprep.subr.mxu0 0.0
    %3573 = vmatpush1.msra.mxu0 0.0
    %3574 = vmatprep.subr.mxu0 0.0
    %3575 = vmatpush1.msra.mxu0 0.0
    %3576 = vmatprep.subr.mxu0 0.0
    %3577 = vmatpush1.msra.mxu0 0.0
    %3578 = vmatprep.subr.mxu0 0.0
    %3579 = vmatpush1.msra.mxu0 0.0
    %3580 = vmatprep.subr.mxu0 0.0
    %3581 = vmatpush1.msra.mxu0 0.0
    %3582 = vmatprep.subr.mxu0 0.0
    %3583 = vmatpush1.msra.mxu0 0.0
    %3584 = vmatprep.subr.mxu0 0.0
    %3585 = vmatpush1.msra.mxu0 0.0
    %3586 = vmatprep.subr.mxu0 0.0
    %3587 = vmatpush1.msra.mxu0 0.0
    %3588 = vmatprep.subr.mxu0 0.0
    %3589 = vmatpush1.msra.mxu0 0.0
    %3590 = vmatprep.subr.mxu0 0.0
    %3591 = vmatpush1.msra.mxu0 0.0
    %3592 = vmatprep.subr.mxu0 0.0
    %3593 = vmatpush1.msra.mxu0 0.0
    %3594 = vmatprep.subr.mxu0 0.0
    %3595 = vmatpush1.msra.mxu0 0.0
    %3596 = vmatprep.subr.mxu0 0.0
    %3597 = vmatpush1.msra.mxu0 0.0
    %3598 = vmatprep.subr.mxu0 0.0
    %3599 = vmatpush1.msra.mxu0 0.0
    %3600 = vmatprep.subr.mxu0 0.0
    %3601 = vmatpush1.msra.mxu0 0.0
    %3602 = vmatprep.subr.mxu0 0.0
    %3603 = vmatpush1.msra.mxu0 0.0
    %3604 = vmatprep.subr.mxu0 0.0
    %3605 = vmatpush1.msra.mxu0 0.0
    %3606 = vmatprep.subr.mxu0 0.0
    %3607 = vmatpush1.msra.mxu0 0.0
    %3608 = vmatprep.subr.mxu0 0.0
    %3609 = vmatpush1.msra.mxu0 0.0
    %3610 = vmatprep.subr.mxu0 0.0
    %3611 = vmatpush1.msra.mxu0 0.0
    %3612 = vmatprep.subr.mxu0 0.0
    %3613 = vmatpush1.msra.mxu0 0.0
    %3614 = vmatprep.subr.mxu0 0.0
    %3615 = vmatpush1.msra.mxu0 0.0
    %3616 = vmatprep.subr.mxu0 0.0
    %3617 = vmatpush1.msra.mxu0 0.0
    %3618 = vmatprep.subr.mxu0 0.0
    %3619 = vmatpush1.msra.mxu0 0.0
    %3620 = vmatprep.subr.mxu0 0.0
    %3621 = vmatpush1.msra.mxu0 0.0
    %3622 = vmatprep.subr.mxu0 0.0
    %3623 = vmatpush1.msra.mxu0 0.0
    %3624 = vmatprep.subr.mxu0 0.0
    %3625 = vmatpush1.msra.mxu0 0.0
    %3626 = vmatprep.mubr.f32.mxu0 0.0
    %3627 = vmatmul.mubr.f32.gmra.mrb[0].mxu0 %v3560
    %v3628 = vpop.f32.mrb[0].mxu0
    %v3629 = vadd.f32 0.0, %v3628
    %v3630 = vpop.f32.mrb[0].mxu0
    %3631 = vdwg.mxu0
    %v3633 = vsel %vm624, %v3552, 0
    %3635 = vmatprep.subr.mxu0 0.0
    %3636 = vmatpush1.msra.mxu0 %v2576
    %3637 = vmatprep.subr.mxu0 0.0
    %3638 = vmatpush1.msra.mxu0 0.0
    %3639 = vmatprep.subr.mxu0 0.0
    %3640 = vmatpush1.msra.mxu0 0.0
    %3641 = vmatprep.subr.mxu0 0.0
    %3642 = vmatpush1.msra.mxu0 0.0
    %3643 = vmatprep.subr.mxu0 0.0
    %3644 = vmatpush1.msra.mxu0 0.0
    %3645 = vmatprep.subr.mxu0 0.0
    %3646 = vmatpush1.msra.mxu0 0.0
    %3647 = vmatprep.subr.mxu0 0.0
    %3648 = vmatpush1.msra.mxu0 0.0
    %3649 = vmatprep.subr.mxu0 0.0
    %3650 = vmatpush1.msra.mxu0 0.0
    %3651 = vmatprep.subr.mxu0 0.0
    %3652 = vmatpush1.msra.mxu0 0.0
    %3653 = vmatprep.subr.mxu0 0.0
    %3654 = vmatpush1.msra.mxu0 0.0
    %3655 = vmatprep.subr.mxu0 0.0
    %3656 = vmatpush1.msra.mxu0 0.0
    %3657 = vmatprep.subr.mxu0 0.0
    %3658 = vmatpush1.msra.mxu0 0.0
    %3659 = vmatprep.subr.mxu0 0.0
    %3660 = vmatpush1.msra.mxu0 0.0
    %3661 = vmatprep.subr.mxu0 0.0
    %3662 = vmatpush1.msra.mxu0 0.0
    %3663 = vmatprep.subr.mxu0 0.0
    %3664 = vmatpush1.msra.mxu0 0.0
    %3665 = vmatprep.subr.mxu0 0.0
    %3666 = vmatpush1.msra.mxu0 0.0
    %3667 = vmatprep.subr.mxu0 0.0
    %3668 = vmatpush1.msra.mxu0 0.0
    %3669 = vmatprep.subr.mxu0 0.0
    %3670 = vmatpush1.msra.mxu0 0.0
    %3671 = vmatprep.subr.mxu0 0.0
    %3672 = vmatpush1.msra.mxu0 0.0
    %3673 = vmatprep.subr.mxu0 0.0
    %3674 = vmatpush1.msra.mxu0 0.0
    %3675 = vmatprep.subr.mxu0 0.0
    %3676 = vmatpush1.msra.mxu0 0.0
    %3677 = vmatprep.subr.mxu0 0.0
    %3678 = vmatpush1.msra.mxu0 0.0
    %3679 = vmatprep.subr.mxu0 0.0
    %3680 = vmatpush1.msra.mxu0 0.0
    %3681 = vmatprep.subr.mxu0 0.0
    %3682 = vmatpush1.msra.mxu0 0.0
    %3683 = vmatprep.subr.mxu0 0.0
    %3684 = vmatpush1.msra.mxu0 0.0
    %3685 = vmatprep.subr.mxu0 0.0
    %3686 = vmatpush1.msra.mxu0 0.0
    %3687 = vmatprep.subr.mxu0 0.0
    %3688 = vmatpush1.msra.mxu0 0.0
    %3689 = vmatprep.subr.mxu0 0.0
    %3690 = vmatpush1.msra.mxu0 0.0
    %3691 = vmatprep.subr.mxu0 0.0
    %3692 = vmatpush1.msra.mxu0 0.0
    %3693 = vmatprep.subr.mxu0 0.0
    %3694 = vmatpush1.msra.mxu0 0.0
    %3695 = vmatprep.subr.mxu0 0.0
    %3696 = vmatpush1.msra.mxu0 0.0
    %3697 = vmatprep.subr.mxu0 0.0
    %3698 = vmatpush1.msra.mxu0 0.0
    %3699 = vmatprep.mubr.f32.mxu0 0.0
    %3700 = vmatmul.mubr.f32.gmra.mrb[0].mxu0 %v3633
    %v3701 = vpop.f32.mrb[0].mxu0
    %v3702 = vadd.f32 0.0, %v3701
    %v3703 = vpop.f32.mrb[0].mxu0
    %3704 = vdwg.mxu0
    %v3706 = vsel %vm624, %v3553, 0
    %3708 = vmatprep.subr.mxu0 0.0
    %3709 = vmatpush1.msra.mxu0 %v2607
    %3710 = vmatprep.subr.mxu0 0.0
    %3711 = vmatpush1.msra.mxu0 0.0
    %3712 = vmatprep.subr.mxu0 0.0
    %3713 = vmatpush1.msra.mxu0 0.0
    %3714 = vmatprep.subr.mxu0 0.0
    %3715 = vmatpush1.msra.mxu0 0.0
    %3716 = vmatprep.subr.mxu0 0.0
    %3717 = vmatpush1.msra.mxu0 0.0
    %3718 = vmatprep.subr.mxu0 0.0
    %3719 = vmatpush1.msra.mxu0 0.0
    %3720 = vmatprep.subr.mxu0 0.0
    %3721 = vmatpush1.msra.mxu0 0.0
    %3722 = vmatprep.subr.mxu0 0.0
    %3723 = vmatpush1.msra.mxu0 0.0
    %3724 = vmatprep.subr.mxu0 0.0
    %3725 = vmatpush1.msra.mxu0 0.0
    %3726 = vmatprep.subr.mxu0 0.0
    %3727 = vmatpush1.msra.mxu0 0.0
    %3728 = vmatprep.subr.mxu0 0.0
    %3729 = vmatpush1.msra.mxu0 0.0
    %3730 = vmatprep.subr.mxu0 0.0
    %3731 = vmatpush1.msra.mxu0 0.0
    %3732 = vmatprep.subr.mxu0 0.0
    %3733 = vmatpush1.msra.mxu0 0.0
    %3734 = vmatprep.subr.mxu0 0.0
    %3735 = vmatpush1.msra.mxu0 0.0
    %3736 = vmatprep.subr.mxu0 0.0
    %3737 = vmatpush1.msra.mxu0 0.0
    %3738 = vmatprep.subr.mxu0 0.0
    %3739 = vmatpush1.msra.mxu0 0.0
    %3740 = vmatprep.subr.mxu0 0.0
    %3741 = vmatpush1.msra.mxu0 0.0
    %3742 = vmatprep.subr.mxu0 0.0
    %3743 = vmatpush1.msra.mxu0 0.0
    %3744 = vmatprep.subr.mxu0 0.0
    %3745 = vmatpush1.msra.mxu0 0.0
    %3746 = vmatprep.subr.mxu0 0.0
    %3747 = vmatpush1.msra.mxu0 0.0
    %3748 = vmatprep.subr.mxu0 0.0
    %3749 = vmatpush1.msra.mxu0 0.0
    %3750 = vmatprep.subr.mxu0 0.0
    %3751 = vmatpush1.msra.mxu0 0.0
    %3752 = vmatprep.subr.mxu0 0.0
    %3753 = vmatpush1.msra.mxu0 0.0
    %3754 = vmatprep.subr.mxu0 0.0
    %3755 = vmatpush1.msra.mxu0 0.0
    %3756 = vmatprep.subr.mxu0 0.0
    %3757 = vmatpush1.msra.mxu0 0.0
    %3758 = vmatprep.subr.mxu0 0.0
    %3759 = vmatpush1.msra.mxu0 0.0
    %3760 = vmatprep.subr.mxu0 0.0
    %3761 = vmatpush1.msra.mxu0 0.0
    %3762 = vmatprep.subr.mxu0 0.0
    %3763 = vmatpush1.msra.mxu0 0.0
    %3764 = vmatprep.subr.mxu0 0.0
    %3765 = vmatpush1.msra.mxu0 0.0
    %3766 = vmatprep.subr.mxu0 0.0
    %3767 = vmatpush1.msra.mxu0 0.0
    %3768 = vmatprep.subr.mxu0 0.0
    %3769 = vmatpush1.msra.mxu0 0.0
    %3770 = vmatprep.subr.mxu0 0.0
    %3771 = vmatpush1.msra.mxu0 0.0
    %3772 = vmatprep.mubr.f32.mxu0 0.0
    %3773 = vmatmul.mubr.f32.gmra.mrb[0].mxu0 %v3706
    %v3774 = vpop.f32.mrb[0].mxu0
    %v3775 = vadd.f32 0.0, %v3774
    %v3776 = vpop.f32.mrb[0].mxu0
    %3777 = vdwg.mxu0
    %v3779 = vsel %vm624, %v3554, 0
    %3781 = vmatprep.subr.mxu0 0.0
    %3782 = vmatpush1.msra.mxu0 %v2608
    %3783 = vmatprep.subr.mxu0 0.0
    %3784 = vmatpush1.msra.mxu0 0.0
    %3785 = vmatprep.subr.mxu0 0.0
    %3786 = vmatpush1.msra.mxu0 0.0
    %3787 = vmatprep.subr.mxu0 0.0
    %3788 = vmatpush1.msra.mxu0 0.0
    %3789 = vmatprep.subr.mxu0 0.0
    %3790 = vmatpush1.msra.mxu0 0.0
    %3791 = vmatprep.subr.mxu0 0.0
    %3792 = vmatpush1.msra.mxu0 0.0
    %3793 = vmatprep.subr.mxu0 0.0
    %3794 = vmatpush1.msra.mxu0 0.0
    %3795 = vmatprep.subr.mxu0 0.0
    %3796 = vmatpush1.msra.mxu0 0.0
    %3797 = vmatprep.subr.mxu0 0.0
    %3798 = vmatpush1.msra.mxu0 0.0
    %3799 = vmatprep.subr.mxu0 0.0
    %3800 = vmatpush1.msra.mxu0 0.0
    %3801 = vmatprep.subr.mxu0 0.0
    %3802 = vmatpush1.msra.mxu0 0.0
    %3803 = vmatprep.subr.mxu0 0.0
    %3804 = vmatpush1.msra.mxu0 0.0
    %3805 = vmatprep.subr.mxu0 0.0
    %3806 = vmatpush1.msra.mxu0 0.0
    %3807 = vmatprep.subr.mxu0 0.0
    %3808 = vmatpush1.msra.mxu0 0.0
    %3809 = vmatprep.subr.mxu0 0.0
    %3810 = vmatpush1.msra.mxu0 0.0
    %3811 = vmatprep.subr.mxu0 0.0
    %3812 = vmatpush1.msra.mxu0 0.0
    %3813 = vmatprep.subr.mxu0 0.0
    %3814 = vmatpush1.msra.mxu0 0.0
    %3815 = vmatprep.subr.mxu0 0.0
    %3816 = vmatpush1.msra.mxu0 0.0
    %3817 = vmatprep.subr.mxu0 0.0
    %3818 = vmatpush1.msra.mxu0 0.0
    %3819 = vmatprep.subr.mxu0 0.0
    %3820 = vmatpush1.msra.mxu0 0.0
    %3821 = vmatprep.subr.mxu0 0.0
    %3822 = vmatpush1.msra.mxu0 0.0
    %3823 = vmatprep.subr.mxu0 0.0
    %3824 = vmatpush1.msra.mxu0 0.0
    %3825 = vmatprep.subr.mxu0 0.0
    %3826 = vmatpush1.msra.mxu0 0.0
    %3827 = vmatprep.subr.mxu0 0.0
    %3828 = vmatpush1.msra.mxu0 0.0
    %3829 = vmatprep.subr.mxu0 0.0
    %3830 = vmatpush1.msra.mxu0 0.0
    %3831 = vmatprep.subr.mxu0 0.0
    %3832 = vmatpush1.msra.mxu0 0.0
    %3833 = vmatprep.subr.mxu0 0.0
    %3834 = vmatpush1.msra.mxu0 0.0
    %3835 = vmatprep.subr.mxu0 0.0
    %3836 = vmatpush1.msra.mxu0 0.0
    %3837 = vmatprep.subr.mxu0 0.0
    %3838 = vmatpush1.msra.mxu0 0.0
    %3839 = vmatprep.subr.mxu0 0.0
    %3840 = vmatpush1.msra.mxu0 0.0
    %3841 = vmatprep.subr.mxu0 0.0
    %3842 = vmatpush1.msra.mxu0 0.0
    %3843 = vmatprep.subr.mxu0 0.0
    %3844 = vmatpush1.msra.mxu0 0.0
    %3845 = vmatprep.mubr.f32.mxu0 0.0
    %3846 = vmatmul.mubr.f32.gmra.mrb[0].mxu0 %v3779
    %v3847 = vpop.f32.mrb[0].mxu0
    %v3848 = vadd.f32 0.0, %v3847
    %v3849 = vpop.f32.mrb[0].mxu0
    %3850 = vdwg.mxu0
    %v3852 = vsel %vm624, %v3555, 0
    %3854 = vmatprep.subr.mxu0 0.0
    %3855 = vmatpush1.msra.mxu0 %v2639
    %3856 = vmatprep.subr.mxu0 0.0
    %3857 = vmatpush1.msra.mxu0 0.0
    %3858 = vmatprep.subr.mxu0 0.0
    %3859 = vmatpush1.msra.mxu0 0.0
    %3860 = vmatprep.subr.mxu0 0.0
    %3861 = vmatpush1.msra.mxu0 0.0
    %3862 = vmatprep.subr.mxu0 0.0
    %3863 = vmatpush1.msra.mxu0 0.0
    %3864 = vmatprep.subr.mxu0 0.0
    %3865 = vmatpush1.msra.mxu0 0.0
    %3866 = vmatprep.subr.mxu0 0.0
    %3867 = vmatpush1.msra.mxu0 0.0
    %3868 = vmatprep.subr.mxu0 0.0
    %3869 = vmatpush1.msra.mxu0 0.0
    %3870 = vmatprep.subr.mxu0 0.0
    %3871 = vmatpush1.msra.mxu0 0.0
    %3872 = vmatprep.subr.mxu0 0.0
    %3873 = vmatpush1.msra.mxu0 0.0
    %3874 = vmatprep.subr.mxu0 0.0
    %3875 = vmatpush1.msra.mxu0 0.0
    %3876 = vmatprep.subr.mxu0 0.0
    %3877 = vmatpush1.msra.mxu0 0.0
    %3878 = vmatprep.subr.mxu0 0.0
    %3879 = vmatpush1.msra.mxu0 0.0
    %3880 = vmatprep.subr.mxu0 0.0
    %3881 = vmatpush1.msra.mxu0 0.0
    %3882 = vmatprep.subr.mxu0 0.0
    %3883 = vmatpush1.msra.mxu0 0.0
    %3884 = vmatprep.subr.mxu0 0.0
    %3885 = vmatpush1.msra.mxu0 0.0
    %3886 = vmatprep.subr.mxu0 0.0
    %3887 = vmatpush1.msra.mxu0 0.0
    %3888 = vmatprep.subr.mxu0 0.0
    %3889 = vmatpush1.msra.mxu0 0.0
    %3890 = vmatprep.subr.mxu0 0.0
    %3891 = vmatpush1.msra.mxu0 0.0
    %3892 = vmatprep.subr.mxu0 0.0
    %3893 = vmatpush1.msra.mxu0 0.0
    %3894 = vmatprep.subr.mxu0 0.0
    %3895 = vmatpush1.msra.mxu0 0.0
    %3896 = vmatprep.subr.mxu0 0.0
    %3897 = vmatpush1.msra.mxu0 0.0
    %3898 = vmatprep.subr.mxu0 0.0
    %3899 = vmatpush1.msra.mxu0 0.0
    %3900 = vmatprep.subr.mxu0 0.0
    %3901 = vmatpush1.msra.mxu0 0.0
    %3902 = vmatprep.subr.mxu0 0.0
    %3903 = vmatpush1.msra.mxu0 0.0
    %3904 = vmatprep.subr.mxu0 0.0
    %3905 = vmatpush1.msra.mxu0 0.0
    %3906 = vmatprep.subr.mxu0 0.0
    %3907 = vmatpush1.msra.mxu0 0.0
    %3908 = vmatprep.subr.mxu0 0.0
    %3909 = vmatpush1.msra.mxu0 0.0
    %3910 = vmatprep.subr.mxu0 0.0
    %3911 = vmatpush1.msra.mxu0 0.0
    %3912 = vmatprep.subr.mxu0 0.0
    %3913 = vmatpush1.msra.mxu0 0.0
    %3914 = vmatprep.subr.mxu0 0.0
    %3915 = vmatpush1.msra.mxu0 0.0
    %3916 = vmatprep.subr.mxu0 0.0
    %3917 = vmatpush1.msra.mxu0 0.0
    %3918 = vmatprep.mubr.f32.mxu0 0.0
    %3919 = vmatmul.mubr.f32.gmra.mrb[0].mxu0 %v3852
    %v3920 = vpop.f32.mrb[0].mxu0
    %v3921 = vadd.f32 0.0, %v3920
    %v3922 = vpop.f32.mrb[0].mxu0
    %3923 = vdwg.mxu0
    %v3925 = vsel %vm624, %v3556, 0
    %3927 = vmatprep.subr.mxu0 0.0
    %3928 = vmatpush1.msra.mxu0 %v2640
    %3929 = vmatprep.subr.mxu0 0.0
    %3930 = vmatpush1.msra.mxu0 0.0
    %3931 = vmatprep.subr.mxu0 0.0
    %3932 = vmatpush1.msra.mxu0 0.0
    %3933 = vmatprep.subr.mxu0 0.0
    %3934 = vmatpush1.msra.mxu0 0.0
    %3935 = vmatprep.subr.mxu0 0.0
    %3936 = vmatpush1.msra.mxu0 0.0
    %3937 = vmatprep.subr.mxu0 0.0
    %3938 = vmatpush1.msra.mxu0 0.0
    %3939 = vmatprep.subr.mxu0 0.0
    %3940 = vmatpush1.msra.mxu0 0.0
    %3941 = vmatprep.subr.mxu0 0.0
    %3942 = vmatpush1.msra.mxu0 0.0
    %3943 = vmatprep.subr.mxu0 0.0
    %3944 = vmatpush1.msra.mxu0 0.0
    %3945 = vmatprep.subr.mxu0 0.0
    %3946 = vmatpush1.msra.mxu0 0.0
    %3947 = vmatprep.subr.mxu0 0.0
    %3948 = vmatpush1.msra.mxu0 0.0
    %3949 = vmatprep.subr.mxu0 0.0
    %3950 = vmatpush1.msra.mxu0 0.0
    %3951 = vmatprep.subr.mxu0 0.0
    %3952 = vmatpush1.msra.mxu0 0.0
    %3953 = vmatprep.subr.mxu0 0.0
    %3954 = vmatpush1.msra.mxu0 0.0
    %3955 = vmatprep.subr.mxu0 0.0
    %3956 = vmatpush1.msra.mxu0 0.0
    %3957 = vmatprep.subr.mxu0 0.0
    %3958 = vmatpush1.msra.mxu0 0.0
    %3959 = vmatprep.subr.mxu0 0.0
    %3960 = vmatpush1.msra.mxu0 0.0
    %3961 = vmatprep.subr.mxu0 0.0
    %3962 = vmatpush1.msra.mxu0 0.0
    %3963 = vmatprep.subr.mxu0 0.0
    %3964 = vmatpush1.msra.mxu0 0.0
    %3965 = vmatprep.subr.mxu0 0.0
    %3966 = vmatpush1.msra.mxu0 0.0
    %3967 = vmatprep.subr.mxu0 0.0
    %3968 = vmatpush1.msra.mxu0 0.0
    %3969 = vmatprep.subr.mxu0 0.0
    %3970 = vmatpush1.msra.mxu0 0.0
    %3971 = vmatprep.subr.mxu0 0.0
    %3972 = vmatpush1.msra.mxu0 0.0
    %3973 = vmatprep.subr.mxu0 0.0
    %3974 = vmatpush1.msra.mxu0 0.0
    %3975 = vmatprep.subr.mxu0 0.0
    %3976 = vmatpush1.msra.mxu0 0.0
    %3977 = vmatprep.subr.mxu0 0.0
    %3978 = vmatpush1.msra.mxu0 0.0
    %3979 = vmatprep.subr.mxu0 0.0
    %3980 = vmatpush1.msra.mxu0 0.0
    %3981 = vmatprep.subr.mxu0 0.0
    %3982 = vmatpush1.msra.mxu0 0.0
    %3983 = vmatprep.subr.mxu0 0.0
    %3984 = vmatpush1.msra.mxu0 0.0
    %3985 = vmatprep.subr.mxu0 0.0
    %3986 = vmatpush1.msra.mxu0 0.0
    %3987 = vmatprep.subr.mxu0 0.0
    %3988 = vmatpush1.msra.mxu0 0.0
    %3989 = vmatprep.subr.mxu0 0.0
    %3990 = vmatpush1.msra.mxu0 0.0
    %3991 = vmatprep.mubr.f32.mxu0 0.0
    %3992 = vmatmul.mubr.f32.gmra.mrb[0].mxu0 %v3925
    %v3993 = vpop.f32.mrb[0].mxu0
    %v3994 = vadd.f32 0.0, %v3993
    %v3995 = vpop.f32.mrb[0].mxu0
    %3996 = vdwg.mxu0
    %v3998 = vsel %vm624, %v3557, 0
    %4000 = vmatprep.subr.mxu0 0.0
    %4001 = vmatpush1.msra.mxu0 %v2671
    %4002 = vmatprep.subr.mxu0 0.0
    %4003 = vmatpush1.msra.mxu0 0.0
    %4004 = vmatprep.subr.mxu0 0.0
    %4005 = vmatpush1.msra.mxu0 0.0
    %4006 = vmatprep.subr.mxu0 0.0
    %4007 = vmatpush1.msra.mxu0 0.0
    %4008 = vmatprep.subr.mxu0 0.0
    %4009 = vmatpush1.msra.mxu0 0.0
    %4010 = vmatprep.subr.mxu0 0.0
    %4011 = vmatpush1.msra.mxu0 0.0
    %4012 = vmatprep.subr.mxu0 0.0
    %4013 = vmatpush1.msra.mxu0 0.0
    %4014 = vmatprep.subr.mxu0 0.0
    %4015 = vmatpush1.msra.mxu0 0.0
    %4016 = vmatprep.subr.mxu0 0.0
    %4017 = vmatpush1.msra.mxu0 0.0
    %4018 = vmatprep.subr.mxu0 0.0
    %4019 = vmatpush1.msra.mxu0 0.0
    %4020 = vmatprep.subr.mxu0 0.0
    %4021 = vmatpush1.msra.mxu0 0.0
    %4022 = vmatprep.subr.mxu0 0.0
    %4023 = vmatpush1.msra.mxu0 0.0
    %4024 = vmatprep.subr.mxu0 0.0
    %4025 = vmatpush1.msra.mxu0 0.0
    %4026 = vmatprep.subr.mxu0 0.0
    %4027 = vmatpush1.msra.mxu0 0.0
    %4028 = vmatprep.subr.mxu0 0.0
    %4029 = vmatpush1.msra.mxu0 0.0
    %4030 = vmatprep.subr.mxu0 0.0
    %4031 = vmatpush1.msra.mxu0 0.0
    %4032 = vmatprep.subr.mxu0 0.0
    %4033 = vmatpush1.msra.mxu0 0.0
    %4034 = vmatprep.subr.mxu0 0.0
    %4035 = vmatpush1.msra.mxu0 0.0
    %4036 = vmatprep.subr.mxu0 0.0
    %4037 = vmatpush1.msra.mxu0 0.0
    %4038 = vmatprep.subr.mxu0 0.0
    %4039 = vmatpush1.msra.mxu0 0.0
    %4040 = vmatprep.subr.mxu0 0.0
    %4041 = vmatpush1.msra.mxu0 0.0
    %4042 = vmatprep.subr.mxu0 0.0
    %4043 = vmatpush1.msra.mxu0 0.0
    %4044 = vmatprep.subr.mxu0 0.0
    %4045 = vmatpush1.msra.mxu0 0.0
    %4046 = vmatprep.subr.mxu0 0.0
    %4047 = vmatpush1.msra.mxu0 0.0
    %4048 = vmatprep.subr.mxu0 0.0
    %4049 = vmatpush1.msra.mxu0 0.0
    %4050 = vmatprep.subr.mxu0 0.0
    %4051 = vmatpush1.msra.mxu0 0.0
    %4052 = vmatprep.subr.mxu0 0.0
    %4053 = vmatpush1.msra.mxu0 0.0
    %4054 = vmatprep.subr.mxu0 0.0
    %4055 = vmatpush1.msra.mxu0 0.0
    %4056 = vmatprep.subr.mxu0 0.0
    %4057 = vmatpush1.msra.mxu0 0.0
    %4058 = vmatprep.subr.mxu0 0.0
    %4059 = vmatpush1.msra.mxu0 0.0
    %4060 = vmatprep.subr.mxu0 0.0
    %4061 = vmatpush1.msra.mxu0 0.0
    %4062 = vmatprep.subr.mxu0 0.0
    %4063 = vmatpush1.msra.mxu0 0.0
    %4064 = vmatprep.mubr.f32.mxu0 0.0
    %4065 = vmatmul.mubr.f32.gmra.mrb[0].mxu0 %v3998
    %v4066 = vpop.f32.mrb[0].mxu0
    %v4067 = vadd.f32 0.0, %v4066
    %v4068 = vpop.f32.mrb[0].mxu0
    %4069 = vdwg.mxu0
    %v4071 = vsel %vm624, %v3558, 0
    %4073 = vmatprep.subr.mxu0 0.0
    %4074 = vmatpush1.msra.mxu0 %v2672
    %4075 = vmatprep.subr.mxu0 0.0
    %4076 = vmatpush1.msra.mxu0 0.0
    %4077 = vmatprep.subr.mxu0 0.0
    %4078 = vmatpush1.msra.mxu0 0.0
    %4079 = vmatprep.subr.mxu0 0.0
    %4080 = vmatpush1.msra.mxu0 0.0
    %4081 = vmatprep.subr.mxu0 0.0
    %4082 = vmatpush1.msra.mxu0 0.0
    %4083 = vmatprep.subr.mxu0 0.0
    %4084 = vmatpush1.msra.mxu0 0.0
    %4085 = vmatprep.subr.mxu0 0.0
    %4086 = vmatpush1.msra.mxu0 0.0
    %4087 = vmatprep.subr.mxu0 0.0
    %4088 = vmatpush1.msra.mxu0 0.0
    %4089 = vmatprep.subr.mxu0 0.0
    %4090 = vmatpush1.msra.mxu0 0.0
    %4091 = vmatprep.subr.mxu0 0.0
    %4092 = vmatpush1.msra.mxu0 0.0
    %4093 = vmatprep.subr.mxu0 0.0
    %4094 = vmatpush1.msra.mxu0 0.0
    %4095 = vmatprep.subr.mxu0 0.0
    %4096 = vmatpush1.msra.mxu0 0.0
    %4097 = vmatprep.subr.mxu0 0.0
    %4098 = vmatpush1.msra.mxu0 0.0
    %4099 = vmatprep.subr.mxu0 0.0
    %4100 = vmatpush1.msra.mxu0 0.0
    %4101 = vmatprep.subr.mxu0 0.0
    %4102 = vmatpush1.msra.mxu0 0.0
    %4103 = vmatprep.subr.mxu0 0.0
    %4104 = vmatpush1.msra.mxu0 0.0
    %4105 = vmatprep.subr.mxu0 0.0
    %4106 = vmatpush1.msra.mxu0 0.0
    %4107 = vmatprep.subr.mxu0 0.0
    %4108 = vmatpush1.msra.mxu0 0.0
    %4109 = vmatprep.subr.mxu0 0.0
    %4110 = vmatpush1.msra.mxu0 0.0
    %4111 = vmatprep.subr.mxu0 0.0
    %4112 = vmatpush1.msra.mxu0 0.0
    %4113 = vmatprep.subr.mxu0 0.0
    %4114 = vmatpush1.msra.mxu0 0.0
    %4115 = vmatprep.subr.mxu0 0.0
    %4116 = vmatpush1.msra.mxu0 0.0
    %4117 = vmatprep.subr.mxu0 0.0
    %4118 = vmatpush1.msra.mxu0 0.0
    %4119 = vmatprep.subr.mxu0 0.0
    %4120 = vmatpush1.msra.mxu0 0.0
    %4121 = vmatprep.subr.mxu0 0.0
    %4122 = vmatpush1.msra.mxu0 0.0
    %4123 = vmatprep.subr.mxu0 0.0
    %4124 = vmatpush1.msra.mxu0 0.0
    %4125 = vmatprep.subr.mxu0 0.0
    %4126 = vmatpush1.msra.mxu0 0.0
    %4127 = vmatprep.subr.mxu0 0.0
    %4128 = vmatpush1.msra.mxu0 0.0
    %4129 = vmatprep.subr.mxu0 0.0
    %4130 = vmatpush1.msra.mxu0 0.0
    %4131 = vmatprep.subr.mxu0 0.0
    %4132 = vmatpush1.msra.mxu0 0.0
    %4133 = vmatprep.subr.mxu0 0.0
    %4134 = vmatpush1.msra.mxu0 0.0
    %4135 = vmatprep.subr.mxu0 0.0
    %4136 = vmatpush1.msra.mxu0 0.0
    %4137 = vmatprep.mubr.f32.mxu0 0.0
    %4138 = vmatmul.mubr.f32.gmra.mrb[0].mxu0 %v4071
    %v4139 = vpop.f32.mrb[0].mxu0
    %v4140 = vadd.f32 0.0, %v4139
    %v4141 = vpop.f32.mrb[0].mxu0
    %4142 = vdwg.mxu0
    %4143 = vxpose.xlu0.b32.start [1/16] %v3629, 128
    %4144 = vxpose.xlu0.b32.cont [2/16] %v3702, 128
    %4145 = vxpose.xlu0.b32.cont [3/16] 0.0, 128
    %4146 = vxpose.xlu0.b32.cont [4/16] 0.0, 128
    %4147 = vxpose.xlu0.b32.cont [5/16] 0.0, 128
    %4148 = vxpose.xlu0.b32.cont [6/16] 0.0, 128
    %4149 = vxpose.xlu0.b32.cont [7/16] 0.0, 128
    %4150 = vxpose.xlu0.b32.cont [8/16] 0.0, 128
    %4151 = vxpose.xlu0.b32.cont [9/16] 0.0, 128
    %4152 = vxpose.xlu0.b32.cont [10/16] 0.0, 128
    %4153 = vxpose.xlu0.b32.cont [11/16] 0.0, 128
    %4154 = vxpose.xlu0.b32.cont [12/16] 0.0, 128
    %4155 = vxpose.xlu0.b32.cont [13/16] 0.0, 128
    %4156 = vxpose.xlu0.b32.cont [14/16] 0.0, 128
    %4157 = vxpose.xlu0.b32.cont [15/16] 0.0, 128
    %4158 = vxpose.xlu0.b32.end [16/16] 0.0, 128
    %v4159 = vpop.trf.xlu0
    %v4160 = vpop.trf.xlu0
    %v4161 = vpop.trf.xlu0
    %v4162 = vpop.trf.xlu0
    %v4163 = vpop.trf.xlu0
    %v4164 = vpop.trf.xlu0
    %v4165 = vpop.trf.xlu0
    %v4166 = vpop.trf.xlu0
    %v4167 = vpop.trf.xlu0
    %v4168 = vpop.trf.xlu0
    %v4169 = vpop.trf.xlu0
    %v4170 = vpop.trf.xlu0
    %v4171 = vpop.trf.xlu0
    %v4172 = vpop.trf.xlu0
    %v4173 = vpop.trf.xlu0
    %v4174 = vpop.trf.xlu0
    %4175 = vxpose.xlu0.b32.start [1/16] %v3775, 128
    %4176 = vxpose.xlu0.b32.cont [2/16] %v3848, 128
    %4177 = vxpose.xlu0.b32.cont [3/16] 0.0, 128
    %4178 = vxpose.xlu0.b32.cont [4/16] 0.0, 128
    %4179 = vxpose.xlu0.b32.cont [5/16] 0.0, 128
    %4180 = vxpose.xlu0.b32.cont [6/16] 0.0, 128
    %4181 = vxpose.xlu0.b32.cont [7/16] 0.0, 128
    %4182 = vxpose.xlu0.b32.cont [8/16] 0.0, 128
    %4183 = vxpose.xlu0.b32.cont [9/16] 0.0, 128
    %4184 = vxpose.xlu0.b32.cont [10/16] 0.0, 128
    %4185 = vxpose.xlu0.b32.cont [11/16] 0.0, 128
    %4186 = vxpose.xlu0.b32.cont [12/16] 0.0, 128
    %4187 = vxpose.xlu0.b32.cont [13/16] 0.0, 128
    %4188 = vxpose.xlu0.b32.cont [14/16] 0.0, 128
    %4189 = vxpose.xlu0.b32.cont [15/16] 0.0, 128
    %4190 = vxpose.xlu0.b32.end [16/16] 0.0, 128
    %v4191 = vpop.trf.xlu0
    %v4192 = vpop.trf.xlu0
    %v4193 = vpop.trf.xlu0
    %v4194 = vpop.trf.xlu0
    %v4195 = vpop.trf.xlu0
    %v4196 = vpop.trf.xlu0
    %v4197 = vpop.trf.xlu0
    %v4198 = vpop.trf.xlu0
    %v4199 = vpop.trf.xlu0
    %v4200 = vpop.trf.xlu0
    %v4201 = vpop.trf.xlu0
    %v4202 = vpop.trf.xlu0
    %v4203 = vpop.trf.xlu0
    %v4204 = vpop.trf.xlu0
    %v4205 = vpop.trf.xlu0
    %v4206 = vpop.trf.xlu0
    %4207 = vxpose.xlu0.b32.start [1/16] %v3921, 128
    %4208 = vxpose.xlu0.b32.cont [2/16] %v3994, 128
    %4209 = vxpose.xlu0.b32.cont [3/16] 0.0, 128
    %4210 = vxpose.xlu0.b32.cont [4/16] 0.0, 128
    %4211 = vxpose.xlu0.b32.cont [5/16] 0.0, 128
    %4212 = vxpose.xlu0.b32.cont [6/16] 0.0, 128
    %4213 = vxpose.xlu0.b32.cont [7/16] 0.0, 128
    %4214 = vxpose.xlu0.b32.cont [8/16] 0.0, 128
    %4215 = vxpose.xlu0.b32.cont [9/16] 0.0, 128
    %4216 = vxpose.xlu0.b32.cont [10/16] 0.0, 128
    %4217 = vxpose.xlu0.b32.cont [11/16] 0.0, 128
    %4218 = vxpose.xlu0.b32.cont [12/16] 0.0, 128
    %4219 = vxpose.xlu0.b32.cont [13/16] 0.0, 128
    %4220 = vxpose.xlu0.b32.cont [14/16] 0.0, 128
    %4221 = vxpose.xlu0.b32.cont [15/16] 0.0, 128
    %4222 = vxpose.xlu0.b32.end [16/16] 0.0, 128
    %v4223 = vpop.trf.xlu0
    %v4224 = vpop.trf.xlu0
    %v4225 = vpop.trf.xlu0
    %v4226 = vpop.trf.xlu0
    %v4227 = vpop.trf.xlu0
    %v4228 = vpop.trf.xlu0
    %v4229 = vpop.trf.xlu0
    %v4230 = vpop.trf.xlu0
    %v4231 = vpop.trf.xlu0
    %v4232 = vpop.trf.xlu0
    %v4233 = vpop.trf.xlu0
    %v4234 = vpop.trf.xlu0
    %v4235 = vpop.trf.xlu0
    %v4236 = vpop.trf.xlu0
    %v4237 = vpop.trf.xlu0
    %v4238 = vpop.trf.xlu0
    %4239 = vxpose.xlu0.b32.start [1/16] %v4067, 128
    %4240 = vxpose.xlu0.b32.cont [2/16] %v4140, 128
    %4241 = vxpose.xlu0.b32.cont [3/16] 0.0, 128
    %4242 = vxpose.xlu0.b32.cont [4/16] 0.0, 128
    %4243 = vxpose.xlu0.b32.cont [5/16] 0.0, 128
    %4244 = vxpose.xlu0.b32.cont [6/16] 0.0, 128
    %4245 = vxpose.xlu0.b32.cont [7/16] 0.0, 128
    %4246 = vxpose.xlu0.b32.cont [8/16] 0.0, 128
    %4247 = vxpose.xlu0.b32.cont [9/16] 0.0, 128
    %4248 = vxpose.xlu0.b32.cont [10/16] 0.0, 128
    %4249 = vxpose.xlu0.b32.cont [11/16] 0.0, 128
    %4250 = vxpose.xlu0.b32.cont [12/16] 0.0, 128
    %4251 = vxpose.xlu0.b32.cont [13/16] 0.0, 128
    %4252 = vxpose.xlu0.b32.cont [14/16] 0.0, 128
    %4253 = vxpose.xlu0.b32.cont [15/16] 0.0, 128
    %4254 = vxpose.xlu0.b32.end [16/16] 0.0, 128
    %v4255 = vpop.trf.xlu0
    %v4256 = vpop.trf.xlu0
    %v4257 = vpop.trf.xlu0
    %v4258 = vpop.trf.xlu0
    %v4259 = vpop.trf.xlu0
    %v4260 = vpop.trf.xlu0
    %v4261 = vpop.trf.xlu0
    %v4262 = vpop.trf.xlu0
    %v4263 = vpop.trf.xlu0
    %v4264 = vpop.trf.xlu0
    %v4265 = vpop.trf.xlu0
    %v4266 = vpop.trf.xlu0
    %v4267 = vpop.trf.xlu0
    %v4268 = vpop.trf.xlu0
    %v4269 = vpop.trf.xlu0
    %v4270 = vpop.trf.xlu0
    %4271 = vxpose.xlu0.b32.start [1/16] %v4159, 128
    %4272 = vxpose.xlu0.b32.cont [2/16] %v4191, 128
    %4273 = vxpose.xlu0.b32.cont [3/16] %v4223, 128
    %4274 = vxpose.xlu0.b32.cont [4/16] %v4255, 128
    %4275 = vxpose.xlu0.b32.cont [5/16] 0.0, 128
    %4276 = vxpose.xlu0.b32.cont [6/16] 0.0, 128
    %4277 = vxpose.xlu0.b32.cont [7/16] 0.0, 128
    %4278 = vxpose.xlu0.b32.cont [8/16] 0.0, 128
    %4279 = vxpose.xlu0.b32.cont [9/16] 0.0, 128
    %4280 = vxpose.xlu0.b32.cont [10/16] 0.0, 128
    %4281 = vxpose.xlu0.b32.cont [11/16] 0.0, 128
    %4282 = vxpose.xlu0.b32.cont [12/16] 0.0, 128
    %4283 = vxpose.xlu0.b32.cont [13/16] 0.0, 128
    %4284 = vxpose.xlu0.b32.cont [14/16] 0.0, 128
    %4285 = vxpose.xlu0.b32.cont [15/16] 0.0, 128
    %4286 = vxpose.xlu0.b32.end [16/16] 0.0, 128
    %v4287 = vpop.trf.xlu0
    %v4288 = vpop.trf.xlu0
    %v4289 = vpop.trf.xlu0
    %v4290 = vpop.trf.xlu0
    %v4291 = vpop.trf.xlu0
    %v4292 = vpop.trf.xlu0
    %v4293 = vpop.trf.xlu0
    %v4294 = vpop.trf.xlu0
    %v4295 = vpop.trf.xlu0
    %v4296 = vpop.trf.xlu0
    %v4297 = vpop.trf.xlu0
    %v4298 = vpop.trf.xlu0
    %v4299 = vpop.trf.xlu0
    %v4300 = vpop.trf.xlu0
    %v4301 = vpop.trf.xlu0
    %v4302 = vpop.trf.xlu0
    %v4303 = vld [vmem:[%s12] sm:$0xff]
    %v4304 = vld [vmem:[%s12 + $0x8] sm:$0xff]
    %v4305 = vld [vmem:[%s12 + $0x10] sm:$0xff]
    %v4306 = vld [vmem:[%s12 + $0x18] sm:$0xff]
    %v4307 = vld [vmem:[%s13] sm:$0x1]
    %v4309 = vlaneseq
    %v4310 = vshrl.u32 %v4309, 7
    %v4311 = vsub.s32 0, %v4310
    %v4312 = vrot.slane %v4307, %v4311
    %v4315 = vsel %vm76, %v4287, 0
    %v4318 = vsel %vm76, %v4288, 0
    %4320 = vmatprep.subr.mxu0 0.0
    %4321 = vmatpush1.msra.mxu0 %v4303
    %4322 = vmatprep.subr.mxu0 0.0
    %4323 = vmatpush1.msra.mxu0 %v4304
    %4324 = vmatprep.subr.mxu0 0.0
    %4325 = vmatpush1.msra.mxu0 %v4305
    %4326 = vmatprep.subr.mxu0 0.0
    %4327 = vmatpush1.msra.mxu0 %v4306
    %4328 = vmatprep.subr.mxu0 0.0
    %4329 = vmatpush1.msra.mxu0 0.0
    %4330 = vmatprep.subr.mxu0 0.0
    %4331 = vmatpush1.msra.mxu0 0.0
    %4332 = vmatprep.subr.mxu0 0.0
    %4333 = vmatpush1.msra.mxu0 0.0
    %4334 = vmatprep.subr.mxu0 0.0
    %4335 = vmatpush1.msra.mxu0 0.0
    %4336 = vmatprep.subr.mxu0 0.0
    %4337 = vmatpush1.msra.mxu0 0.0
    %4338 = vmatprep.subr.mxu0 0.0
    %4339 = vmatpush1.msra.mxu0 0.0
    %4340 = vmatprep.subr.mxu0 0.0
    %4341 = vmatpush1.msra.mxu0 0.0
    %4342 = vmatprep.subr.mxu0 0.0
    %4343 = vmatpush1.msra.mxu0 0.0
    %4344 = vmatprep.subr.mxu0 0.0
    %4345 = vmatpush1.msra.mxu0 0.0
    %4346 = vmatprep.subr.mxu0 0.0
    %4347 = vmatpush1.msra.mxu0 0.0
    %4348 = vmatprep.subr.mxu0 0.0
    %4349 = vmatpush1.msra.mxu0 0.0
    %4350 = vmatprep.subr.mxu0 0.0
    %4351 = vmatpush1.msra.mxu0 0.0
    %4352 = vmatprep.subr.mxu0 0.0
    %4353 = vmatpush1.msra.mxu0 0.0
    %4354 = vmatprep.subr.mxu0 0.0
    %4355 = vmatpush1.msra.mxu0 0.0
    %4356 = vmatprep.subr.mxu0 0.0
    %4357 = vmatpush1.msra.mxu0 0.0
    %4358 = vmatprep.subr.mxu0 0.0
    %4359 = vmatpush1.msra.mxu0 0.0
    %4360 = vmatprep.subr.mxu0 0.0
    %4361 = vmatpush1.msra.mxu0 0.0
    %4362 = vmatprep.subr.mxu0 0.0
    %4363 = vmatpush1.msra.mxu0 0.0
    %4364 = vmatprep.subr.mxu0 0.0
    %4365 = vmatpush1.msra.mxu0 0.0
    %4366 = vmatprep.subr.mxu0 0.0
    %4367 = vmatpush1.msra.mxu0 0.0
    %4368 = vmatprep.subr.mxu0 0.0
    %4369 = vmatpush1.msra.mxu0 0.0
    %4370 = vmatprep.subr.mxu0 0.0
    %4371 = vmatpush1.msra.mxu0 0.0
    %4372 = vmatprep.subr.mxu0 0.0
    %4373 = vmatpush1.msra.mxu0 0.0
    %4374 = vmatprep.subr.mxu0 0.0
    %4375 = vmatpush1.msra.mxu0 0.0
    %4376 = vmatprep.subr.mxu0 0.0
    %4377 = vmatpush1.msra.mxu0 0.0
    %4378 = vmatprep.subr.mxu0 0.0
    %4379 = vmatpush1.msra.mxu0 0.0
    %4380 = vmatprep.subr.mxu0 0.0
    %4381 = vmatpush1.msra.mxu0 0.0
    %4382 = vmatprep.subr.mxu0 0.0
    %4383 = vmatpush1.msra.mxu0 0.0
    %4384 = vmatprep.mubr.f32.mxu0 0.0
    %4385 = vmatmul.mubr.f32.gmra.mrb[0].mxu0 %v4315
    %v4386 = vpop.f32.mrb[0].mxu0
    %v4387 = vadd.f32 %v4312, %v4386
    %v4388 = vpop.f32.mrb[0].mxu0
    %4389 = vmatprep.mubr.f32.mxu0 0.0
    %4390 = vmatmul.mubr.f32.gmra.mrb[0].mxu0 %v4318
    %v4391 = vpop.f32.mrb[0].mxu0
    %v4392 = vadd.f32 %v4312, %v4391
    %v4393 = vpop.f32.mrb[0].mxu0
    %4394 = vdwg.mxu0
    %v4395 = vadd.f32 %v2173, %v4387
    %v4396 = vadd.f32 %v2174, %v4392
    %v4397 = vld [vmem:[%s18 + $0x2] sm:$0x1]
    %v4398 = vld [vmem:[%s19 + $0x2] sm:$0x1]
    %v4399 = vsel %vm76, %v4395, 0.0
    %4400 = vadd.xlane.f32.xlu0 %v4399
    %v4401 = vpop.xlane.xlu0 %4400
    %v4402 = vsel %vm76, %v4396, 0.0
    %4403 = vadd.xlane.f32.xlu0 %v4402
    %v4404 = vpop.xlane.xlu0 %4403
    %v4405 = vmul.f32 %v4401, %v83
    %v4406 = vmul.f32 %v4404, %v83
    %v4407 = vsub.f32 %v4395, %v4405
    %v4408 = vsub.f32 %v4396, %v4406
    %v4409 = vmul.f32 %v4407, %v4407
    %v4410 = vmul.f32 %v4408, %v4408
    %v4411 = vsel %vm76, %v4409, 0.0
    %4412 = vadd.xlane.f32.xlu0 %v4411
    %v4413 = vpop.xlane.xlu0 %4412
    %v4414 = vsel %vm76, %v4410, 0.0
    %4415 = vadd.xlane.f32.xlu0 %v4414
    %v4416 = vpop.xlane.xlu0 %4415
    %v4417 = vmul.f32 %v4413, %v83
    %v4418 = vmul.f32 %v4416, %v83
    %v4419 = vadd.f32 %v4417, 1e-05
    %v4420 = vadd.f32 %v4418, 1e-05
    %v4421 = vrsqrt.pop %v4419
    %v4422 = vrsqrt.pop %v4420
    %v4423 = vmul.f32 %v4407, %v4421
    %v4424 = vmul.f32 %v4408, %v4422
    %v4425 = vlaneseq
    %v4426 = vshrl.u32 %v4425, 7
    %v4427 = vsub.s32 0, %v4426
    %v4428 = vrot.slane %v4397, %v4427
    %v4429 = vmul.f32 %v4423, %v4428
    %v4430 = vmul.f32 %v4424, %v4428
    %v4431 = vlaneseq
    %v4432 = vshrl.u32 %v4431, 7
    %v4433 = vsub.s32 0, %v4432
    %v4434 = vrot.slane %v4398, %v4433
    %v4435 = vadd.f32 %v4429, %v4434
    %v4436 = vadd.f32 %v4430, %v4434
    %v4437 = vld [vmem:[%s14] sm:$0xff]
    %v4438 = vld [vmem:[%s14 + $0x8] sm:$0xff]
    %v4439 = vld [vmem:[%s14 + $0x10] sm:$0xff]
    %v4440 = vld [vmem:[%s14 + $0x18] sm:$0xff]
    %v4441 = vld [vmem:[%s15] sm:$0x1]
    %v4443 = vlaneseq
    %v4444 = vshrl.u32 %v4443, 7
    %v4445 = vsub.s32 0, %v4444
    %v4446 = vrot.slane %v4441, %v4445
    %v4449 = vsel %vm76, %v4435, 0
    %v4452 = vsel %vm76, %v4436, 0
    %4454 = vmatprep.subr.mxu0 0.0
    %4455 = vmatpush1.msra.mxu0 %v4437
    %4456 = vmatprep.subr.mxu0 0.0
    %4457 = vmatpush1.msra.mxu0 %v4438
    %4458 = vmatprep.subr.mxu0 0.0
    %4459 = vmatpush1.msra.mxu0 %v4439
    %4460 = vmatprep.subr.mxu0 0.0
    %4461 = vmatpush1.msra.mxu0 %v4440
    %4462 = vmatprep.subr.mxu0 0.0
    %4463 = vmatpush1.msra.mxu0 0.0
    %4464 = vmatprep.subr.mxu0 0.0
    %4465 = vmatpush1.msra.mxu0 0.0
    %4466 = vmatprep.subr.mxu0 0.0
    %4467 = vmatpush1.msra.mxu0 0.0
    %4468 = vmatprep.subr.mxu0 0.0
    %4469 = vmatpush1.msra.mxu0 0.0
    %4470 = vmatprep.subr.mxu0 0.0
    %4471 = vmatpush1.msra.mxu0 0.0
    %4472 = vmatprep.subr.mxu0 0.0
    %4473 = vmatpush1.msra.mxu0 0.0
    %4474 = vmatprep.subr.mxu0 0.0
    %4475 = vmatpush1.msra.mxu0 0.0
    %4476 = vmatprep.subr.mxu0 0.0
    %4477 = vmatpush1.msra.mxu0 0.0
    %4478 = vmatprep.subr.mxu0 0.0
    %4479 = vmatpush1.msra.mxu0 0.0
    %4480 = vmatprep.subr.mxu0 0.0
    %4481 = vmatpush1.msra.mxu0 0.0
    %4482 = vmatprep.subr.mxu0 0.0
    %4483 = vmatpush1.msra.mxu0 0.0
    %4484 = vmatprep.subr.mxu0 0.0
    %4485 = vmatpush1.msra.mxu0 0.0
    %4486 = vmatprep.subr.mxu0 0.0
    %4487 = vmatpush1.msra.mxu0 0.0
    %4488 = vmatprep.subr.mxu0 0.0
    %4489 = vmatpush1.msra.mxu0 0.0
    %4490 = vmatprep.subr.mxu0 0.0
    %4491 = vmatpush1.msra.mxu0 0.0
    %4492 = vmatprep.subr.mxu0 0.0
    %4493 = vmatpush1.msra.mxu0 0.0
    %4494 = vmatprep.subr.mxu0 0.0
    %4495 = vmatpush1.msra.mxu0 0.0
    %4496 = vmatprep.subr.mxu0 0.0
    %4497 = vmatpush1.msra.mxu0 0.0
    %4498 = vmatprep.subr.mxu0 0.0
    %4499 = vmatpush1.msra.mxu0 0.0
    %4500 = vmatprep.subr.mxu0 0.0
    %4501 = vmatpush1.msra.mxu0 0.0
    %4502 = vmatprep.subr.mxu0 0.0
    %4503 = vmatpush1.msra.mxu0 0.0
    %4504 = vmatprep.subr.mxu0 0.0
    %4505 = vmatpush1.msra.mxu0 0.0
    %4506 = vmatprep.subr.mxu0 0.0
    %4507 = vmatpush1.msra.mxu0 0.0
    %4508 = vmatprep.subr.mxu0 0.0
    %4509 = vmatpush1.msra.mxu0 0.0
    %4510 = vmatprep.subr.mxu0 0.0
    %4511 = vmatpush1.msra.mxu0 0.0
    %4512 = vmatprep.subr.mxu0 0.0
    %4513 = vmatpush1.msra.mxu0 0.0
    %4514 = vmatprep.subr.mxu0 0.0
    %4515 = vmatpush1.msra.mxu0 0.0
    %4516 = vmatprep.subr.mxu0 0.0
    %4517 = vmatpush1.msra.mxu0 0.0
    %4518 = vmatprep.mubr.f32.mxu0 0.0
    %4519 = vmatmul.mubr.f32.gmra.mrb[0].mxu0 %v4449
    %v4520 = vpop.f32.mrb[0].mxu0
    %v4521 = vadd.f32 %v4446, %v4520
    %v4522 = vpop.f32.mrb[0].mxu0
    %4523 = vmatprep.mubr.f32.mxu0 0.0
    %4524 = vmatmul.mubr.f32.gmra.mrb[0].mxu0 %v4452
    %v4525 = vpop.f32.mrb[0].mxu0
    %v4526 = vadd.f32 %v4446, %v4525
    %v4527 = vpop.f32.mrb[0].mxu0
    %4528 = vdwg.mxu0
    %v4529 = vmul.f32 %v4521, 0.5
    %v4530 = vmul.f32 %v4526, 0.5
    %v4531 = vrcp.pop 1.41421
    %v4532 = vmul.f32 %v4521, %v4531
    %v4533 = vmul.f32 %v4526, %v4531
    %v4534 = verf.f32.pop %v4532
    %v4535 = verf.f32.pop %v4533
    %v4536 = vadd.f32 %v4534, 1.0
    %v4537 = vadd.f32 %v4535, 1.0
    %v4538 = vmul.f32 %v4529, %v4536
    %v4539 = vmul.f32 %v4530, %v4537
    %v4540 = vld [vmem:[%s16] sm:$0xff]
    %v4541 = vld [vmem:[%s16 + $0x8] sm:$0xff]
    %v4542 = vld [vmem:[%s16 + $0x10] sm:$0xff]
    %v4543 = vld [vmem:[%s16 + $0x18] sm:$0xff]
    %v4544 = vld [vmem:[%s16 + $0x20] sm:$0xff]
    %v4545 = vld [vmem:[%s16 + $0x28] sm:$0xff]
    %v4546 = vld [vmem:[%s16 + $0x30] sm:$0xff]
    %v4547 = vld [vmem:[%s16 + $0x38] sm:$0xff]
    %v4548 = vld [vmem:[%s17] sm:$0x1]
    %v4550 = vlaneseq
    %v4551 = vshrl.u32 %v4550, 7
    %v4552 = vsub.s32 0, %v4551
    %v4553 = vrot.slane %v4548, %v4552
    %vm4555 = vcmask 523264
    %v4557 = vsel %vm4555, %v4538, 0
    %v4560 = vsel %vm4555, %v4539, 0
    %4562 = vmatprep.subr.mxu0 0.0
    %4563 = vmatpush1.msra.mxu0 %v4540
    %4564 = vmatprep.subr.mxu0 0.0
    %4565 = vmatpush1.msra.mxu0 %v4541
    %4566 = vmatprep.subr.mxu0 0.0
    %4567 = vmatpush1.msra.mxu0 %v4542
    %4568 = vmatprep.subr.mxu0 0.0
    %4569 = vmatpush1.msra.mxu0 %v4543
    %4570 = vmatprep.subr.mxu0 0.0
    %4571 = vmatpush1.msra.mxu0 %v4544
    %4572 = vmatprep.subr.mxu0 0.0
    %4573 = vmatpush1.msra.mxu0 %v4545
    %4574 = vmatprep.subr.mxu0 0.0
    %4575 = vmatpush1.msra.mxu0 %v4546
    %4576 = vmatprep.subr.mxu0 0.0
    %4577 = vmatpush1.msra.mxu0 %v4547
    %4578 = vmatprep.subr.mxu0 0.0
    %4579 = vmatpush1.msra.mxu0 0.0
    %4580 = vmatprep.subr.mxu0 0.0
    %4581 = vmatpush1.msra.mxu0 0.0
    %4582 = vmatprep.subr.mxu0 0.0
    %4583 = vmatpush1.msra.mxu0 0.0
    %4584 = vmatprep.subr.mxu0 0.0
    %4585 = vmatpush1.msra.mxu0 0.0
    %4586 = vmatprep.subr.mxu0 0.0
    %4587 = vmatpush1.msra.mxu0 0.0
    %4588 = vmatprep.subr.mxu0 0.0
    %4589 = vmatpush1.msra.mxu0 0.0
    %4590 = vmatprep.subr.mxu0 0.0
    %4591 = vmatpush1.msra.mxu0 0.0
    %4592 = vmatprep.subr.mxu0 0.0
    %4593 = vmatpush1.msra.mxu0 0.0
    %4594 = vmatprep.subr.mxu0 0.0
    %4595 = vmatpush1.msra.mxu0 0.0
    %4596 = vmatprep.subr.mxu0 0.0
    %4597 = vmatpush1.msra.mxu0 0.0
    %4598 = vmatprep.subr.mxu0 0.0
    %4599 = vmatpush1.msra.mxu0 0.0
    %4600 = vmatprep.subr.mxu0 0.0
    %4601 = vmatpush1.msra.mxu0 0.0
    %4602 = vmatprep.subr.mxu0 0.0
    %4603 = vmatpush1.msra.mxu0 0.0
    %4604 = vmatprep.subr.mxu0 0.0
    %4605 = vmatpush1.msra.mxu0 0.0
    %4606 = vmatprep.subr.mxu0 0.0
    %4607 = vmatpush1.msra.mxu0 0.0
    %4608 = vmatprep.subr.mxu0 0.0
    %4609 = vmatpush1.msra.mxu0 0.0
    %4610 = vmatprep.subr.mxu0 0.0
    %4611 = vmatpush1.msra.mxu0 0.0
    %4612 = vmatprep.subr.mxu0 0.0
    %4613 = vmatpush1.msra.mxu0 0.0
    %4614 = vmatprep.subr.mxu0 0.0
    %4615 = vmatpush1.msra.mxu0 0.0
    %4616 = vmatprep.subr.mxu0 0.0
    %4617 = vmatpush1.msra.mxu0 0.0
    %4618 = vmatprep.subr.mxu0 0.0
    %4619 = vmatpush1.msra.mxu0 0.0
    %4620 = vmatprep.subr.mxu0 0.0
    %4621 = vmatpush1.msra.mxu0 0.0
    %4622 = vmatprep.subr.mxu0 0.0
    %4623 = vmatpush1.msra.mxu0 0.0
    %4624 = vmatprep.subr.mxu0 0.0
    %4625 = vmatpush1.msra.mxu0 0.0
    %4626 = vmatprep.mubr.f32.mxu0 0.0
    %4627 = vmatmul.mubr.f32.gmra.mrb[0].mxu0 %v4557
    %v4628 = vpop.f32.mrb[0].mxu0
    %v4629 = vadd.f32 %v4553, %v4628
    %v4630 = vpop.f32.mrb[0].mxu0
    %4631 = vmatprep.mubr.f32.mxu0 0.0
    %4632 = vmatmul.mubr.f32.gmra.mrb[0].mxu0 %v4560
    %v4633 = vpop.f32.mrb[0].mxu0
    %v4634 = vadd.f32 %v4553, %v4633
    %v4635 = vpop.f32.mrb[0].mxu0
    %4636 = vdwg.mxu0
    %v4637 = vadd.f32 %v4395, %v4629
    %v4638 = vadd.f32 %v4396, %v4634
    %4639 = vst.msk [vmem:[#allocation2] sm:$0xff] %vm76, %v4637
    %4640 = vst.msk [vmem:[#allocation2 + $0x8] sm:$0xff] %vm76, %v4638
    // Predicated region
    $region82: #{decoder_layer.1} parent=1 // pred_check
      _
    $region83: #{decoder_layer.1} parent=1 // pred_check_branch
      %4642 = sbr.rel (0) target = $region85
    $region84: #{decoder_layer.1} parent=1 // pred_region
      %s4644 = ssub.s32 256, 256
      %4645 = vsyncadd [#allocation3], %s4644
      %s4646 = sshll.u32 [#allocation2], 4
      %s4647 = int_to_ptr.vmem [resolvable:$true] %s4646
      %4652 = dma.vmem_to_hbm [thread:$0]  %s4647, 256, %s20, [#allocation3], 128, 128, 8
    $region85: #{decoder_layer.1} parent=1 // pred_fallthru
      _
    // Predicated region
    $region86: #{decoder_layer.1} parent=1 // pred_check
      _
    $region87: #{decoder_layer.1} parent=1 // pred_check_branch
      %4654 = sbr.rel (0) target = $region89
    $region88: #{decoder_layer.1} parent=1 // pred_region
      %4655 = dma.done [#allocation3], 256
    $region89: #{decoder_layer.1} parent=1 // pred_fallthru
      _
    %4656 = vsyncpa [#allocation3], 1

</llo_original>
